<compile_context>
chip_gen: v7x
topology: tpu7x:2x2x1
jax: 0.10.0
libtpu: 0.0.40
codegen_flags: <defaults>
</compile_context>

<pallas_src>
import functools
import numpy as np
import jax
import jax.numpy as jnp
from jax.experimental import pallas as pl
from jax.experimental.pallas import tpu as pltpu


# ---------------------------------------------------------------------------
# Host-side constant matrices: block-diagonal real DFT operators (norm='ortho')
# that apply rfft / irfft along the seq axis of BOTH stacked halves at once.
# ---------------------------------------------------------------------------
def make_filter_mats(S):
    K = S // 2 + 1
    n = np.arange(S)
    k = np.arange(K)
    ang = 2.0 * np.pi * np.outer(k, n) / S            # (K, S)
    inv_sqrt = 1.0 / np.sqrt(S)
    f_cos = np.cos(ang) * inv_sqrt                    # X_re = f_cos @ x
    f_sin = -np.sin(ang) * inv_sqrt                   # X_im = f_sin @ x
    a = np.full((K,), 2.0)
    a[0] = 1.0
    if S % 2 == 0:
        a[-1] = 1.0
    i_cos = (np.cos(ang) * a[:, None]).T * inv_sqrt   # (S, K)
    i_sin = (-np.sin(ang) * a[:, None]).T * inv_sqrt  # (S, K)
    z_ks = np.zeros((K, S))
    z_sk = np.zeros((S, K))
    fcos2 = np.block([[f_cos, z_ks], [z_ks, f_cos]])  # (2K, 2S)
    fsin2 = np.block([[f_sin, z_ks], [z_ks, f_sin]])  # (2K, 2S)
    icos2 = np.block([[i_cos, z_sk], [z_sk, i_cos]])  # (2S, 2K)
    isin2 = np.block([[i_sin, z_sk], [z_sk, i_sin]])  # (2S, 2K)
    return tuple(jnp.asarray(m, jnp.float32) for m in (fcos2, fsin2, icos2, isin2))


# ---------------------------------------------------------------------------
# Fused kernel: one grid step = one batch element, both text and img paths.
# ---------------------------------------------------------------------------
def _fused_kernel(text_ref, img_ref, wq_ref, wk_ref, wv_ref,
                  bq_ref, bk_ref, bv_ref, wfc_ref, bfc_ref,
                  fcos_ref, fsin_ref, icos_ref, isin_ref,
                  wre_ref, wim_ref, gamma_ref, betaln_ref,
                  layw_ref, layb_ref, o_ref,
                  *, nh, seq, head_dim, mix_beta, eps):
    S = seq
    x_text = text_ref[0]                                   # (S, H)
    x_img = img_ref[0]                                     # (S, H)
    x = jnp.concatenate([x_text, x_img], axis=0)           # (2S, H) stacked halves
    H = x.shape[-1]

    # Crossed-attention mask: text queries (rows < S) attend only to img keys
    # (cols >= S) and vice versa -> block-anti-diagonal.
    row = jax.lax.broadcasted_iota(jnp.int32, (2 * S, 2 * S), 0)
    col = jax.lax.broadcasted_iota(jnp.int32, (2 * S, 2 * S), 1)
    allowed = (row < S) != (col < S)
    mask_bias = jnp.where(allowed, jnp.float32(0.0), jnp.float32(-1e30))

    scale = 1.0 / (head_dim ** 0.5)
    acc = jnp.zeros((2 * S, H), jnp.float32)
    for h in range(nh):                                    # static, unrolled
        q_h = jnp.dot(x, wq_ref[h], preferred_element_type=jnp.float32) + bq_ref[h]
        k_h = jnp.dot(x, wk_ref[h], preferred_element_type=jnp.float32) + bk_ref[h]
        v_h = jnp.dot(x, wv_ref[h], preferred_element_type=jnp.float32) + bv_ref[h]
        s = jax.lax.dot_general(q_h, k_h, (((1,), (1,)), ((), ())),
                                preferred_element_type=jnp.float32)
        s = s * scale + mask_bias                          # (2S, 2S)
        m = jnp.max(s, axis=-1, keepdims=True)
        e = jnp.exp(s - m)
        denom = jnp.sum(e, axis=-1, keepdims=True)
        p = e * pl.reciprocal(denom, approx=True)
        o_h = jnp.dot(p, v_h, preferred_element_type=jnp.float32)       # (2S, d)
        acc = acc + jnp.dot(o_h, wfc_ref[h], preferred_element_type=jnp.float32)
    fc_out = acc + bfc_ref[...]                            # (2S, H) both attention outputs

    # beta-mix with the residual inputs.
    mixed = mix_beta * fc_out + (1.0 - mix_beta) * x       # (2S, H)

    # Spectral filter: rfft -> complex-weight multiply -> irfft (norm='ortho'),
    # applied to both halves at once via block-diagonal DFT matrices.
    xre = jnp.dot(fcos_ref[...], mixed, preferred_element_type=jnp.float32)   # (2K, H)
    xim = jnp.dot(fsin_ref[...], mixed, preferred_element_type=jnp.float32)   # (2K, H)
    wre = wre_ref[...]
    wim = wim_ref[...]
    yre = xre * wre - xim * wim
    yim = xre * wim + xim * wre
    filt = (jnp.dot(icos_ref[...], yre, preferred_element_type=jnp.float32)
            + jnp.dot(isin_ref[...], yim, preferred_element_type=jnp.float32))  # (2S, H)

    # Residual (dropout = identity) + LayerNorm (eps = 1e-12, as in the module).
    hstates = filt + mixed
    u = jnp.mean(hstates, axis=-1, keepdims=True)
    var = jnp.mean((hstates - u) ** 2, axis=-1, keepdims=True)
    hn = (hstates - u) * jax.lax.rsqrt(var + eps)
    ln = gamma_ref[...] * hn + betaln_ref[...]             # (2S, H)

    # Shared final Linear folded: text_hs + img_hs = (ln_t + ln_i) @ W + 2*b.
    summed = ln[:S] + ln[S:]                               # (S, H)
    out = (jnp.dot(summed, layw_ref[...], preferred_element_type=jnp.float32)
           + 2.0 * layb_ref[...])
    o_ref[0] = out


# ---------------------------------------------------------------------------
# Wrapper: one pallas_call for the whole LearnableFilter forward.
# ---------------------------------------------------------------------------
def learnable_filter_forward(text, img, params, config):
    B, S, H = text.shape
    nh = config['c_num_heads']
    ca = params['cross_attention']
    C = ca['Wq'].shape[1]
    d = C // nh
    K = S // 2 + 1

    # Head-major weight slabs so the kernel needs no in-kernel lane slicing.
    wq = ca['Wq'].reshape(H, nh, d).transpose(1, 0, 2)     # (nh, H, d)
    wk = ca['Wk'].reshape(H, nh, d).transpose(1, 0, 2)
    wv = ca['Wv'].reshape(H, nh, d).transpose(1, 0, 2)
    bq = ca['bq'].reshape(nh, 1, d)
    bk = ca['bk'].reshape(nh, 1, d)
    bv = ca['bv'].reshape(nh, 1, d)
    wfc = ca['Wfc'].reshape(nh, d, H)                      # (nh, d, H)
    bfc = ca['bfc'].reshape(1, H)

    fcos2, fsin2, icos2, isin2 = params['dft2']
    wre2 = jnp.concatenate([params['w_re'], params['w_re']], axis=0)   # (2K, H)
    wim2 = jnp.concatenate([params['w_im'], params['w_im']], axis=0)   # (2K, H)

    gamma = params['ln_gamma'].reshape(1, H)
    beta_ln = params['ln_beta'].reshape(1, H)
    layer_w = params['layer_w']
    layer_b = params['layer_b'].reshape(1, H)

    kernel = functools.partial(_fused_kernel, nh=nh, seq=S, head_dim=d,
                               mix_beta=float(config['beta']), eps=1e-12)

    full2 = lambda b: (0, 0)
    full3 = lambda b: (0, 0, 0)
    batch3 = lambda b: (b, 0, 0)

    return pl.pallas_call(
        kernel,
        out_shape=jax.ShapeDtypeStruct((B, S, H), jnp.float32),
        grid=(B,),
        in_specs=[
            pl.BlockSpec((1, S, H), batch3),           # text
            pl.BlockSpec((1, S, H), batch3),           # img
            pl.BlockSpec((nh, H, d), full3),           # Wq (head-major)
            pl.BlockSpec((nh, H, d), full3),           # Wk
            pl.BlockSpec((nh, H, d), full3),           # Wv
            pl.BlockSpec((nh, 1, d), full3),           # bq
            pl.BlockSpec((nh, 1, d), full3),           # bk
            pl.BlockSpec((nh, 1, d), full3),           # bv
            pl.BlockSpec((nh, d, H), full3),           # Wfc (head-major)
            pl.BlockSpec((1, H), full2),               # bfc
            pl.BlockSpec((2 * K, 2 * S), full2),       # fcos (block-diag)
            pl.BlockSpec((2 * K, 2 * S), full2),       # fsin
            pl.BlockSpec((2 * S, 2 * K), full2),       # icos
            pl.BlockSpec((2 * S, 2 * K), full2),       # isin
            pl.BlockSpec((2 * K, H), full2),           # w_re (stacked x2)
            pl.BlockSpec((2 * K, H), full2),           # w_im (stacked x2)
            pl.BlockSpec((1, H), full2),               # LN gamma
            pl.BlockSpec((1, H), full2),               # LN beta
            pl.BlockSpec((H, H), full2),               # layer W
            pl.BlockSpec((1, H), full2),               # layer b
        ],
        out_specs=pl.BlockSpec((1, S, H), batch3),
        compiler_params=pltpu.CompilerParams(
            dimension_semantics=("parallel",)),
    )(text, img, wq, wk, wv, bq, bk, bv, wfc, bfc,
      fcos2, fsin2, icos2, isin2, wre2, wim2,
      gamma, beta_ln, layer_w, layer_b)


# ---------------------------------------------------------------------------
# Pure-JAX reference (uses jnp.fft) for correctness check
# ---------------------------------------------------------------------------
def reference_forward(text, img, params, config):
    def lin(x, w, b):
        return x @ w + b

    def cross(t, im):
        B, Sq, _ = t.shape
        _, Sk, _ = im.shape
        ca = params['cross_attention']
        nh = config['c_num_heads']
        q = lin(t, ca['Wq'], ca['bq'])
        k = lin(im, ca['Wk'], ca['bk'])
        v = lin(im, ca['Wv'], ca['bv'])
        d = q.shape[-1] // nh
        q = q.reshape(B, Sq, nh, d).transpose(0, 2, 1, 3)
        k = k.reshape(B, Sk, nh, d).transpose(0, 2, 1, 3)
        v = v.reshape(B, Sk, nh, d).transpose(0, 2, 1, 3)
        s = jnp.einsum('bhqd,bhkd->bhqk', q, k) / d ** 0.5
        p = jax.nn.softmax(s, axis=-1)
        o = jnp.einsum('bhqk,bhkd->bhqd', p, v)
        o = o.transpose(0, 2, 1, 3).reshape(B, Sq, -1)
        return lin(o, ca['Wfc'], ca['bfc'])

    beta = config['beta']
    ct = cross(text, img)
    ci = cross(img, text)
    text = beta * ct + (1 - beta) * text
    img = beta * ci + (1 - beta) * img
    w = params['w_re'] + 1j * params['w_im']

    def branch(x):
        S = x.shape[1]
        X = jnp.fft.rfft(x, axis=1, norm='ortho')
        X = X * w[None]
        y = jnp.fft.irfft(X, n=S, axis=1, norm='ortho')
        h = y + x
        u = jnp.mean(h, -1, keepdims=True)
        s2 = jnp.mean((h - u) ** 2, -1, keepdims=True)
        hn = (h - u) / jnp.sqrt(s2 + 1e-12)
        hn = params['ln_gamma'] * hn + params['ln_beta']
        return hn @ params['layer_w'] + params['layer_b']

    return branch(text) + branch(img)


# ---------------------------------------------------------------------------
if __name__ == "__main__":
    config = dict(plm_size=32, img_size=32, c_hidden_dim=32, c_num_heads=4,
                  hidden_dropout=0.0, f_dropout=0.0, beta=0.5)
    max_seq_length = 8
    B, S, H = 2, max_seq_length, config['plm_size']
    K = S // 2 + 1

    key = jax.random.PRNGKey(0)
    keys = jax.random.split(key, 16)

    def init(k, shape, scale=0.02):
        return jax.random.normal(k, shape, jnp.float32) * scale

    cw = init(keys[0], (1, K, H, 2))   # complex_weight, like torch.randn(...)*0.02
    params = {
        'w_re': cw[0, :, :, 0],
        'w_im': cw[0, :, :, 1],
        'ln_gamma': jnp.ones((1, H), jnp.float32),
        'ln_beta': jnp.zeros((1, H), jnp.float32),
        'layer_w': init(keys[1], (H, H)),
        'layer_b': init(keys[2], (H,)),
        'dft2': make_filter_mats(S),
        'cross_attention': {
            'Wq': init(keys[3], (config['plm_size'], config['c_hidden_dim'])),
            'bq': init(keys[4], (config['c_hidden_dim'],)),
            'Wk': init(keys[5], (config['img_size'], config['c_hidden_dim'])),
            'bk': init(keys[6], (config['c_hidden_dim'],)),
            'Wv': init(keys[7], (config['img_size'], config['c_hidden_dim'])),
            'bv': init(keys[8], (config['c_hidden_dim'],)),
            'Wfc': init(keys[9], (config['c_hidden_dim'], config['plm_size'])),
            'bfc': init(keys[10], (config['plm_size'],)),
        },
    }

    text = jax.random.normal(keys[11], (B, S, H), jnp.float32)
    img = jax.random.normal(keys[12], (B, S, H), jnp.float32)

    out = learnable_filter_forward(text, img, params, config)
    out = jax.block_until_ready(out)

    ref = reference_forward(text, img, params, config)
    ref = jax.block_until_ready(ref)

    assert out.shape == (B, S, H), out.shape
    np.testing.assert_allclose(np.asarray(out), np.asarray(ref), rtol=2e-2, atol=2e-2)
    print("KERNEL_OK")
</pallas_src>

<mosaic_0001>
module attributes {stable_mosaic.version = 11 : i64} {
  func.func @_fused_kernel(%arg0: i32, %arg1: memref<1x8x32xf32, #tpu.memory_space<vmem>>, %arg2: memref<1x8x32xf32, #tpu.memory_space<vmem>>, %arg3: memref<4x32x8xf32, #tpu.memory_space<vmem>>, %arg4: memref<4x32x8xf32, #tpu.memory_space<vmem>>, %arg5: memref<4x32x8xf32, #tpu.memory_space<vmem>>, %arg6: memref<4x1x8xf32, #tpu.memory_space<vmem>>, %arg7: memref<4x1x8xf32, #tpu.memory_space<vmem>>, %arg8: memref<4x1x8xf32, #tpu.memory_space<vmem>>, %arg9: memref<4x8x32xf32, #tpu.memory_space<vmem>>, %arg10: memref<1x32xf32, #tpu.memory_space<vmem>>, %arg11: memref<10x16xf32, #tpu.memory_space<vmem>>, %arg12: memref<10x16xf32, #tpu.memory_space<vmem>>, %arg13: memref<16x10xf32, #tpu.memory_space<vmem>>, %arg14: memref<16x10xf32, #tpu.memory_space<vmem>>, %arg15: memref<10x32xf32, #tpu.memory_space<vmem>>, %arg16: memref<10x32xf32, #tpu.memory_space<vmem>>, %arg17: memref<1x32xf32, #tpu.memory_space<vmem>>, %arg18: memref<1x32xf32, #tpu.memory_space<vmem>>, %arg19: memref<32x32xf32, #tpu.memory_space<vmem>>, %arg20: memref<1x32xf32, #tpu.memory_space<vmem>>, %arg21: memref<1x8x32xf32, #tpu.memory_space<vmem>>) attributes {dimension_semantics = [#tpu.dimension_semantics<parallel>], iteration_bounds = array<i64: 2>, scalar_prefetch = 0 : i64, scratch_operands = 0 : i64, tpu.core_type = #tpu.core_type<tc>, window_params = [{transform_indices = @transform_0, window_bounds = array<i64: 1, 8, 32>}, {transform_indices = @transform_1, window_bounds = array<i64: 1, 8, 32>}, {pipeline_mode = #tpu.pipeline_mode<synchronous>, transform_indices = @transform_2, window_bounds = array<i64: 4, 32, 8>}, {pipeline_mode = #tpu.pipeline_mode<synchronous>, transform_indices = @transform_3, window_bounds = array<i64: 4, 32, 8>}, {pipeline_mode = #tpu.pipeline_mode<synchronous>, transform_indices = @transform_4, window_bounds = array<i64: 4, 32, 8>}, {pipeline_mode = #tpu.pipeline_mode<synchronous>, transform_indices = @transform_5, window_bounds = array<i64: 4, 1, 8>}, {pipeline_mode = #tpu.pipeline_mode<synchronous>, transform_indices = @transform_6, window_bounds = array<i64: 4, 1, 8>}, {pipeline_mode = #tpu.pipeline_mode<synchronous>, transform_indices = @transform_7, window_bounds = array<i64: 4, 1, 8>}, {pipeline_mode = #tpu.pipeline_mode<synchronous>, transform_indices = @transform_8, window_bounds = array<i64: 4, 8, 32>}, {pipeline_mode = #tpu.pipeline_mode<synchronous>, transform_indices = @transform_9, window_bounds = array<i64: 1, 32>}, {pipeline_mode = #tpu.pipeline_mode<synchronous>, transform_indices = @transform_10, window_bounds = array<i64: 10, 16>}, {pipeline_mode = #tpu.pipeline_mode<synchronous>, transform_indices = @transform_11, window_bounds = array<i64: 10, 16>}, {pipeline_mode = #tpu.pipeline_mode<synchronous>, transform_indices = @transform_12, window_bounds = array<i64: 16, 10>}, {pipeline_mode = #tpu.pipeline_mode<synchronous>, transform_indices = @transform_13, window_bounds = array<i64: 16, 10>}, {pipeline_mode = #tpu.pipeline_mode<synchronous>, transform_indices = @transform_14, window_bounds = array<i64: 10, 32>}, {pipeline_mode = #tpu.pipeline_mode<synchronous>, transform_indices = @transform_15, window_bounds = array<i64: 10, 32>}, {pipeline_mode = #tpu.pipeline_mode<synchronous>, transform_indices = @transform_16, window_bounds = array<i64: 1, 32>}, {pipeline_mode = #tpu.pipeline_mode<synchronous>, transform_indices = @transform_17, window_bounds = array<i64: 1, 32>}, {pipeline_mode = #tpu.pipeline_mode<synchronous>, transform_indices = @transform_18, window_bounds = array<i64: 32, 32>}, {pipeline_mode = #tpu.pipeline_mode<synchronous>, transform_indices = @transform_19, window_bounds = array<i64: 1, 32>}, {transform_indices = @transform_20, window_bounds = array<i64: 1, 8, 32>}]} {
    %c0 = arith.constant 0 : index
    %c0_0 = arith.constant 0 : index
    %c0_1 = arith.constant 0 : index
    %0 = vector.load %arg1[%c0, %c0_0, %c0_1] : memref<1x8x32xf32, #tpu.memory_space<vmem>>, vector<1x8x32xf32>
    %1 = vector.shape_cast %0 : vector<1x8x32xf32> to vector<8x32xf32>
    %c0_2 = arith.constant 0 : index
    %c0_3 = arith.constant 0 : index
    %c0_4 = arith.constant 0 : index
    %2 = vector.load %arg2[%c0_2, %c0_3, %c0_4] : memref<1x8x32xf32, #tpu.memory_space<vmem>>, vector<1x8x32xf32>
    %3 = vector.shape_cast %2 : vector<1x8x32xf32> to vector<8x32xf32>
    %4 = tpu.concatenate %1, %3 in 0 : vector<8x32xf32>, vector<8x32xf32> -> vector<16x32xf32>
    %5 = tpu.iota {dimensions = array<i32: 0>} : vector<16x16xi32>
    %6 = tpu.iota {dimensions = array<i32: 1>} : vector<16x16xi32>
    %c8_i32 = arith.constant 8 : i32
    %7 = vector.broadcast %c8_i32 : i32 to vector<16x16xi32>
    %8 = arith.cmpi slt, %5, %7 : vector<16x16xi32>
    %c8_i32_5 = arith.constant 8 : i32
    %9 = vector.broadcast %c8_i32_5 : i32 to vector<16x16xi32>
    %10 = arith.cmpi slt, %6, %9 : vector<16x16xi32>
    %11 = arith.xori %8, %10 : vector<16x16xi1>
    %cst = arith.constant 0.000000e+00 : f32
    %cst_6 = arith.constant -1.000000e+30 : f32
    %12 = vector.broadcast %cst : f32 to vector<16x16xf32>
    %13 = vector.broadcast %cst_6 : f32 to vector<16x16xf32>
    %14 = arith.select %11, %12, %13 : vector<16x16xi1>, vector<16x16xf32>
    %cst_7 = arith.constant 0.000000e+00 : f32
    %15 = vector.broadcast %cst_7 : f32 to vector<16x32xf32>
    %c0_8 = arith.constant 0 : index
    %c0_9 = arith.constant 0 : index
    %c0_10 = arith.constant 0 : index
    %16 = vector.load %arg3[%c0_8, %c0_9, %c0_10] : memref<4x32x8xf32, #tpu.memory_space<vmem>>, vector<1x32x8xf32>
    %17 = vector.shape_cast %16 : vector<1x32x8xf32> to vector<32x8xf32>
    %cst_11 = arith.constant dense<0.000000e+00> : vector<16x8xf32>
    %18 = tpu.matmul %4, %17, %cst_11 {dimension_numbers = #tpu.dot_dimension_numbers<[1], [0], [0], [1], [0, 0, 1, 1], [], []>} : vector<16x32xf32>, vector<32x8xf32>, vector<16x8xf32> -> vector<16x8xf32>
    %c0_12 = arith.constant 0 : index
    %c0_13 = arith.constant 0 : index
    %c0_14 = arith.constant 0 : index
    %19 = vector.load %arg6[%c0_12, %c0_13, %c0_14] : memref<4x1x8xf32, #tpu.memory_space<vmem>>, vector<1x1x8xf32>
    %20 = vector.shape_cast %19 : vector<1x1x8xf32> to vector<1x8xf32>
    %21 = vector.broadcast %20 : vector<1x8xf32> to vector<16x8xf32>
    %22 = arith.addf %18, %21 : vector<16x8xf32>
    %c0_15 = arith.constant 0 : index
    %c0_16 = arith.constant 0 : index
    %c0_17 = arith.constant 0 : index
    %23 = vector.load %arg4[%c0_15, %c0_16, %c0_17] : memref<4x32x8xf32, #tpu.memory_space<vmem>>, vector<1x32x8xf32>
    %24 = vector.shape_cast %23 : vector<1x32x8xf32> to vector<32x8xf32>
    %cst_18 = arith.constant dense<0.000000e+00> : vector<16x8xf32>
    %25 = tpu.matmul %4, %24, %cst_18 {dimension_numbers = #tpu.dot_dimension_numbers<[1], [0], [0], [1], [0, 0, 1, 1], [], []>} : vector<16x32xf32>, vector<32x8xf32>, vector<16x8xf32> -> vector<16x8xf32>
    %c0_19 = arith.constant 0 : index
    %c0_20 = arith.constant 0 : index
    %c0_21 = arith.constant 0 : index
    %26 = vector.load %arg7[%c0_19, %c0_20, %c0_21] : memref<4x1x8xf32, #tpu.memory_space<vmem>>, vector<1x1x8xf32>
    %27 = vector.shape_cast %26 : vector<1x1x8xf32> to vector<1x8xf32>
    %28 = vector.broadcast %27 : vector<1x8xf32> to vector<16x8xf32>
    %29 = arith.addf %25, %28 : vector<16x8xf32>
    %c0_22 = arith.constant 0 : index
    %c0_23 = arith.constant 0 : index
    %c0_24 = arith.constant 0 : index
    %30 = vector.load %arg5[%c0_22, %c0_23, %c0_24] : memref<4x32x8xf32, #tpu.memory_space<vmem>>, vector<1x32x8xf32>
    %31 = vector.shape_cast %30 : vector<1x32x8xf32> to vector<32x8xf32>
    %cst_25 = arith.constant dense<0.000000e+00> : vector<16x8xf32>
    %32 = tpu.matmul %4, %31, %cst_25 {dimension_numbers = #tpu.dot_dimension_numbers<[1], [0], [0], [1], [0, 0, 1, 1], [], []>} : vector<16x32xf32>, vector<32x8xf32>, vector<16x8xf32> -> vector<16x8xf32>
    %c0_26 = arith.constant 0 : index
    %c0_27 = arith.constant 0 : index
    %c0_28 = arith.constant 0 : index
    %33 = vector.load %arg8[%c0_26, %c0_27, %c0_28] : memref<4x1x8xf32, #tpu.memory_space<vmem>>, vector<1x1x8xf32>
    %34 = vector.shape_cast %33 : vector<1x1x8xf32> to vector<1x8xf32>
    %35 = vector.broadcast %34 : vector<1x8xf32> to vector<16x8xf32>
    %36 = arith.addf %32, %35 : vector<16x8xf32>
    %cst_29 = arith.constant dense<0.000000e+00> : vector<16x16xf32>
    %37 = tpu.matmul %22, %29, %cst_29 {dimension_numbers = #tpu.dot_dimension_numbers<[1], [1], [0], [0], [0, 0, 1, 0], [], []>} : vector<16x8xf32>, vector<16x8xf32>, vector<16x16xf32> -> vector<16x16xf32>
    %cst_30 = arith.constant 0.353553385 : f32
    %38 = vector.broadcast %cst_30 : f32 to vector<16x16xf32>
    %39 = arith.mulf %37, %38 : vector<16x16xf32>
    %40 = arith.addf %39, %14 : vector<16x16xf32>
    %cst_31 = arith.constant dense<0xFF800000> : vector<16xf32>
    %41 = vector.multi_reduction <maximumf>, %40, %cst_31 [1] : vector<16x16xf32> to vector<16xf32>
    %42 = vector.shape_cast %41 : vector<16xf32> to vector<16x1xf32>
    %43 = vector.broadcast %42 : vector<16x1xf32> to vector<16x16xf32>
    %44 = arith.subf %40, %43 : vector<16x16xf32>
    %45 = math.exp %44 : vector<16x16xf32>
    %cst_32 = arith.constant dense<0.000000e+00> : vector<16xf32>
    %46 = vector.multi_reduction <add>, %45, %cst_32 [1] : vector<16x16xf32> to vector<16xf32>
    %47 = vector.shape_cast %46 : vector<16xf32> to vector<16x1xf32>
    %48 = tpu.reciprocal %47 {approx = true} : vector<16x1xf32> -> vector<16x1xf32>
    %49 = vector.broadcast %48 : vector<16x1xf32> to vector<16x16xf32>
    %50 = arith.mulf %45, %49 : vector<16x16xf32>
    %cst_33 = arith.constant dense<0.000000e+00> : vector<16x8xf32>
    %51 = tpu.matmul %50, %36, %cst_33 {dimension_numbers = #tpu.dot_dimension_numbers<[1], [0], [0], [1], [0, 0, 1, 1], [], []>} : vector<16x16xf32>, vector<16x8xf32>, vector<16x8xf32> -> vector<16x8xf32>
    %c0_34 = arith.constant 0 : index
    %c0_35 = arith.constant 0 : index
    %c0_36 = arith.constant 0 : index
    %52 = vector.load %arg9[%c0_34, %c0_35, %c0_36] : memref<4x8x32xf32, #tpu.memory_space<vmem>>, vector<1x8x32xf32>
    %53 = vector.shape_cast %52 : vector<1x8x32xf32> to vector<8x32xf32>
    %cst_37 = arith.constant dense<0.000000e+00> : vector<16x32xf32>
    %54 = tpu.matmul %51, %53, %cst_37 {dimension_numbers = #tpu.dot_dimension_numbers<[1], [0], [0], [1], [0, 0, 1, 1], [], []>} : vector<16x8xf32>, vector<8x32xf32>, vector<16x32xf32> -> vector<16x32xf32>
    %55 = arith.addf %15, %54 : vector<16x32xf32>
    %c1 = arith.constant 1 : index
    %c0_38 = arith.constant 0 : index
    %c0_39 = arith.constant 0 : index
    %56 = vector.load %arg3[%c1, %c0_38, %c0_39] : memref<4x32x8xf32, #tpu.memory_space<vmem>>, vector<1x32x8xf32>
    %57 = vector.shape_cast %56 : vector<1x32x8xf32> to vector<32x8xf32>
    %cst_40 = arith.constant dense<0.000000e+00> : vector<16x8xf32>
    %58 = tpu.matmul %4, %57, %cst_40 {dimension_numbers = #tpu.dot_dimension_numbers<[1], [0], [0], [1], [0, 0, 1, 1], [], []>} : vector<16x32xf32>, vector<32x8xf32>, vector<16x8xf32> -> vector<16x8xf32>
    %c1_41 = arith.constant 1 : index
    %c0_42 = arith.constant 0 : index
    %c0_43 = arith.constant 0 : index
    %59 = vector.load %arg6[%c1_41, %c0_42, %c0_43] : memref<4x1x8xf32, #tpu.memory_space<vmem>>, vector<1x1x8xf32>
    %60 = vector.shape_cast %59 : vector<1x1x8xf32> to vector<1x8xf32>
    %61 = vector.broadcast %60 : vector<1x8xf32> to vector<16x8xf32>
    %62 = arith.addf %58, %61 : vector<16x8xf32>
    %c1_44 = arith.constant 1 : index
    %c0_45 = arith.constant 0 : index
    %c0_46 = arith.constant 0 : index
    %63 = vector.load %arg4[%c1_44, %c0_45, %c0_46] : memref<4x32x8xf32, #tpu.memory_space<vmem>>, vector<1x32x8xf32>
    %64 = vector.shape_cast %63 : vector<1x32x8xf32> to vector<32x8xf32>
    %cst_47 = arith.constant dense<0.000000e+00> : vector<16x8xf32>
    %65 = tpu.matmul %4, %64, %cst_47 {dimension_numbers = #tpu.dot_dimension_numbers<[1], [0], [0], [1], [0, 0, 1, 1], [], []>} : vector<16x32xf32>, vector<32x8xf32>, vector<16x8xf32> -> vector<16x8xf32>
    %c1_48 = arith.constant 1 : index
    %c0_49 = arith.constant 0 : index
    %c0_50 = arith.constant 0 : index
    %66 = vector.load %arg7[%c1_48, %c0_49, %c0_50] : memref<4x1x8xf32, #tpu.memory_space<vmem>>, vector<1x1x8xf32>
    %67 = vector.shape_cast %66 : vector<1x1x8xf32> to vector<1x8xf32>
    %68 = vector.broadcast %67 : vector<1x8xf32> to vector<16x8xf32>
    %69 = arith.addf %65, %68 : vector<16x8xf32>
    %c1_51 = arith.constant 1 : index
    %c0_52 = arith.constant 0 : index
    %c0_53 = arith.constant 0 : index
    %70 = vector.load %arg5[%c1_51, %c0_52, %c0_53] : memref<4x32x8xf32, #tpu.memory_space<vmem>>, vector<1x32x8xf32>
    %71 = vector.shape_cast %70 : vector<1x32x8xf32> to vector<32x8xf32>
    %cst_54 = arith.constant dense<0.000000e+00> : vector<16x8xf32>
    %72 = tpu.matmul %4, %71, %cst_54 {dimension_numbers = #tpu.dot_dimension_numbers<[1], [0], [0], [1], [0, 0, 1, 1], [], []>} : vector<16x32xf32>, vector<32x8xf32>, vector<16x8xf32> -> vector<16x8xf32>
    %c1_55 = arith.constant 1 : index
    %c0_56 = arith.constant 0 : index
    %c0_57 = arith.constant 0 : index
    %73 = vector.load %arg8[%c1_55, %c0_56, %c0_57] : memref<4x1x8xf32, #tpu.memory_space<vmem>>, vector<1x1x8xf32>
    %74 = vector.shape_cast %73 : vector<1x1x8xf32> to vector<1x8xf32>
    %75 = vector.broadcast %74 : vector<1x8xf32> to vector<16x8xf32>
    %76 = arith.addf %72, %75 : vector<16x8xf32>
    %cst_58 = arith.constant dense<0.000000e+00> : vector<16x16xf32>
    %77 = tpu.matmul %62, %69, %cst_58 {dimension_numbers = #tpu.dot_dimension_numbers<[1], [1], [0], [0], [0, 0, 1, 0], [], []>} : vector<16x8xf32>, vector<16x8xf32>, vector<16x16xf32> -> vector<16x16xf32>
    %cst_59 = arith.constant 0.353553385 : f32
    %78 = vector.broadcast %cst_59 : f32 to vector<16x16xf32>
    %79 = arith.mulf %77, %78 : vector<16x16xf32>
    %80 = arith.addf %79, %14 : vector<16x16xf32>
    %cst_60 = arith.constant dense<0xFF800000> : vector<16xf32>
    %81 = vector.multi_reduction <maximumf>, %80, %cst_60 [1] : vector<16x16xf32> to vector<16xf32>
    %82 = vector.shape_cast %81 : vector<16xf32> to vector<16x1xf32>
    %83 = vector.broadcast %82 : vector<16x1xf32> to vector<16x16xf32>
    %84 = arith.subf %80, %83 : vector<16x16xf32>
    %85 = math.exp %84 : vector<16x16xf32>
    %cst_61 = arith.constant dense<0.000000e+00> : vector<16xf32>
    %86 = vector.multi_reduction <add>, %85, %cst_61 [1] : vector<16x16xf32> to vector<16xf32>
    %87 = vector.shape_cast %86 : vector<16xf32> to vector<16x1xf32>
    %88 = tpu.reciprocal %87 {approx = true} : vector<16x1xf32> -> vector<16x1xf32>
    %89 = vector.broadcast %88 : vector<16x1xf32> to vector<16x16xf32>
    %90 = arith.mulf %85, %89 : vector<16x16xf32>
    %cst_62 = arith.constant dense<0.000000e+00> : vector<16x8xf32>
    %91 = tpu.matmul %90, %76, %cst_62 {dimension_numbers = #tpu.dot_dimension_numbers<[1], [0], [0], [1], [0, 0, 1, 1], [], []>} : vector<16x16xf32>, vector<16x8xf32>, vector<16x8xf32> -> vector<16x8xf32>
    %c1_63 = arith.constant 1 : index
    %c0_64 = arith.constant 0 : index
    %c0_65 = arith.constant 0 : index
    %92 = vector.load %arg9[%c1_63, %c0_64, %c0_65] : memref<4x8x32xf32, #tpu.memory_space<vmem>>, vector<1x8x32xf32>
    %93 = vector.shape_cast %92 : vector<1x8x32xf32> to vector<8x32xf32>
    %cst_66 = arith.constant dense<0.000000e+00> : vector<16x32xf32>
    %94 = tpu.matmul %91, %93, %cst_66 {dimension_numbers = #tpu.dot_dimension_numbers<[1], [0], [0], [1], [0, 0, 1, 1], [], []>} : vector<16x8xf32>, vector<8x32xf32>, vector<16x32xf32> -> vector<16x32xf32>
    %95 = arith.addf %55, %94 : vector<16x32xf32>
    %c2 = arith.constant 2 : index
    %c0_67 = arith.constant 0 : index
    %c0_68 = arith.constant 0 : index
    %96 = vector.load %arg3[%c2, %c0_67, %c0_68] : memref<4x32x8xf32, #tpu.memory_space<vmem>>, vector<1x32x8xf32>
    %97 = vector.shape_cast %96 : vector<1x32x8xf32> to vector<32x8xf32>
    %cst_69 = arith.constant dense<0.000000e+00> : vector<16x8xf32>
    %98 = tpu.matmul %4, %97, %cst_69 {dimension_numbers = #tpu.dot_dimension_numbers<[1], [0], [0], [1], [0, 0, 1, 1], [], []>} : vector<16x32xf32>, vector<32x8xf32>, vector<16x8xf32> -> vector<16x8xf32>
    %c2_70 = arith.constant 2 : index
    %c0_71 = arith.constant 0 : index
    %c0_72 = arith.constant 0 : index
    %99 = vector.load %arg6[%c2_70, %c0_71, %c0_72] : memref<4x1x8xf32, #tpu.memory_space<vmem>>, vector<1x1x8xf32>
    %100 = vector.shape_cast %99 : vector<1x1x8xf32> to vector<1x8xf32>
    %101 = vector.broadcast %100 : vector<1x8xf32> to vector<16x8xf32>
    %102 = arith.addf %98, %101 : vector<16x8xf32>
    %c2_73 = arith.constant 2 : index
    %c0_74 = arith.constant 0 : index
    %c0_75 = arith.constant 0 : index
    %103 = vector.load %arg4[%c2_73, %c0_74, %c0_75] : memref<4x32x8xf32, #tpu.memory_space<vmem>>, vector<1x32x8xf32>
    %104 = vector.shape_cast %103 : vector<1x32x8xf32> to vector<32x8xf32>
    %cst_76 = arith.constant dense<0.000000e+00> : vector<16x8xf32>
    %105 = tpu.matmul %4, %104, %cst_76 {dimension_numbers = #tpu.dot_dimension_numbers<[1], [0], [0], [1], [0, 0, 1, 1], [], []>} : vector<16x32xf32>, vector<32x8xf32>, vector<16x8xf32> -> vector<16x8xf32>
    %c2_77 = arith.constant 2 : index
    %c0_78 = arith.constant 0 : index
    %c0_79 = arith.constant 0 : index
    %106 = vector.load %arg7[%c2_77, %c0_78, %c0_79] : memref<4x1x8xf32, #tpu.memory_space<vmem>>, vector<1x1x8xf32>
    %107 = vector.shape_cast %106 : vector<1x1x8xf32> to vector<1x8xf32>
    %108 = vector.broadcast %107 : vector<1x8xf32> to vector<16x8xf32>
    %109 = arith.addf %105, %108 : vector<16x8xf32>
    %c2_80 = arith.constant 2 : index
    %c0_81 = arith.constant 0 : index
    %c0_82 = arith.constant 0 : index
    %110 = vector.load %arg5[%c2_80, %c0_81, %c0_82] : memref<4x32x8xf32, #tpu.memory_space<vmem>>, vector<1x32x8xf32>
    %111 = vector.shape_cast %110 : vector<1x32x8xf32> to vector<32x8xf32>
    %cst_83 = arith.constant dense<0.000000e+00> : vector<16x8xf32>
    %112 = tpu.matmul %4, %111, %cst_83 {dimension_numbers = #tpu.dot_dimension_numbers<[1], [0], [0], [1], [0, 0, 1, 1], [], []>} : vector<16x32xf32>, vector<32x8xf32>, vector<16x8xf32> -> vector<16x8xf32>
    %c2_84 = arith.constant 2 : index
    %c0_85 = arith.constant 0 : index
    %c0_86 = arith.constant 0 : index
    %113 = vector.load %arg8[%c2_84, %c0_85, %c0_86] : memref<4x1x8xf32, #tpu.memory_space<vmem>>, vector<1x1x8xf32>
    %114 = vector.shape_cast %113 : vector<1x1x8xf32> to vector<1x8xf32>
    %115 = vector.broadcast %114 : vector<1x8xf32> to vector<16x8xf32>
    %116 = arith.addf %112, %115 : vector<16x8xf32>
    %cst_87 = arith.constant dense<0.000000e+00> : vector<16x16xf32>
    %117 = tpu.matmul %102, %109, %cst_87 {dimension_numbers = #tpu.dot_dimension_numbers<[1], [1], [0], [0], [0, 0, 1, 0], [], []>} : vector<16x8xf32>, vector<16x8xf32>, vector<16x16xf32> -> vector<16x16xf32>
    %cst_88 = arith.constant 0.353553385 : f32
    %118 = vector.broadcast %cst_88 : f32 to vector<16x16xf32>
    %119 = arith.mulf %117, %118 : vector<16x16xf32>
    %120 = arith.addf %119, %14 : vector<16x16xf32>
    %cst_89 = arith.constant dense<0xFF800000> : vector<16xf32>
    %121 = vector.multi_reduction <maximumf>, %120, %cst_89 [1] : vector<16x16xf32> to vector<16xf32>
    %122 = vector.shape_cast %121 : vector<16xf32> to vector<16x1xf32>
    %123 = vector.broadcast %122 : vector<16x1xf32> to vector<16x16xf32>
    %124 = arith.subf %120, %123 : vector<16x16xf32>
    %125 = math.exp %124 : vector<16x16xf32>
    %cst_90 = arith.constant dense<0.000000e+00> : vector<16xf32>
    %126 = vector.multi_reduction <add>, %125, %cst_90 [1] : vector<16x16xf32> to vector<16xf32>
    %127 = vector.shape_cast %126 : vector<16xf32> to vector<16x1xf32>
    %128 = tpu.reciprocal %127 {approx = true} : vector<16x1xf32> -> vector<16x1xf32>
    %129 = vector.broadcast %128 : vector<16x1xf32> to vector<16x16xf32>
    %130 = arith.mulf %125, %129 : vector<16x16xf32>
    %cst_91 = arith.constant dense<0.000000e+00> : vector<16x8xf32>
    %131 = tpu.matmul %130, %116, %cst_91 {dimension_numbers = #tpu.dot_dimension_numbers<[1], [0], [0], [1], [0, 0, 1, 1], [], []>} : vector<16x16xf32>, vector<16x8xf32>, vector<16x8xf32> -> vector<16x8xf32>
    %c2_92 = arith.constant 2 : index
    %c0_93 = arith.constant 0 : index
    %c0_94 = arith.constant 0 : index
    %132 = vector.load %arg9[%c2_92, %c0_93, %c0_94] : memref<4x8x32xf32, #tpu.memory_space<vmem>>, vector<1x8x32xf32>
    %133 = vector.shape_cast %132 : vector<1x8x32xf32> to vector<8x32xf32>
    %cst_95 = arith.constant dense<0.000000e+00> : vector<16x32xf32>
    %134 = tpu.matmul %131, %133, %cst_95 {dimension_numbers = #tpu.dot_dimension_numbers<[1], [0], [0], [1], [0, 0, 1, 1], [], []>} : vector<16x8xf32>, vector<8x32xf32>, vector<16x32xf32> -> vector<16x32xf32>
    %135 = arith.addf %95, %134 : vector<16x32xf32>
    %c3 = arith.constant 3 : index
    %c0_96 = arith.constant 0 : index
    %c0_97 = arith.constant 0 : index
    %136 = vector.load %arg3[%c3, %c0_96, %c0_97] : memref<4x32x8xf32, #tpu.memory_space<vmem>>, vector<1x32x8xf32>
    %137 = vector.shape_cast %136 : vector<1x32x8xf32> to vector<32x8xf32>
    %cst_98 = arith.constant dense<0.000000e+00> : vector<16x8xf32>
    %138 = tpu.matmul %4, %137, %cst_98 {dimension_numbers = #tpu.dot_dimension_numbers<[1], [0], [0], [1], [0, 0, 1, 1], [], []>} : vector<16x32xf32>, vector<32x8xf32>, vector<16x8xf32> -> vector<16x8xf32>
    %c3_99 = arith.constant 3 : index
    %c0_100 = arith.constant 0 : index
    %c0_101 = arith.constant 0 : index
    %139 = vector.load %arg6[%c3_99, %c0_100, %c0_101] : memref<4x1x8xf32, #tpu.memory_space<vmem>>, vector<1x1x8xf32>
    %140 = vector.shape_cast %139 : vector<1x1x8xf32> to vector<1x8xf32>
    %141 = vector.broadcast %140 : vector<1x8xf32> to vector<16x8xf32>
    %142 = arith.addf %138, %141 : vector<16x8xf32>
    %c3_102 = arith.constant 3 : index
    %c0_103 = arith.constant 0 : index
    %c0_104 = arith.constant 0 : index
    %143 = vector.load %arg4[%c3_102, %c0_103, %c0_104] : memref<4x32x8xf32, #tpu.memory_space<vmem>>, vector<1x32x8xf32>
    %144 = vector.shape_cast %143 : vector<1x32x8xf32> to vector<32x8xf32>
    %cst_105 = arith.constant dense<0.000000e+00> : vector<16x8xf32>
    %145 = tpu.matmul %4, %144, %cst_105 {dimension_numbers = #tpu.dot_dimension_numbers<[1], [0], [0], [1], [0, 0, 1, 1], [], []>} : vector<16x32xf32>, vector<32x8xf32>, vector<16x8xf32> -> vector<16x8xf32>
    %c3_106 = arith.constant 3 : index
    %c0_107 = arith.constant 0 : index
    %c0_108 = arith.constant 0 : index
    %146 = vector.load %arg7[%c3_106, %c0_107, %c0_108] : memref<4x1x8xf32, #tpu.memory_space<vmem>>, vector<1x1x8xf32>
    %147 = vector.shape_cast %146 : vector<1x1x8xf32> to vector<1x8xf32>
    %148 = vector.broadcast %147 : vector<1x8xf32> to vector<16x8xf32>
    %149 = arith.addf %145, %148 : vector<16x8xf32>
    %c3_109 = arith.constant 3 : index
    %c0_110 = arith.constant 0 : index
    %c0_111 = arith.constant 0 : index
    %150 = vector.load %arg5[%c3_109, %c0_110, %c0_111] : memref<4x32x8xf32, #tpu.memory_space<vmem>>, vector<1x32x8xf32>
    %151 = vector.shape_cast %150 : vector<1x32x8xf32> to vector<32x8xf32>
    %cst_112 = arith.constant dense<0.000000e+00> : vector<16x8xf32>
    %152 = tpu.matmul %4, %151, %cst_112 {dimension_numbers = #tpu.dot_dimension_numbers<[1], [0], [0], [1], [0, 0, 1, 1], [], []>} : vector<16x32xf32>, vector<32x8xf32>, vector<16x8xf32> -> vector<16x8xf32>
    %c3_113 = arith.constant 3 : index
    %c0_114 = arith.constant 0 : index
    %c0_115 = arith.constant 0 : index
    %153 = vector.load %arg8[%c3_113, %c0_114, %c0_115] : memref<4x1x8xf32, #tpu.memory_space<vmem>>, vector<1x1x8xf32>
    %154 = vector.shape_cast %153 : vector<1x1x8xf32> to vector<1x8xf32>
    %155 = vector.broadcast %154 : vector<1x8xf32> to vector<16x8xf32>
    %156 = arith.addf %152, %155 : vector<16x8xf32>
    %cst_116 = arith.constant dense<0.000000e+00> : vector<16x16xf32>
    %157 = tpu.matmul %142, %149, %cst_116 {dimension_numbers = #tpu.dot_dimension_numbers<[1], [1], [0], [0], [0, 0, 1, 0], [], []>} : vector<16x8xf32>, vector<16x8xf32>, vector<16x16xf32> -> vector<16x16xf32>
    %cst_117 = arith.constant 0.353553385 : f32
    %158 = vector.broadcast %cst_117 : f32 to vector<16x16xf32>
    %159 = arith.mulf %157, %158 : vector<16x16xf32>
    %160 = arith.addf %159, %14 : vector<16x16xf32>
    %cst_118 = arith.constant dense<0xFF800000> : vector<16xf32>
    %161 = vector.multi_reduction <maximumf>, %160, %cst_118 [1] : vector<16x16xf32> to vector<16xf32>
    %162 = vector.shape_cast %161 : vector<16xf32> to vector<16x1xf32>
    %163 = vector.broadcast %162 : vector<16x1xf32> to vector<16x16xf32>
    %164 = arith.subf %160, %163 : vector<16x16xf32>
    %165 = math.exp %164 : vector<16x16xf32>
    %cst_119 = arith.constant dense<0.000000e+00> : vector<16xf32>
    %166 = vector.multi_reduction <add>, %165, %cst_119 [1] : vector<16x16xf32> to vector<16xf32>
    %167 = vector.shape_cast %166 : vector<16xf32> to vector<16x1xf32>
    %168 = tpu.reciprocal %167 {approx = true} : vector<16x1xf32> -> vector<16x1xf32>
    %169 = vector.broadcast %168 : vector<16x1xf32> to vector<16x16xf32>
    %170 = arith.mulf %165, %169 : vector<16x16xf32>
    %cst_120 = arith.constant dense<0.000000e+00> : vector<16x8xf32>
    %171 = tpu.matmul %170, %156, %cst_120 {dimension_numbers = #tpu.dot_dimension_numbers<[1], [0], [0], [1], [0, 0, 1, 1], [], []>} : vector<16x16xf32>, vector<16x8xf32>, vector<16x8xf32> -> vector<16x8xf32>
    %c3_121 = arith.constant 3 : index
    %c0_122 = arith.constant 0 : index
    %c0_123 = arith.constant 0 : index
    %172 = vector.load %arg9[%c3_121, %c0_122, %c0_123] : memref<4x8x32xf32, #tpu.memory_space<vmem>>, vector<1x8x32xf32>
    %173 = vector.shape_cast %172 : vector<1x8x32xf32> to vector<8x32xf32>
    %cst_124 = arith.constant dense<0.000000e+00> : vector<16x32xf32>
    %174 = tpu.matmul %171, %173, %cst_124 {dimension_numbers = #tpu.dot_dimension_numbers<[1], [0], [0], [1], [0, 0, 1, 1], [], []>} : vector<16x8xf32>, vector<8x32xf32>, vector<16x32xf32> -> vector<16x32xf32>
    %175 = arith.addf %135, %174 : vector<16x32xf32>
    %c0_125 = arith.constant 0 : index
    %c0_126 = arith.constant 0 : index
    %176 = vector.load %arg10[%c0_125, %c0_126] : memref<1x32xf32, #tpu.memory_space<vmem>>, vector<1x32xf32>
    %177 = vector.broadcast %176 : vector<1x32xf32> to vector<16x32xf32>
    %178 = arith.addf %175, %177 : vector<16x32xf32>
    %cst_127 = arith.constant 5.000000e-01 : f32
    %179 = vector.broadcast %cst_127 : f32 to vector<16x32xf32>
    %180 = arith.mulf %179, %178 : vector<16x32xf32>
    %cst_128 = arith.constant 5.000000e-01 : f32
    %181 = vector.broadcast %cst_128 : f32 to vector<16x32xf32>
    %182 = arith.mulf %181, %4 : vector<16x32xf32>
    %183 = arith.addf %180, %182 : vector<16x32xf32>
    %c0_129 = arith.constant 0 : index
    %c0_130 = arith.constant 0 : index
    %184 = vector.load %arg11[%c0_129, %c0_130] : memref<10x16xf32, #tpu.memory_space<vmem>>, vector<10x16xf32>
    %cst_131 = arith.constant dense<0.000000e+00> : vector<10x32xf32>
    %185 = tpu.matmul %184, %183, %cst_131 {dimension_numbers = #tpu.dot_dimension_numbers<[1], [0], [0], [1], [0, 0, 1, 1], [], []>} : vector<10x16xf32>, vector<16x32xf32>, vector<10x32xf32> -> vector<10x32xf32>
    %c0_132 = arith.constant 0 : index
    %c0_133 = arith.constant 0 : index
    %186 = vector.load %arg12[%c0_132, %c0_133] : memref<10x16xf32, #tpu.memory_space<vmem>>, vector<10x16xf32>
    %cst_134 = arith.constant dense<0.000000e+00> : vector<10x32xf32>
    %187 = tpu.matmul %186, %183, %cst_134 {dimension_numbers = #tpu.dot_dimension_numbers<[1], [0], [0], [1], [0, 0, 1, 1], [], []>} : vector<10x16xf32>, vector<16x32xf32>, vector<10x32xf32> -> vector<10x32xf32>
    %c0_135 = arith.constant 0 : index
    %c0_136 = arith.constant 0 : index
    %188 = vector.load %arg15[%c0_135, %c0_136] : memref<10x32xf32, #tpu.memory_space<vmem>>, vector<10x32xf32>
    %c0_137 = arith.constant 0 : index
    %c0_138 = arith.constant 0 : index
    %189 = vector.load %arg16[%c0_137, %c0_138] : memref<10x32xf32, #tpu.memory_space<vmem>>, vector<10x32xf32>
    %190 = arith.mulf %185, %188 : vector<10x32xf32>
    %191 = arith.mulf %187, %189 : vector<10x32xf32>
    %192 = arith.subf %190, %191 : vector<10x32xf32>
    %193 = arith.mulf %185, %189 : vector<10x32xf32>
    %194 = arith.mulf %187, %188 : vector<10x32xf32>
    %195 = arith.addf %193, %194 : vector<10x32xf32>
    %c0_139 = arith.constant 0 : index
    %c0_140 = arith.constant 0 : index
    %196 = vector.load %arg13[%c0_139, %c0_140] : memref<16x10xf32, #tpu.memory_space<vmem>>, vector<16x10xf32>
    %cst_141 = arith.constant dense<0.000000e+00> : vector<16x32xf32>
    %197 = tpu.matmul %196, %192, %cst_141 {dimension_numbers = #tpu.dot_dimension_numbers<[1], [0], [0], [1], [0, 0, 1, 1], [], []>} : vector<16x10xf32>, vector<10x32xf32>, vector<16x32xf32> -> vector<16x32xf32>
    %c0_142 = arith.constant 0 : index
    %c0_143 = arith.constant 0 : index
    %198 = vector.load %arg14[%c0_142, %c0_143] : memref<16x10xf32, #tpu.memory_space<vmem>>, vector<16x10xf32>
    %cst_144 = arith.constant dense<0.000000e+00> : vector<16x32xf32>
    %199 = tpu.matmul %198, %195, %cst_144 {dimension_numbers = #tpu.dot_dimension_numbers<[1], [0], [0], [1], [0, 0, 1, 1], [], []>} : vector<16x10xf32>, vector<10x32xf32>, vector<16x32xf32> -> vector<16x32xf32>
    %200 = arith.addf %197, %199 : vector<16x32xf32>
    %201 = arith.addf %200, %183 : vector<16x32xf32>
    %cst_145 = arith.constant dense<0.000000e+00> : vector<16xf32>
    %202 = vector.multi_reduction <add>, %201, %cst_145 [1] : vector<16x32xf32> to vector<16xf32>
    %203 = vector.shape_cast %202 : vector<16xf32> to vector<16x1xf32>
    %cst_146 = arith.constant 3.200000e+01 : f32
    %204 = vector.broadcast %cst_146 : f32 to vector<16x1xf32>
    %205 = arith.divf %203, %204 : vector<16x1xf32>
    %206 = vector.broadcast %205 : vector<16x1xf32> to vector<16x32xf32>
    %207 = arith.subf %201, %206 : vector<16x32xf32>
    %208 = arith.mulf %207, %207 : vector<16x32xf32>
    %cst_147 = arith.constant dense<0.000000e+00> : vector<16xf32>
    %209 = vector.multi_reduction <add>, %208, %cst_147 [1] : vector<16x32xf32> to vector<16xf32>
    %210 = vector.shape_cast %209 : vector<16xf32> to vector<16x1xf32>
    %cst_148 = arith.constant 3.200000e+01 : f32
    %211 = vector.broadcast %cst_148 : f32 to vector<16x1xf32>
    %212 = arith.divf %210, %211 : vector<16x1xf32>
    %213 = vector.broadcast %205 : vector<16x1xf32> to vector<16x32xf32>
    %214 = arith.subf %201, %213 : vector<16x32xf32>
    %cst_149 = arith.constant 9.99999996E-13 : f32
    %215 = vector.broadcast %cst_149 : f32 to vector<16x1xf32>
    %216 = arith.addf %212, %215 : vector<16x1xf32>
    %217 = math.rsqrt %216 : vector<16x1xf32>
    %218 = vector.broadcast %217 : vector<16x1xf32> to vector<16x32xf32>
    %219 = arith.mulf %214, %218 : vector<16x32xf32>
    %c0_150 = arith.constant 0 : index
    %c0_151 = arith.constant 0 : index
    %220 = vector.load %arg17[%c0_150, %c0_151] : memref<1x32xf32, #tpu.memory_space<vmem>>, vector<1x32xf32>
    %221 = vector.broadcast %220 : vector<1x32xf32> to vector<16x32xf32>
    %222 = arith.mulf %221, %219 : vector<16x32xf32>
    %c0_152 = arith.constant 0 : index
    %c0_153 = arith.constant 0 : index
    %223 = vector.load %arg18[%c0_152, %c0_153] : memref<1x32xf32, #tpu.memory_space<vmem>>, vector<1x32xf32>
    %224 = vector.broadcast %223 : vector<1x32xf32> to vector<16x32xf32>
    %225 = arith.addf %222, %224 : vector<16x32xf32>
    %226 = vector.extract_strided_slice %225 {offsets = [0, 0], sizes = [8, 32], strides = [1, 1]} : vector<16x32xf32> to vector<8x32xf32>
    %227 = vector.extract_strided_slice %225 {offsets = [8, 0], sizes = [8, 32], strides = [1, 1]} : vector<16x32xf32> to vector<8x32xf32>
    %228 = arith.addf %226, %227 : vector<8x32xf32>
    %c0_154 = arith.constant 0 : index
    %c0_155 = arith.constant 0 : index
    %229 = vector.load %arg19[%c0_154, %c0_155] : memref<32x32xf32, #tpu.memory_space<vmem>>, vector<32x32xf32>
    %cst_156 = arith.constant dense<0.000000e+00> : vector<8x32xf32>
    %230 = tpu.matmul %228, %229, %cst_156 {dimension_numbers = #tpu.dot_dimension_numbers<[1], [0], [0], [1], [0, 0, 1, 1], [], []>} : vector<8x32xf32>, vector<32x32xf32>, vector<8x32xf32> -> vector<8x32xf32>
    %c0_157 = arith.constant 0 : index
    %c0_158 = arith.constant 0 : index
    %231 = vector.load %arg20[%c0_157, %c0_158] : memref<1x32xf32, #tpu.memory_space<vmem>>, vector<1x32xf32>
    %cst_159 = arith.constant 2.000000e+00 : f32
    %232 = vector.broadcast %cst_159 : f32 to vector<1x32xf32>
    %233 = arith.mulf %232, %231 : vector<1x32xf32>
    %234 = vector.broadcast %233 : vector<1x32xf32> to vector<8x32xf32>
    %235 = arith.addf %230, %234 : vector<8x32xf32>
    %c0_160 = arith.constant 0 : index
    %c0_161 = arith.constant 0 : index
    %c0_162 = arith.constant 0 : index
    %236 = vector.load %arg21[%c0_160, %c0_161, %c0_162] : memref<1x8x32xf32, #tpu.memory_space<vmem>>, vector<1x8x32xf32>
    %237 = vector.shape_cast %236 : vector<1x8x32xf32> to vector<8x32xf32>
    %238 = vector.shape_cast %235 : vector<8x32xf32> to vector<1x8x32xf32>
    tpu.vector_store %arg21[%c0_160, %c0_161, %c0_162], %238 {strides = array<i32>} : memref<1x8x32xf32, #tpu.memory_space<vmem>>, vector<1x8x32xf32>,
    return
  }
  func.func @transform_0(%arg0: i32) -> (i32, i32, i32) {
    %c0_i32 = arith.constant 0 : i32
    %c0_i32_0 = arith.constant 0 : i32
    %c0_i32_1 = arith.constant 0 : i32
    return %arg0, %c0_i32, %c0_i32_0 : i32, i32, i32
  }
  func.func @transform_1(%arg0: i32) -> (i32, i32, i32) {
    %c0_i32 = arith.constant 0 : i32
    %c0_i32_0 = arith.constant 0 : i32
    %c0_i32_1 = arith.constant 0 : i32
    return %arg0, %c0_i32, %c0_i32_0 : i32, i32, i32
  }
  func.func @transform_2(%arg0: i32) -> (i32, i32, i32) {
    %c0_i32 = arith.constant 0 : i32
    %c0_i32_0 = arith.constant 0 : i32
    %c0_i32_1 = arith.constant 0 : i32
    %c0_i32_2 = arith.constant 0 : i32
    return %c0_i32, %c0_i32_0, %c0_i32_1 : i32, i32, i32
  }
  func.func @transform_3(%arg0: i32) -> (i32, i32, i32) {
    %c0_i32 = arith.constant 0 : i32
    %c0_i32_0 = arith.constant 0 : i32
    %c0_i32_1 = arith.constant 0 : i32
    %c0_i32_2 = arith.constant 0 : i32
    return %c0_i32, %c0_i32_0, %c0_i32_1 : i32, i32, i32
  }
  func.func @transform_4(%arg0: i32) -> (i32, i32, i32) {
    %c0_i32 = arith.constant 0 : i32
    %c0_i32_0 = arith.constant 0 : i32
    %c0_i32_1 = arith.constant 0 : i32
    %c0_i32_2 = arith.constant 0 : i32
    return %c0_i32, %c0_i32_0, %c0_i32_1 : i32, i32, i32
  }
  func.func @transform_5(%arg0: i32) -> (i32, i32, i32) {
    %c0_i32 = arith.constant 0 : i32
    %c0_i32_0 = arith.constant 0 : i32
    %c0_i32_1 = arith.constant 0 : i32
    %c0_i32_2 = arith.constant 0 : i32
    return %c0_i32, %c0_i32_0, %c0_i32_1 : i32, i32, i32
  }
  func.func @transform_6(%arg0: i32) -> (i32, i32, i32) {
    %c0_i32 = arith.constant 0 : i32
    %c0_i32_0 = arith.constant 0 : i32
    %c0_i32_1 = arith.constant 0 : i32
    %c0_i32_2 = arith.constant 0 : i32
    return %c0_i32, %c0_i32_0, %c0_i32_1 : i32, i32, i32
  }
  func.func @transform_7(%arg0: i32) -> (i32, i32, i32) {
    %c0_i32 = arith.constant 0 : i32
    %c0_i32_0 = arith.constant 0 : i32
    %c0_i32_1 = arith.constant 0 : i32
    %c0_i32_2 = arith.constant 0 : i32
    return %c0_i32, %c0_i32_0, %c0_i32_1 : i32, i32, i32
  }
  func.func @transform_8(%arg0: i32) -> (i32, i32, i32) {
    %c0_i32 = arith.constant 0 : i32
    %c0_i32_0 = arith.constant 0 : i32
    %c0_i32_1 = arith.constant 0 : i32
    %c0_i32_2 = arith.constant 0 : i32
    return %c0_i32, %c0_i32_0, %c0_i32_1 : i32, i32, i32
  }
  func.func @transform_9(%arg0: i32) -> (i32, i32) {
    %c0_i32 = arith.constant 0 : i32
    %c0_i32_0 = arith.constant 0 : i32
    %c0_i32_1 = arith.constant 0 : i32
    return %c0_i32, %c0_i32_0 : i32, i32
  }
  func.func @transform_10(%arg0: i32) -> (i32, i32) {
    %c0_i32 = arith.constant 0 : i32
    %c0_i32_0 = arith.constant 0 : i32
    %c0_i32_1 = arith.constant 0 : i32
    return %c0_i32, %c0_i32_0 : i32, i32
  }
  func.func @transform_11(%arg0: i32) -> (i32, i32) {
    %c0_i32 = arith.constant 0 : i32
    %c0_i32_0 = arith.constant 0 : i32
    %c0_i32_1 = arith.constant 0 : i32
    return %c0_i32, %c0_i32_0 : i32, i32
  }
  func.func @transform_12(%arg0: i32) -> (i32, i32) {
    %c0_i32 = arith.constant 0 : i32
    %c0_i32_0 = arith.constant 0 : i32
    %c0_i32_1 = arith.constant 0 : i32
    return %c0_i32, %c0_i32_0 : i32, i32
  }
  func.func @transform_13(%arg0: i32) -> (i32, i32) {
    %c0_i32 = arith.constant 0 : i32
    %c0_i32_0 = arith.constant 0 : i32
    %c0_i32_1 = arith.constant 0 : i32
    return %c0_i32, %c0_i32_0 : i32, i32
  }
  func.func @transform_14(%arg0: i32) -> (i32, i32) {
    %c0_i32 = arith.constant 0 : i32
    %c0_i32_0 = arith.constant 0 : i32
    %c0_i32_1 = arith.constant 0 : i32
    return %c0_i32, %c0_i32_0 : i32, i32
  }
  func.func @transform_15(%arg0: i32) -> (i32, i32) {
    %c0_i32 = arith.constant 0 : i32
    %c0_i32_0 = arith.constant 0 : i32
    %c0_i32_1 = arith.constant 0 : i32
    return %c0_i32, %c0_i32_0 : i32, i32
  }
  func.func @transform_16(%arg0: i32) -> (i32, i32) {
    %c0_i32 = arith.constant 0 : i32
    %c0_i32_0 = arith.constant 0 : i32
    %c0_i32_1 = arith.constant 0 : i32
    return %c0_i32, %c0_i32_0 : i32, i32
  }
  func.func @transform_17(%arg0: i32) -> (i32, i32) {
    %c0_i32 = arith.constant 0 : i32
    %c0_i32_0 = arith.constant 0 : i32
    %c0_i32_1 = arith.constant 0 : i32
    return %c0_i32, %c0_i32_0 : i32, i32
  }
  func.func @transform_18(%arg0: i32) -> (i32, i32) {
    %c0_i32 = arith.constant 0 : i32
    %c0_i32_0 = arith.constant 0 : i32
    %c0_i32_1 = arith.constant 0 : i32
    return %c0_i32, %c0_i32_0 : i32, i32
  }
  func.func @transform_19(%arg0: i32) -> (i32, i32) {
    %c0_i32 = arith.constant 0 : i32
    %c0_i32_0 = arith.constant 0 : i32
    %c0_i32_1 = arith.constant 0 : i32
    return %c0_i32, %c0_i32_0 : i32, i32
  }
  func.func @transform_20(%arg0: i32) -> (i32, i32, i32) {
    %c0_i32 = arith.constant 0 : i32
    %c0_i32_0 = arith.constant 0 : i32
    %c0_i32_1 = arith.constant 0 : i32
    return %arg0, %c0_i32, %c0_i32_0 : i32, i32, i32
  }
}

</mosaic_0001>

<llo_original>
// kernel: tpu_custom_call.1
$region0: #{tpu_custom_call.1}
  #allocation0 [shape = 'u32[]', space=smem, size = 0x4, offset = 0x4, fixed_abs, tag = 'smem constant byte address 0x4 - core index']
  #allocation1 [shape = 'u32[144,128]{1,0:T(1,128)}', space=vmem, size = 0x12000, scoped, tag = 'internal scratch']
  %s0 = inlined_call_operand.vmem [shape: f32[2,8,32], index: 0, kind: input, shape index: {}]
  %s1 = inlined_call_operand.vmem [shape: f32[2,8,32], index: 1, kind: input, shape index: {}]
  %s2 = inlined_call_operand.vmem [shape: f32[4,32,8], index: 2, kind: input, shape index: {}]
  %s3 = inlined_call_operand.vmem [shape: f32[4,32,8], index: 3, kind: input, shape index: {}]
  %s4 = inlined_call_operand.vmem [shape: f32[4,32,8], index: 4, kind: input, shape index: {}]
  %s5 = inlined_call_operand.vmem [shape: f32[4,1,8], index: 5, kind: input, shape index: {}]
  %s6 = inlined_call_operand.vmem [shape: f32[4,1,8], index: 6, kind: input, shape index: {}]
  %s7 = inlined_call_operand.vmem [shape: f32[4,1,8], index: 7, kind: input, shape index: {}]
  %s8 = inlined_call_operand.vmem [shape: f32[4,8,32], index: 8, kind: input, shape index: {}]
  %s9 = inlined_call_operand.vmem [shape: f32[1,32], index: 9, kind: input, shape index: {}]
  %s10 = inlined_call_operand.vmem [shape: f32[10,16], index: 10, kind: input, shape index: {}]
  %s11 = inlined_call_operand.vmem [shape: f32[10,16], index: 11, kind: input, shape index: {}]
  %s12 = inlined_call_operand.vmem [shape: f32[16,10], index: 12, kind: input, shape index: {}]
  %s13 = inlined_call_operand.vmem [shape: f32[16,10], index: 13, kind: input, shape index: {}]
  %s14 = inlined_call_operand.vmem [shape: f32[10,32], index: 14, kind: input, shape index: {}]
  %s15 = inlined_call_operand.vmem [shape: f32[10,32], index: 15, kind: input, shape index: {}]
  %s16 = inlined_call_operand.vmem [shape: f32[1,32], index: 16, kind: input, shape index: {}]
  %s17 = inlined_call_operand.vmem [shape: f32[1,32], index: 17, kind: input, shape index: {}]
  %s18 = inlined_call_operand.vmem [shape: f32[32,32], index: 18, kind: input, shape index: {}]
  %s19 = inlined_call_operand.vmem [shape: f32[1,32], index: 19, kind: input, shape index: {}]
  %s20 = inlined_call_operand.hbm [shape: f32[2,8,32], index: 20, kind: output, shape index: {}]
  %s21 = sld [smem:[#allocation0]]
  $region113: #{tpu_custom_call.1} parent=0
    _
  %s23 = ssub.s32 1, %s21
  %s24 = scalar_select 0, %s23, %s21
  $region1: #{tpu_custom_call.1} parent=0
    #allocation2 [shape = 'u8[8192]{0}', space=vmem, size = 0x2000, scoped, tag = 'output window, operand 0']
    #allocation3 [shape = 's32[2]{0}', space=sflag, size = 0x8, scoped, tag = 'scoped memory for tpu_custom_call.1']
    %25 = vsyncpa [#allocation3], 0
    %s26 = scalar_lea.sflag [#allocation3], 1
    %27 = vsyncpa %s26, 0
    loop: start=0, step=1, limit=4
    $region2: #{tpu_custom_call.1} parent=1 // loop_pre_header
      _
    $region3: #{tpu_custom_call.1} parent=1 // loop_header
      %s29 = sphi 0, %s33
      %p30 = scmp.ge.s32.totalorder %s29, 4
      %s39 = sphi 0, %s41
      %s42 = sphi 0, %s39
      %s43 = sphi 0, %s42
      %s59 = sphi 0, %s43
      %s65 = sphi 0, %s67
      %s68 = sphi 0, %s65
      %s69 = sphi 0, %s68
      %s85 = sphi 0, %s69
      %s89 = sphi 0, %s89
      %s91 = sphi 0, %s89
      %s92 = sphi 0, %s91
      %s106 = sphi 0, %s92
      %s110 = sphi 0, %s110
      %s112 = sphi 0, %s110
      %s113 = sphi 0, %s112
      %s127 = sphi 0, %s113
      %s131 = sphi 0, %s131
      %s133 = sphi 0, %s131
      %s134 = sphi 0, %s133
      %s148 = sphi 0, %s134
      %s152 = sphi 0, %s152
      %s154 = sphi 0, %s152
      %s155 = sphi 0, %s154
      %s169 = sphi 0, %s155
      %s173 = sphi 0, %s173
      %s175 = sphi 0, %s173
      %s176 = sphi 0, %s175
      %s190 = sphi 0, %s176
      %s194 = sphi 0, %s194
      %s196 = sphi 0, %s194
      %s197 = sphi 0, %s196
      %s211 = sphi 0, %s197
      %s215 = sphi 0, %s215
      %s217 = sphi 0, %s215
      %s218 = sphi 0, %s217
      %s232 = sphi 0, %s218
      %s236 = sphi 0, %s236
      %s238 = sphi 0, %s236
      %s239 = sphi 0, %s238
      %s253 = sphi 0, %s239
      %s257 = sphi 0, %s257
      %s259 = sphi 0, %s257
      %s260 = sphi 0, %s259
      %s274 = sphi 0, %s260
      %s278 = sphi 0, %s278
      %s280 = sphi 0, %s278
      %s281 = sphi 0, %s280
      %s295 = sphi 0, %s281
      %s299 = sphi 0, %s299
      %s301 = sphi 0, %s299
      %s302 = sphi 0, %s301
      %s316 = sphi 0, %s302
      %s320 = sphi 0, %s320
      %s322 = sphi 0, %s320
      %s323 = sphi 0, %s322
      %s337 = sphi 0, %s323
      %s341 = sphi 0, %s341
      %s343 = sphi 0, %s341
      %s344 = sphi 0, %s343
      %s358 = sphi 0, %s344
      %s362 = sphi 0, %s362
      %s364 = sphi 0, %s362
      %s365 = sphi 0, %s364
      %s379 = sphi 0, %s365
      %s383 = sphi 0, %s383
      %s385 = sphi 0, %s383
      %s386 = sphi 0, %s385
      %s400 = sphi 0, %s386
      %s404 = sphi 0, %s404
      %s406 = sphi 0, %s404
      %s407 = sphi 0, %s406
      %s421 = sphi 0, %s407
      %s425 = sphi 0, %s425
      %s427 = sphi 0, %s425
      %s428 = sphi 0, %s427
      %s442 = sphi 0, %s428
      %s446 = sphi 0, %s446
      %s448 = sphi 0, %s446
      %s449 = sphi 0, %s448
      %s463 = sphi 0, %s449
      %s469 = sphi 0, %s471
      %s472 = sphi 0, %s469
      %s473 = sphi 0, %s472
      %s489 = sphi 0, %s473
    $region4: #{tpu_custom_call.1} parent=1 // loop_header_branch
      %32 = sbr.rel (%p30) target = $region8
    $region5: #{tpu_custom_call.1} parent=1 // loop_body
      %s34 = ssub.s32 %s29, 1
      %s35 = ssub.s32 %s29, 2
      %s36 = sadd.s32 %s29, 1
      %s37 = ssub.s32 %s29, %s36
      %p38 = scmp.eq.s32.totalorder %s37, 0
      %s40 = sadd.s32 %s39, 1
      %s41 = scalar_select %p38, %s39, %s40
      %p44 = pneg %p38
      %p45 = scmp.eq.s32.totalorder %s29, 1
      %p46 = por %p44, %p45
      %p47 = scmp.ne.s32.totalorder %s39, %s42
      %p48 = scmp.eq.s32.totalorder %s29, 0
      %p49 = por %p47, %p48
      %p50 = scmp.ne.s32.totalorder %s39, %s42
      %p51 = scmp.eq.s32.totalorder %s34, 1
      %p52 = por %p50, %p51
      %p53 = scmp.ne.s32.totalorder %s42, %s43
      %p54 = scmp.eq.s32.totalorder %s34, 0
      %p55 = por %p53, %p54
      %p56 = scmp.ne.s32.totalorder %s42, %s43
      %p57 = scmp.eq.s32.totalorder %s35, 1
      %p58 = por %p56, %p57
      %p60 = scmp.ne.s32.totalorder %s43, %s59
      %p61 = scmp.eq.s32.totalorder %s35, 0
      %p62 = por %p60, %p61
      %s63 = ssub.s32 %s29, %s36
      %p64 = scmp.eq.s32.totalorder %s63, 0
      %s66 = sadd.s32 %s65, 1
      %s67 = scalar_select %p64, %s65, %s66
      %p70 = pneg %p64
      %p71 = scmp.eq.s32.totalorder %s29, 1
      %p72 = por %p70, %p71
      %p73 = scmp.ne.s32.totalorder %s65, %s68
      %p74 = scmp.eq.s32.totalorder %s29, 0
      %p75 = por %p73, %p74
      %p76 = scmp.ne.s32.totalorder %s65, %s68
      %p77 = scmp.eq.s32.totalorder %s34, 1
      %p78 = por %p76, %p77
      %p79 = scmp.ne.s32.totalorder %s68, %s69
      %p80 = scmp.eq.s32.totalorder %s34, 0
      %p81 = por %p79, %p80
      %p82 = scmp.ne.s32.totalorder %s68, %s69
      %p83 = scmp.eq.s32.totalorder %s35, 1
      %p84 = por %p82, %p83
      %p86 = scmp.ne.s32.totalorder %s69, %s85
      %p87 = scmp.eq.s32.totalorder %s35, 0
      %p88 = por %p86, %p87
      %s90 = sadd.s32 %s89, 1
      %p93 = scmp.eq.s32.totalorder %s29, 1
      %p94 = scmp.ne.s32.totalorder %s89, %s91
      %p95 = scmp.eq.s32.totalorder %s29, 0
      %p96 = por %p94, %p95
      %p97 = scmp.ne.s32.totalorder %s89, %s91
      %p98 = scmp.eq.s32.totalorder %s34, 1
      %p99 = por %p97, %p98
      %p100 = scmp.ne.s32.totalorder %s91, %s92
      %p101 = scmp.eq.s32.totalorder %s34, 0
      %p102 = por %p100, %p101
      %p103 = scmp.ne.s32.totalorder %s91, %s92
      %p104 = scmp.eq.s32.totalorder %s35, 1
      %p105 = por %p103, %p104
      %p107 = scmp.ne.s32.totalorder %s92, %s106
      %p108 = scmp.eq.s32.totalorder %s35, 0
      %p109 = por %p107, %p108
      %s111 = sadd.s32 %s110, 1
      %p114 = scmp.eq.s32.totalorder %s29, 1
      %p115 = scmp.ne.s32.totalorder %s110, %s112
      %p116 = scmp.eq.s32.totalorder %s29, 0
      %p117 = por %p115, %p116
      %p118 = scmp.ne.s32.totalorder %s110, %s112
      %p119 = scmp.eq.s32.totalorder %s34, 1
      %p120 = por %p118, %p119
      %p121 = scmp.ne.s32.totalorder %s112, %s113
      %p122 = scmp.eq.s32.totalorder %s34, 0
      %p123 = por %p121, %p122
      %p124 = scmp.ne.s32.totalorder %s112, %s113
      %p125 = scmp.eq.s32.totalorder %s35, 1
      %p126 = por %p124, %p125
      %p128 = scmp.ne.s32.totalorder %s113, %s127
      %p129 = scmp.eq.s32.totalorder %s35, 0
      %p130 = por %p128, %p129
      %s132 = sadd.s32 %s131, 1
      %p135 = scmp.eq.s32.totalorder %s29, 1
      %p136 = scmp.ne.s32.totalorder %s131, %s133
      %p137 = scmp.eq.s32.totalorder %s29, 0
      %p138 = por %p136, %p137
      %p139 = scmp.ne.s32.totalorder %s131, %s133
      %p140 = scmp.eq.s32.totalorder %s34, 1
      %p141 = por %p139, %p140
      %p142 = scmp.ne.s32.totalorder %s133, %s134
      %p143 = scmp.eq.s32.totalorder %s34, 0
      %p144 = por %p142, %p143
      %p145 = scmp.ne.s32.totalorder %s133, %s134
      %p146 = scmp.eq.s32.totalorder %s35, 1
      %p147 = por %p145, %p146
      %p149 = scmp.ne.s32.totalorder %s134, %s148
      %p150 = scmp.eq.s32.totalorder %s35, 0
      %p151 = por %p149, %p150
      %s153 = sadd.s32 %s152, 1
      %p156 = scmp.eq.s32.totalorder %s29, 1
      %p157 = scmp.ne.s32.totalorder %s152, %s154
      %p158 = scmp.eq.s32.totalorder %s29, 0
      %p159 = por %p157, %p158
      %p160 = scmp.ne.s32.totalorder %s152, %s154
      %p161 = scmp.eq.s32.totalorder %s34, 1
      %p162 = por %p160, %p161
      %p163 = scmp.ne.s32.totalorder %s154, %s155
      %p164 = scmp.eq.s32.totalorder %s34, 0
      %p165 = por %p163, %p164
      %p166 = scmp.ne.s32.totalorder %s154, %s155
      %p167 = scmp.eq.s32.totalorder %s35, 1
      %p168 = por %p166, %p167
      %p170 = scmp.ne.s32.totalorder %s155, %s169
      %p171 = scmp.eq.s32.totalorder %s35, 0
      %p172 = por %p170, %p171
      %s174 = sadd.s32 %s173, 1
      %p177 = scmp.eq.s32.totalorder %s29, 1
      %p178 = scmp.ne.s32.totalorder %s173, %s175
      %p179 = scmp.eq.s32.totalorder %s29, 0
      %p180 = por %p178, %p179
      %p181 = scmp.ne.s32.totalorder %s173, %s175
      %p182 = scmp.eq.s32.totalorder %s34, 1
      %p183 = por %p181, %p182
      %p184 = scmp.ne.s32.totalorder %s175, %s176
      %p185 = scmp.eq.s32.totalorder %s34, 0
      %p186 = por %p184, %p185
      %p187 = scmp.ne.s32.totalorder %s175, %s176
      %p188 = scmp.eq.s32.totalorder %s35, 1
      %p189 = por %p187, %p188
      %p191 = scmp.ne.s32.totalorder %s176, %s190
      %p192 = scmp.eq.s32.totalorder %s35, 0
      %p193 = por %p191, %p192
      %s195 = sadd.s32 %s194, 1
      %p198 = scmp.eq.s32.totalorder %s29, 1
      %p199 = scmp.ne.s32.totalorder %s194, %s196
      %p200 = scmp.eq.s32.totalorder %s29, 0
      %p201 = por %p199, %p200
      %p202 = scmp.ne.s32.totalorder %s194, %s196
      %p203 = scmp.eq.s32.totalorder %s34, 1
      %p204 = por %p202, %p203
      %p205 = scmp.ne.s32.totalorder %s196, %s197
      %p206 = scmp.eq.s32.totalorder %s34, 0
      %p207 = por %p205, %p206
      %p208 = scmp.ne.s32.totalorder %s196, %s197
      %p209 = scmp.eq.s32.totalorder %s35, 1
      %p210 = por %p208, %p209
      %p212 = scmp.ne.s32.totalorder %s197, %s211
      %p213 = scmp.eq.s32.totalorder %s35, 0
      %p214 = por %p212, %p213
      %s216 = sadd.s32 %s215, 1
      %p219 = scmp.eq.s32.totalorder %s29, 1
      %p220 = scmp.ne.s32.totalorder %s215, %s217
      %p221 = scmp.eq.s32.totalorder %s29, 0
      %p222 = por %p220, %p221
      %p223 = scmp.ne.s32.totalorder %s215, %s217
      %p224 = scmp.eq.s32.totalorder %s34, 1
      %p225 = por %p223, %p224
      %p226 = scmp.ne.s32.totalorder %s217, %s218
      %p227 = scmp.eq.s32.totalorder %s34, 0
      %p228 = por %p226, %p227
      %p229 = scmp.ne.s32.totalorder %s217, %s218
      %p230 = scmp.eq.s32.totalorder %s35, 1
      %p231 = por %p229, %p230
      %p233 = scmp.ne.s32.totalorder %s218, %s232
      %p234 = scmp.eq.s32.totalorder %s35, 0
      %p235 = por %p233, %p234
      %s237 = sadd.s32 %s236, 1
      %p240 = scmp.eq.s32.totalorder %s29, 1
      %p241 = scmp.ne.s32.totalorder %s236, %s238
      %p242 = scmp.eq.s32.totalorder %s29, 0
      %p243 = por %p241, %p242
      %p244 = scmp.ne.s32.totalorder %s236, %s238
      %p245 = scmp.eq.s32.totalorder %s34, 1
      %p246 = por %p244, %p245
      %p247 = scmp.ne.s32.totalorder %s238, %s239
      %p248 = scmp.eq.s32.totalorder %s34, 0
      %p249 = por %p247, %p248
      %p250 = scmp.ne.s32.totalorder %s238, %s239
      %p251 = scmp.eq.s32.totalorder %s35, 1
      %p252 = por %p250, %p251
      %p254 = scmp.ne.s32.totalorder %s239, %s253
      %p255 = scmp.eq.s32.totalorder %s35, 0
      %p256 = por %p254, %p255
      %s258 = sadd.s32 %s257, 1
      %p261 = scmp.eq.s32.totalorder %s29, 1
      %p262 = scmp.ne.s32.totalorder %s257, %s259
      %p263 = scmp.eq.s32.totalorder %s29, 0
      %p264 = por %p262, %p263
      %p265 = scmp.ne.s32.totalorder %s257, %s259
      %p266 = scmp.eq.s32.totalorder %s34, 1
      %p267 = por %p265, %p266
      %p268 = scmp.ne.s32.totalorder %s259, %s260
      %p269 = scmp.eq.s32.totalorder %s34, 0
      %p270 = por %p268, %p269
      %p271 = scmp.ne.s32.totalorder %s259, %s260
      %p272 = scmp.eq.s32.totalorder %s35, 1
      %p273 = por %p271, %p272
      %p275 = scmp.ne.s32.totalorder %s260, %s274
      %p276 = scmp.eq.s32.totalorder %s35, 0
      %p277 = por %p275, %p276
      %s279 = sadd.s32 %s278, 1
      %p282 = scmp.eq.s32.totalorder %s29, 1
      %p283 = scmp.ne.s32.totalorder %s278, %s280
      %p284 = scmp.eq.s32.totalorder %s29, 0
      %p285 = por %p283, %p284
      %p286 = scmp.ne.s32.totalorder %s278, %s280
      %p287 = scmp.eq.s32.totalorder %s34, 1
      %p288 = por %p286, %p287
      %p289 = scmp.ne.s32.totalorder %s280, %s281
      %p290 = scmp.eq.s32.totalorder %s34, 0
      %p291 = por %p289, %p290
      %p292 = scmp.ne.s32.totalorder %s280, %s281
      %p293 = scmp.eq.s32.totalorder %s35, 1
      %p294 = por %p292, %p293
      %p296 = scmp.ne.s32.totalorder %s281, %s295
      %p297 = scmp.eq.s32.totalorder %s35, 0
      %p298 = por %p296, %p297
      %s300 = sadd.s32 %s299, 1
      %p303 = scmp.eq.s32.totalorder %s29, 1
      %p304 = scmp.ne.s32.totalorder %s299, %s301
      %p305 = scmp.eq.s32.totalorder %s29, 0
      %p306 = por %p304, %p305
      %p307 = scmp.ne.s32.totalorder %s299, %s301
      %p308 = scmp.eq.s32.totalorder %s34, 1
      %p309 = por %p307, %p308
      %p310 = scmp.ne.s32.totalorder %s301, %s302
      %p311 = scmp.eq.s32.totalorder %s34, 0
      %p312 = por %p310, %p311
      %p313 = scmp.ne.s32.totalorder %s301, %s302
      %p314 = scmp.eq.s32.totalorder %s35, 1
      %p315 = por %p313, %p314
      %p317 = scmp.ne.s32.totalorder %s302, %s316
      %p318 = scmp.eq.s32.totalorder %s35, 0
      %p319 = por %p317, %p318
      %s321 = sadd.s32 %s320, 1
      %p324 = scmp.eq.s32.totalorder %s29, 1
      %p325 = scmp.ne.s32.totalorder %s320, %s322
      %p326 = scmp.eq.s32.totalorder %s29, 0
      %p327 = por %p325, %p326
      %p328 = scmp.ne.s32.totalorder %s320, %s322
      %p329 = scmp.eq.s32.totalorder %s34, 1
      %p330 = por %p328, %p329
      %p331 = scmp.ne.s32.totalorder %s322, %s323
      %p332 = scmp.eq.s32.totalorder %s34, 0
      %p333 = por %p331, %p332
      %p334 = scmp.ne.s32.totalorder %s322, %s323
      %p335 = scmp.eq.s32.totalorder %s35, 1
      %p336 = por %p334, %p335
      %p338 = scmp.ne.s32.totalorder %s323, %s337
      %p339 = scmp.eq.s32.totalorder %s35, 0
      %p340 = por %p338, %p339
      %s342 = sadd.s32 %s341, 1
      %p345 = scmp.eq.s32.totalorder %s29, 1
      %p346 = scmp.ne.s32.totalorder %s341, %s343
      %p347 = scmp.eq.s32.totalorder %s29, 0
      %p348 = por %p346, %p347
      %p349 = scmp.ne.s32.totalorder %s341, %s343
      %p350 = scmp.eq.s32.totalorder %s34, 1
      %p351 = por %p349, %p350
      %p352 = scmp.ne.s32.totalorder %s343, %s344
      %p353 = scmp.eq.s32.totalorder %s34, 0
      %p354 = por %p352, %p353
      %p355 = scmp.ne.s32.totalorder %s343, %s344
      %p356 = scmp.eq.s32.totalorder %s35, 1
      %p357 = por %p355, %p356
      %p359 = scmp.ne.s32.totalorder %s344, %s358
      %p360 = scmp.eq.s32.totalorder %s35, 0
      %p361 = por %p359, %p360
      %s363 = sadd.s32 %s362, 1
      %p366 = scmp.eq.s32.totalorder %s29, 1
      %p367 = scmp.ne.s32.totalorder %s362, %s364
      %p368 = scmp.eq.s32.totalorder %s29, 0
      %p369 = por %p367, %p368
      %p370 = scmp.ne.s32.totalorder %s362, %s364
      %p371 = scmp.eq.s32.totalorder %s34, 1
      %p372 = por %p370, %p371
      %p373 = scmp.ne.s32.totalorder %s364, %s365
      %p374 = scmp.eq.s32.totalorder %s34, 0
      %p375 = por %p373, %p374
      %p376 = scmp.ne.s32.totalorder %s364, %s365
      %p377 = scmp.eq.s32.totalorder %s35, 1
      %p378 = por %p376, %p377
      %p380 = scmp.ne.s32.totalorder %s365, %s379
      %p381 = scmp.eq.s32.totalorder %s35, 0
      %p382 = por %p380, %p381
      %s384 = sadd.s32 %s383, 1
      %p387 = scmp.eq.s32.totalorder %s29, 1
      %p388 = scmp.ne.s32.totalorder %s383, %s385
      %p389 = scmp.eq.s32.totalorder %s29, 0
      %p390 = por %p388, %p389
      %p391 = scmp.ne.s32.totalorder %s383, %s385
      %p392 = scmp.eq.s32.totalorder %s34, 1
      %p393 = por %p391, %p392
      %p394 = scmp.ne.s32.totalorder %s385, %s386
      %p395 = scmp.eq.s32.totalorder %s34, 0
      %p396 = por %p394, %p395
      %p397 = scmp.ne.s32.totalorder %s385, %s386
      %p398 = scmp.eq.s32.totalorder %s35, 1
      %p399 = por %p397, %p398
      %p401 = scmp.ne.s32.totalorder %s386, %s400
      %p402 = scmp.eq.s32.totalorder %s35, 0
      %p403 = por %p401, %p402
      %s405 = sadd.s32 %s404, 1
      %p408 = scmp.eq.s32.totalorder %s29, 1
      %p409 = scmp.ne.s32.totalorder %s404, %s406
      %p410 = scmp.eq.s32.totalorder %s29, 0
      %p411 = por %p409, %p410
      %p412 = scmp.ne.s32.totalorder %s404, %s406
      %p413 = scmp.eq.s32.totalorder %s34, 1
      %p414 = por %p412, %p413
      %p415 = scmp.ne.s32.totalorder %s406, %s407
      %p416 = scmp.eq.s32.totalorder %s34, 0
      %p417 = por %p415, %p416
      %p418 = scmp.ne.s32.totalorder %s406, %s407
      %p419 = scmp.eq.s32.totalorder %s35, 1
      %p420 = por %p418, %p419
      %p422 = scmp.ne.s32.totalorder %s407, %s421
      %p423 = scmp.eq.s32.totalorder %s35, 0
      %p424 = por %p422, %p423
      %s426 = sadd.s32 %s425, 1
      %p429 = scmp.eq.s32.totalorder %s29, 1
      %p430 = scmp.ne.s32.totalorder %s425, %s427
      %p431 = scmp.eq.s32.totalorder %s29, 0
      %p432 = por %p430, %p431
      %p433 = scmp.ne.s32.totalorder %s425, %s427
      %p434 = scmp.eq.s32.totalorder %s34, 1
      %p435 = por %p433, %p434
      %p436 = scmp.ne.s32.totalorder %s427, %s428
      %p437 = scmp.eq.s32.totalorder %s34, 0
      %p438 = por %p436, %p437
      %p439 = scmp.ne.s32.totalorder %s427, %s428
      %p440 = scmp.eq.s32.totalorder %s35, 1
      %p441 = por %p439, %p440
      %p443 = scmp.ne.s32.totalorder %s428, %s442
      %p444 = scmp.eq.s32.totalorder %s35, 0
      %p445 = por %p443, %p444
      %s447 = sadd.s32 %s446, 1
      %p450 = scmp.eq.s32.totalorder %s29, 1
      %p451 = scmp.ne.s32.totalorder %s446, %s448
      %p452 = scmp.eq.s32.totalorder %s29, 0
      %p453 = por %p451, %p452
      %p454 = scmp.ne.s32.totalorder %s446, %s448
      %p455 = scmp.eq.s32.totalorder %s34, 1
      %p456 = por %p454, %p455
      %p457 = scmp.ne.s32.totalorder %s448, %s449
      %p458 = scmp.eq.s32.totalorder %s34, 0
      %p459 = por %p457, %p458
      %p460 = scmp.ne.s32.totalorder %s448, %s449
      %p461 = scmp.eq.s32.totalorder %s35, 1
      %p462 = por %p460, %p461
      %p464 = scmp.ne.s32.totalorder %s449, %s463
      %p465 = scmp.eq.s32.totalorder %s35, 0
      %p466 = por %p464, %p465
      %s467 = ssub.s32 %s29, %s36
      %p468 = scmp.eq.s32.totalorder %s467, 0
      %s470 = sadd.s32 %s469, 1
      %s471 = scalar_select %p468, %s469, %s470
      %p474 = pneg %p468
      %p475 = scmp.eq.s32.totalorder %s29, 1
      %p476 = por %p474, %p475
      %p477 = scmp.ne.s32.totalorder %s469, %s472
      %p478 = scmp.eq.s32.totalorder %s29, 0
      %p479 = por %p477, %p478
      %p480 = scmp.ne.s32.totalorder %s469, %s472
      %p481 = scmp.eq.s32.totalorder %s34, 1
      %p482 = por %p480, %p481
      %p483 = scmp.ne.s32.totalorder %s472, %s473
      %p484 = scmp.eq.s32.totalorder %s34, 0
      %p485 = por %p483, %p484
      %p486 = scmp.ne.s32.totalorder %s472, %s473
      %p487 = scmp.eq.s32.totalorder %s35, 1
      %p488 = por %p486, %p487
      %p490 = scmp.ne.s32.totalorder %s473, %s489
      %p491 = scmp.eq.s32.totalorder %s35, 0
      %p492 = por %p490, %p491
      %p493 = scmp.le.s32.totalorder 1, %s29
      %p494 = scmp.lt.s32.totalorder %s29, 3
      %p495 = pnand %p493, %p494
      %p496 = pneg %p495
      // Predicated region
      $region9: #{tpu_custom_call.1} parent=5 // pred_check
        _
      $region10: #{tpu_custom_call.1} parent=5 // pred_check_branch
        %498 = sbr.rel (%p495) target = $region12
      $region11: #{tpu_custom_call.1} parent=5 // pred_region
        %s499 = ssub.s32 %s29, 1
        // Predicated region
        $region13: #{tpu_custom_call.1} parent=11 // pred_check
          %p500 = pneg %p102
        $region14: #{tpu_custom_call.1} parent=11 // pred_check_branch
          %502 = sbr.rel (%p500) target = $region16
        $region15: #{tpu_custom_call.1} parent=11 // pred_region
          _
        $region16: #{tpu_custom_call.1} parent=11 // pred_fallthru
          _
        // Predicated region
        $region17: #{tpu_custom_call.1} parent=11 // pred_check
          %p503 = pneg %p123
        $region18: #{tpu_custom_call.1} parent=11 // pred_check_branch
          %505 = sbr.rel (%p503) target = $region20
        $region19: #{tpu_custom_call.1} parent=11 // pred_region
          _
        $region20: #{tpu_custom_call.1} parent=11 // pred_fallthru
          _
        // Predicated region
        $region21: #{tpu_custom_call.1} parent=11 // pred_check
          %p506 = pneg %p144
        $region22: #{tpu_custom_call.1} parent=11 // pred_check_branch
          %508 = sbr.rel (%p506) target = $region24
        $region23: #{tpu_custom_call.1} parent=11 // pred_region
          _
        $region24: #{tpu_custom_call.1} parent=11 // pred_fallthru
          _
        // Predicated region
        $region25: #{tpu_custom_call.1} parent=11 // pred_check
          %p509 = pneg %p165
        $region26: #{tpu_custom_call.1} parent=11 // pred_check_branch
          %511 = sbr.rel (%p509) target = $region28
        $region27: #{tpu_custom_call.1} parent=11 // pred_region
          _
        $region28: #{tpu_custom_call.1} parent=11 // pred_fallthru
          _
        // Predicated region
        $region29: #{tpu_custom_call.1} parent=11 // pred_check
          %p512 = pneg %p186
        $region30: #{tpu_custom_call.1} parent=11 // pred_check_branch
          %514 = sbr.rel (%p512) target = $region32
        $region31: #{tpu_custom_call.1} parent=11 // pred_region
          _
        $region32: #{tpu_custom_call.1} parent=11 // pred_fallthru
          _
        // Predicated region
        $region33: #{tpu_custom_call.1} parent=11 // pred_check
          %p515 = pneg %p207
        $region34: #{tpu_custom_call.1} parent=11 // pred_check_branch
          %517 = sbr.rel (%p515) target = $region36
        $region35: #{tpu_custom_call.1} parent=11 // pred_region
          _
        $region36: #{tpu_custom_call.1} parent=11 // pred_fallthru
          _
        // Predicated region
        $region37: #{tpu_custom_call.1} parent=11 // pred_check
          %p518 = pneg %p228
        $region38: #{tpu_custom_call.1} parent=11 // pred_check_branch
          %520 = sbr.rel (%p518) target = $region40
        $region39: #{tpu_custom_call.1} parent=11 // pred_region
          _
        $region40: #{tpu_custom_call.1} parent=11 // pred_fallthru
          _
        // Predicated region
        $region41: #{tpu_custom_call.1} parent=11 // pred_check
          %p521 = pneg %p249
        $region42: #{tpu_custom_call.1} parent=11 // pred_check_branch
          %523 = sbr.rel (%p521) target = $region44
        $region43: #{tpu_custom_call.1} parent=11 // pred_region
          _
        $region44: #{tpu_custom_call.1} parent=11 // pred_fallthru
          _
        // Predicated region
        $region45: #{tpu_custom_call.1} parent=11 // pred_check
          %p524 = pneg %p270
        $region46: #{tpu_custom_call.1} parent=11 // pred_check_branch
          %526 = sbr.rel (%p524) target = $region48
        $region47: #{tpu_custom_call.1} parent=11 // pred_region
          _
        $region48: #{tpu_custom_call.1} parent=11 // pred_fallthru
          _
        // Predicated region
        $region49: #{tpu_custom_call.1} parent=11 // pred_check
          %p527 = pneg %p291
        $region50: #{tpu_custom_call.1} parent=11 // pred_check_branch
          %529 = sbr.rel (%p527) target = $region52
        $region51: #{tpu_custom_call.1} parent=11 // pred_region
          _
        $region52: #{tpu_custom_call.1} parent=11 // pred_fallthru
          _
        // Predicated region
        $region53: #{tpu_custom_call.1} parent=11 // pred_check
          %p530 = pneg %p312
        $region54: #{tpu_custom_call.1} parent=11 // pred_check_branch
          %532 = sbr.rel (%p530) target = $region56
        $region55: #{tpu_custom_call.1} parent=11 // pred_region
          _
        $region56: #{tpu_custom_call.1} parent=11 // pred_fallthru
          _
        // Predicated region
        $region57: #{tpu_custom_call.1} parent=11 // pred_check
          %p533 = pneg %p333
        $region58: #{tpu_custom_call.1} parent=11 // pred_check_branch
          %535 = sbr.rel (%p533) target = $region60
        $region59: #{tpu_custom_call.1} parent=11 // pred_region
          _
        $region60: #{tpu_custom_call.1} parent=11 // pred_fallthru
          _
        // Predicated region
        $region61: #{tpu_custom_call.1} parent=11 // pred_check
          %p536 = pneg %p354
        $region62: #{tpu_custom_call.1} parent=11 // pred_check_branch
          %538 = sbr.rel (%p536) target = $region64
        $region63: #{tpu_custom_call.1} parent=11 // pred_region
          _
        $region64: #{tpu_custom_call.1} parent=11 // pred_fallthru
          _
        // Predicated region
        $region65: #{tpu_custom_call.1} parent=11 // pred_check
          %p539 = pneg %p375
        $region66: #{tpu_custom_call.1} parent=11 // pred_check_branch
          %541 = sbr.rel (%p539) target = $region68
        $region67: #{tpu_custom_call.1} parent=11 // pred_region
          _
        $region68: #{tpu_custom_call.1} parent=11 // pred_fallthru
          _
        // Predicated region
        $region69: #{tpu_custom_call.1} parent=11 // pred_check
          %p542 = pneg %p396
        $region70: #{tpu_custom_call.1} parent=11 // pred_check_branch
          %544 = sbr.rel (%p542) target = $region72
        $region71: #{tpu_custom_call.1} parent=11 // pred_region
          _
        $region72: #{tpu_custom_call.1} parent=11 // pred_fallthru
          _
        // Predicated region
        $region73: #{tpu_custom_call.1} parent=11 // pred_check
          %p545 = pneg %p417
        $region74: #{tpu_custom_call.1} parent=11 // pred_check_branch
          %547 = sbr.rel (%p545) target = $region76
        $region75: #{tpu_custom_call.1} parent=11 // pred_region
          _
        $region76: #{tpu_custom_call.1} parent=11 // pred_fallthru
          _
        // Predicated region
        $region77: #{tpu_custom_call.1} parent=11 // pred_check
          %p548 = pneg %p438
        $region78: #{tpu_custom_call.1} parent=11 // pred_check_branch
          %550 = sbr.rel (%p548) target = $region80
        $region79: #{tpu_custom_call.1} parent=11 // pred_region
          _
        $region80: #{tpu_custom_call.1} parent=11 // pred_fallthru
          _
        // Predicated region
        $region81: #{tpu_custom_call.1} parent=11 // pred_check
          %p551 = pneg %p459
        $region82: #{tpu_custom_call.1} parent=11 // pred_check_branch
          %553 = sbr.rel (%p551) target = $region84
        $region83: #{tpu_custom_call.1} parent=11 // pred_region
          _
        $region84: #{tpu_custom_call.1} parent=11 // pred_fallthru
          _
      $region12: #{tpu_custom_call.1} parent=5 // pred_fallthru
        _
      %p554 = scmp.lt.s32.totalorder %s29, 2
      // Predicated region
      $region85: #{tpu_custom_call.1} parent=5 // pred_check
        %p555 = pneg %p554
      $region86: #{tpu_custom_call.1} parent=5 // pred_check_branch
        %557 = sbr.rel (%p555) target = $region88
      $region87: #{tpu_custom_call.1} parent=5 // pred_region
        // Predicated region
        $region89: #{tpu_custom_call.1} parent=87 // pred_check
          %p558 = pneg %p49
        $region90: #{tpu_custom_call.1} parent=87 // pred_check_branch
          %560 = sbr.rel (%p558) target = $region92
        $region91: #{tpu_custom_call.1} parent=87 // pred_region
          %p561 = scmp.lt.s32.totalorder %s29, 1
          %s562 = scalar_select %p561, %s29, 1
          %s563 = smul.addr %s562, 8
          %s564 = scalar_lea.vmem %s0, %s563
        $region92: #{tpu_custom_call.1} parent=87 // pred_fallthru
          _
        // Predicated region
        $region93: #{tpu_custom_call.1} parent=87 // pred_check
          %p565 = pneg %p75
        $region94: #{tpu_custom_call.1} parent=87 // pred_check_branch
          %567 = sbr.rel (%p565) target = $region96
        $region95: #{tpu_custom_call.1} parent=87 // pred_region
          %p568 = scmp.lt.s32.totalorder %s29, 1
          %s569 = scalar_select %p568, %s29, 1
          %s570 = smul.addr %s569, 8
          %s571 = scalar_lea.vmem %s1, %s570
        $region96: #{tpu_custom_call.1} parent=87 // pred_fallthru
          _
      $region88: #{tpu_custom_call.1} parent=5 // pred_fallthru
        _
      %p572 = scmp.le.s32.totalorder 1, %s29
      %p573 = scmp.lt.s32.totalorder %s29, 3
      %p574 = pnand %p572, %p573
      %p575 = pneg %p574
      // Predicated region
      $region97: #{tpu_custom_call.1} parent=5 // pred_check
        _
      $region98: #{tpu_custom_call.1} parent=5 // pred_check_branch
        %577 = sbr.rel (%p574) target = $region100
      $region99: #{tpu_custom_call.1} parent=5 // pred_region
        %s578 = ssub.s32 %s29, 1
        %p579 = scmp.lt.s32.totalorder %s34, 1
        %s580 = scalar_select %p579, %s34, 1
        %s581 = smul.addr %s580, 8
        %s582 = scalar_lea.vmem %s0, %s581
        %p583 = pneg %p55
        %p584 = pneg %p52
        %p585 = scmp.lt.s32.totalorder %s34, 1
        %s586 = scalar_select %p585, %s34, 1
        %s587 = smul.addr %s586, 8
        %s588 = scalar_lea.vmem %s1, %s587
        %p589 = pneg %p81
        %p590 = pneg %p78
        %p591 = pneg %p102
        %p592 = pneg %p99
        %p593 = pneg %p123
        %p594 = pneg %p120
        %p595 = pneg %p144
        %p596 = pneg %p141
        %p597 = pneg %p165
        %p598 = pneg %p162
        %p599 = pneg %p186
        %p600 = pneg %p183
        %p601 = pneg %p207
        %p602 = pneg %p204
        %p603 = pneg %p228
        %p604 = pneg %p225
        %p605 = pneg %p249
        %p606 = pneg %p246
        %p607 = pneg %p270
        %p608 = pneg %p267
        %p609 = pneg %p291
        %p610 = pneg %p288
        %p611 = pneg %p312
        %p612 = pneg %p309
        %p613 = pneg %p333
        %p614 = pneg %p330
        %p615 = pneg %p354
        %p616 = pneg %p351
        %p617 = pneg %p375
        %p618 = pneg %p372
        %p619 = pneg %p396
        %p620 = pneg %p393
        %p621 = pneg %p417
        %p622 = pneg %p414
        %p623 = pneg %p438
        %p624 = pneg %p435
        %p625 = pneg %p459
        %p626 = pneg %p456
        %p627 = pneg %p485
        %p628 = pneg %p482
        %s629 = sand.u32 %s472, 1
        %s630 = scalar_lea.sflag [#allocation3], %s629
        %s631 = sand.u32 %s472, 1
        %s632 = smul.addr %s631, 8
        %s633 = scalar_lea.vmem [#allocation2], %s632
        %p634 = scmp.lt.s32.totalorder %s34, 1
        %s635 = scalar_select %p634, %s34, 1
        %s636 = smul.addr %s635, 8
        %s637 = scalar_lea.vmem %s0, %s636
        %p638 = scmp.lt.s32.totalorder %s34, 1
        %s639 = scalar_select %p638, %s34, 1
        %s640 = smul.addr %s639, 8
        %s641 = scalar_lea.vmem %s1, %s640
        %v642 = vld [vmem:[%s637] sm:$0xff]
        %v643 = vld [vmem:[%s641] sm:$0xff]
        %v644 = vlaneseq
        %v645 = vshrl.u32 %v644, 7
        %v646 = vadd.s32 %v645, 8
        %v647 = vlaneseq
        %v648 = vand.u32 %v647, 127
        %vm649 = vcmp.lt.s32.totalorder %v645, 8
        %vm650 = vcmp.lt.s32.totalorder %v646, 8
        %vm651 = vcmp.lt.s32.totalorder %v648, 8
        %vm652 = vmxor %vm649, %vm651
        %vm653 = vmxor %vm650, %vm651
        %v654 = vsel %vm652, 0.0, -1e+30
        %v655 = vsel %vm653, 0.0, -1e+30
        %v656 = vld [vmem:[%s2] sm:$0xff]
        %v657 = vld [vmem:[%s2 + $0x8] sm:$0xff]
        %v658 = vld [vmem:[%s2 + $0x10] sm:$0xff]
        %v659 = vld [vmem:[%s2 + $0x18] sm:$0xff]
        %v660 = vld [vmem:[%s5] sm:$0x1]
        %v662 = vlaneseq
        %v663 = vshrl.u32 %v662, 7
        %v664 = vsub.s32 0, %v663
        %v665 = vrot.slane %v660, %v664
        %vm667 = vcmask 261120
        %v669 = vsel %vm667, %v642, 0
        %v672 = vsel %vm667, %v643, 0
        %674 = vmatprep.subr.mxu0 0.0
        %675 = vmatpush1.msra.mxu0 %v656
        %676 = vmatprep.subr.mxu0 0.0
        %677 = vmatpush1.msra.mxu0 %v657
        %678 = vmatprep.subr.mxu0 0.0
        %679 = vmatpush1.msra.mxu0 %v658
        %680 = vmatprep.subr.mxu0 0.0
        %681 = vmatpush1.msra.mxu0 %v659
        %682 = vmatprep.subr.mxu0 0.0
        %683 = vmatpush1.msra.mxu0 0.0
        %684 = vmatprep.subr.mxu0 0.0
        %685 = vmatpush1.msra.mxu0 0.0
        %686 = vmatprep.subr.mxu0 0.0
        %687 = vmatpush1.msra.mxu0 0.0
        %688 = vmatprep.subr.mxu0 0.0
        %689 = vmatpush1.msra.mxu0 0.0
        %690 = vmatprep.subr.mxu0 0.0
        %691 = vmatpush1.msra.mxu0 0.0
        %692 = vmatprep.subr.mxu0 0.0
        %693 = vmatpush1.msra.mxu0 0.0
        %694 = vmatprep.subr.mxu0 0.0
        %695 = vmatpush1.msra.mxu0 0.0
        %696 = vmatprep.subr.mxu0 0.0
        %697 = vmatpush1.msra.mxu0 0.0
        %698 = vmatprep.subr.mxu0 0.0
        %699 = vmatpush1.msra.mxu0 0.0
        %700 = vmatprep.subr.mxu0 0.0
        %701 = vmatpush1.msra.mxu0 0.0
        %702 = vmatprep.subr.mxu0 0.0
        %703 = vmatpush1.msra.mxu0 0.0
        %704 = vmatprep.subr.mxu0 0.0
        %705 = vmatpush1.msra.mxu0 0.0
        %706 = vmatprep.subr.mxu0 0.0
        %707 = vmatpush1.msra.mxu0 0.0
        %708 = vmatprep.subr.mxu0 0.0
        %709 = vmatpush1.msra.mxu0 0.0
        %710 = vmatprep.subr.mxu0 0.0
        %711 = vmatpush1.msra.mxu0 0.0
        %712 = vmatprep.subr.mxu0 0.0
        %713 = vmatpush1.msra.mxu0 0.0
        %714 = vmatprep.subr.mxu0 0.0
        %715 = vmatpush1.msra.mxu0 0.0
        %716 = vmatprep.subr.mxu0 0.0
        %717 = vmatpush1.msra.mxu0 0.0
        %718 = vmatprep.subr.mxu0 0.0
        %719 = vmatpush1.msra.mxu0 0.0
        %720 = vmatprep.subr.mxu0 0.0
        %721 = vmatpush1.msra.mxu0 0.0
        %722 = vmatprep.subr.mxu0 0.0
        %723 = vmatpush1.msra.mxu0 0.0
        %724 = vmatprep.subr.mxu0 0.0
        %725 = vmatpush1.msra.mxu0 0.0
        %726 = vmatprep.subr.mxu0 0.0
        %727 = vmatpush1.msra.mxu0 0.0
        %728 = vmatprep.subr.mxu0 0.0
        %729 = vmatpush1.msra.mxu0 0.0
        %730 = vmatprep.subr.mxu0 0.0
        %731 = vmatpush1.msra.mxu0 0.0
        %732 = vmatprep.subr.mxu0 0.0
        %733 = vmatpush1.msra.mxu0 0.0
        %734 = vmatprep.subr.mxu0 0.0
        %735 = vmatpush1.msra.mxu0 0.0
        %736 = vmatprep.subr.mxu0 0.0
        %737 = vmatpush1.msra.mxu0 0.0
        %738 = vmatprep.mubr.f32.mxu0 0.0
        %739 = vmatmul.mubr.f32.gmra.mrb[0].mxu0 %v669
        %v740 = vpop.f32.mrb[0].mxu0
        %v741 = vadd.f32 %v665, %v740
        %v742 = vpop.f32.mrb[0].mxu0
        %743 = vmatprep.mubr.f32.mxu0 0.0
        %744 = vmatmul.mubr.f32.gmra.mrb[0].mxu0 %v672
        %v745 = vpop.f32.mrb[0].mxu0
        %v746 = vadd.f32 %v665, %v745
        %v747 = vpop.f32.mrb[0].mxu0
        %748 = vdwg.mxu0
        %v749 = vld [vmem:[%s3] sm:$0xff]
        %v750 = vld [vmem:[%s3 + $0x8] sm:$0xff]
        %v751 = vld [vmem:[%s3 + $0x10] sm:$0xff]
        %v752 = vld [vmem:[%s3 + $0x18] sm:$0xff]
        %v753 = vld [vmem:[%s6] sm:$0x1]
        %v755 = vlaneseq
        %v756 = vshrl.u32 %v755, 7
        %v757 = vsub.s32 0, %v756
        %v758 = vrot.slane %v753, %v757
        %760 = vmatprep.subr.mxu0 0.0
        %761 = vmatpush1.msra.mxu0 %v749
        %762 = vmatprep.subr.mxu0 0.0
        %763 = vmatpush1.msra.mxu0 %v750
        %764 = vmatprep.subr.mxu0 0.0
        %765 = vmatpush1.msra.mxu0 %v751
        %766 = vmatprep.subr.mxu0 0.0
        %767 = vmatpush1.msra.mxu0 %v752
        %768 = vmatprep.subr.mxu0 0.0
        %769 = vmatpush1.msra.mxu0 0.0
        %770 = vmatprep.subr.mxu0 0.0
        %771 = vmatpush1.msra.mxu0 0.0
        %772 = vmatprep.subr.mxu0 0.0
        %773 = vmatpush1.msra.mxu0 0.0
        %774 = vmatprep.subr.mxu0 0.0
        %775 = vmatpush1.msra.mxu0 0.0
        %776 = vmatprep.subr.mxu0 0.0
        %777 = vmatpush1.msra.mxu0 0.0
        %778 = vmatprep.subr.mxu0 0.0
        %779 = vmatpush1.msra.mxu0 0.0
        %780 = vmatprep.subr.mxu0 0.0
        %781 = vmatpush1.msra.mxu0 0.0
        %782 = vmatprep.subr.mxu0 0.0
        %783 = vmatpush1.msra.mxu0 0.0
        %784 = vmatprep.subr.mxu0 0.0
        %785 = vmatpush1.msra.mxu0 0.0
        %786 = vmatprep.subr.mxu0 0.0
        %787 = vmatpush1.msra.mxu0 0.0
        %788 = vmatprep.subr.mxu0 0.0
        %789 = vmatpush1.msra.mxu0 0.0
        %790 = vmatprep.subr.mxu0 0.0
        %791 = vmatpush1.msra.mxu0 0.0
        %792 = vmatprep.subr.mxu0 0.0
        %793 = vmatpush1.msra.mxu0 0.0
        %794 = vmatprep.subr.mxu0 0.0
        %795 = vmatpush1.msra.mxu0 0.0
        %796 = vmatprep.subr.mxu0 0.0
        %797 = vmatpush1.msra.mxu0 0.0
        %798 = vmatprep.subr.mxu0 0.0
        %799 = vmatpush1.msra.mxu0 0.0
        %800 = vmatprep.subr.mxu0 0.0
        %801 = vmatpush1.msra.mxu0 0.0
        %802 = vmatprep.subr.mxu0 0.0
        %803 = vmatpush1.msra.mxu0 0.0
        %804 = vmatprep.subr.mxu0 0.0
        %805 = vmatpush1.msra.mxu0 0.0
        %806 = vmatprep.subr.mxu0 0.0
        %807 = vmatpush1.msra.mxu0 0.0
        %808 = vmatprep.subr.mxu0 0.0
        %809 = vmatpush1.msra.mxu0 0.0
        %810 = vmatprep.subr.mxu0 0.0
        %811 = vmatpush1.msra.mxu0 0.0
        %812 = vmatprep.subr.mxu0 0.0
        %813 = vmatpush1.msra.mxu0 0.0
        %814 = vmatprep.subr.mxu0 0.0
        %815 = vmatpush1.msra.mxu0 0.0
        %816 = vmatprep.subr.mxu0 0.0
        %817 = vmatpush1.msra.mxu0 0.0
        %818 = vmatprep.subr.mxu0 0.0
        %819 = vmatpush1.msra.mxu0 0.0
        %820 = vmatprep.subr.mxu0 0.0
        %821 = vmatpush1.msra.mxu0 0.0
        %822 = vmatprep.subr.mxu0 0.0
        %823 = vmatpush1.msra.mxu0 0.0
        %824 = vmatprep.mubr.f32.mxu0 0.0
        %825 = vmatmul.mubr.f32.gmra.mrb[0].mxu0 %v669
        %v826 = vpop.f32.mrb[0].mxu0
        %v827 = vadd.f32 %v758, %v826
        %v828 = vpop.f32.mrb[0].mxu0
        %829 = vmatprep.mubr.f32.mxu0 0.0
        %830 = vmatmul.mubr.f32.gmra.mrb[0].mxu0 %v672
        %v831 = vpop.f32.mrb[0].mxu0
        %v832 = vadd.f32 %v758, %v831
        %v833 = vpop.f32.mrb[0].mxu0
        %834 = vdwg.mxu0
        %v835 = vld [vmem:[%s4] sm:$0xff]
        %v836 = vld [vmem:[%s4 + $0x8] sm:$0xff]
        %v837 = vld [vmem:[%s4 + $0x10] sm:$0xff]
        %v838 = vld [vmem:[%s4 + $0x18] sm:$0xff]
        %v839 = vld [vmem:[%s7] sm:$0x1]
        %v841 = vlaneseq
        %v842 = vshrl.u32 %v841, 7
        %v843 = vsub.s32 0, %v842
        %v844 = vrot.slane %v839, %v843
        %846 = vmatprep.subr.mxu0 0.0
        %847 = vmatpush1.msra.mxu0 %v835
        %848 = vmatprep.subr.mxu0 0.0
        %849 = vmatpush1.msra.mxu0 %v836
        %850 = vmatprep.subr.mxu0 0.0
        %851 = vmatpush1.msra.mxu0 %v837
        %852 = vmatprep.subr.mxu0 0.0
        %853 = vmatpush1.msra.mxu0 %v838
        %854 = vmatprep.subr.mxu0 0.0
        %855 = vmatpush1.msra.mxu0 0.0
        %856 = vmatprep.subr.mxu0 0.0
        %857 = vmatpush1.msra.mxu0 0.0
        %858 = vmatprep.subr.mxu0 0.0
        %859 = vmatpush1.msra.mxu0 0.0
        %860 = vmatprep.subr.mxu0 0.0
        %861 = vmatpush1.msra.mxu0 0.0
        %862 = vmatprep.subr.mxu0 0.0
        %863 = vmatpush1.msra.mxu0 0.0
        %864 = vmatprep.subr.mxu0 0.0
        %865 = vmatpush1.msra.mxu0 0.0
        %866 = vmatprep.subr.mxu0 0.0
        %867 = vmatpush1.msra.mxu0 0.0
        %868 = vmatprep.subr.mxu0 0.0
        %869 = vmatpush1.msra.mxu0 0.0
        %870 = vmatprep.subr.mxu0 0.0
        %871 = vmatpush1.msra.mxu0 0.0
        %872 = vmatprep.subr.mxu0 0.0
        %873 = vmatpush1.msra.mxu0 0.0
        %874 = vmatprep.subr.mxu0 0.0
        %875 = vmatpush1.msra.mxu0 0.0
        %876 = vmatprep.subr.mxu0 0.0
        %877 = vmatpush1.msra.mxu0 0.0
        %878 = vmatprep.subr.mxu0 0.0
        %879 = vmatpush1.msra.mxu0 0.0
        %880 = vmatprep.subr.mxu0 0.0
        %881 = vmatpush1.msra.mxu0 0.0
        %882 = vmatprep.subr.mxu0 0.0
        %883 = vmatpush1.msra.mxu0 0.0
        %884 = vmatprep.subr.mxu0 0.0
        %885 = vmatpush1.msra.mxu0 0.0
        %886 = vmatprep.subr.mxu0 0.0
        %887 = vmatpush1.msra.mxu0 0.0
        %888 = vmatprep.subr.mxu0 0.0
        %889 = vmatpush1.msra.mxu0 0.0
        %890 = vmatprep.subr.mxu0 0.0
        %891 = vmatpush1.msra.mxu0 0.0
        %892 = vmatprep.subr.mxu0 0.0
        %893 = vmatpush1.msra.mxu0 0.0
        %894 = vmatprep.subr.mxu0 0.0
        %895 = vmatpush1.msra.mxu0 0.0
        %896 = vmatprep.subr.mxu0 0.0
        %897 = vmatpush1.msra.mxu0 0.0
        %898 = vmatprep.subr.mxu0 0.0
        %899 = vmatpush1.msra.mxu0 0.0
        %900 = vmatprep.subr.mxu0 0.0
        %901 = vmatpush1.msra.mxu0 0.0
        %902 = vmatprep.subr.mxu0 0.0
        %903 = vmatpush1.msra.mxu0 0.0
        %904 = vmatprep.subr.mxu0 0.0
        %905 = vmatpush1.msra.mxu0 0.0
        %906 = vmatprep.subr.mxu0 0.0
        %907 = vmatpush1.msra.mxu0 0.0
        %908 = vmatprep.subr.mxu0 0.0
        %909 = vmatpush1.msra.mxu0 0.0
        %910 = vmatprep.mubr.f32.mxu0 0.0
        %911 = vmatmul.mubr.f32.gmra.mrb[0].mxu0 %v669
        %v912 = vpop.f32.mrb[0].mxu0
        %v913 = vadd.f32 %v844, %v912
        %v914 = vpop.f32.mrb[0].mxu0
        %915 = vmatprep.mubr.f32.mxu0 0.0
        %916 = vmatmul.mubr.f32.gmra.mrb[0].mxu0 %v672
        %v917 = vpop.f32.mrb[0].mxu0
        %v918 = vadd.f32 %v844, %v917
        %v919 = vpop.f32.mrb[0].mxu0
        %920 = vdwg.mxu0
        %vm921 = vcmask 64512
        %v923 = vsel %vm921, %v741, 0
        %v926 = vsel %vm921, %v746, 0
        %v929 = vsel %vm921, %v827, 0
        %v932 = vsel %vm921, %v832, 0
        %934 = vmatprep.subr.mxu0 0.0
        %935 = vmatpush1.xpose.msra.mxu0 %v929
        %936 = vmatprep.subr.mxu0 0.0
        %937 = vmatpush1.xpose.msra.mxu0 %v932
        %938 = vmatprep.subr.mxu0 0.0
        %939 = vmatpush1.xpose.msra.mxu0 0.0
        %940 = vmatprep.subr.mxu0 0.0
        %941 = vmatpush1.xpose.msra.mxu0 0.0
        %942 = vmatprep.subr.mxu0 0.0
        %943 = vmatpush1.xpose.msra.mxu0 0.0
        %944 = vmatprep.subr.mxu0 0.0
        %945 = vmatpush1.xpose.msra.mxu0 0.0
        %946 = vmatprep.subr.mxu0 0.0
        %947 = vmatpush1.xpose.msra.mxu0 0.0
        %948 = vmatprep.subr.mxu0 0.0
        %949 = vmatpush1.xpose.msra.mxu0 0.0
        %950 = vmatprep.subr.mxu0 0.0
        %951 = vmatpush1.xpose.msra.mxu0 0.0
        %952 = vmatprep.subr.mxu0 0.0
        %953 = vmatpush1.xpose.msra.mxu0 0.0
        %954 = vmatprep.subr.mxu0 0.0
        %955 = vmatpush1.xpose.msra.mxu0 0.0
        %956 = vmatprep.subr.mxu0 0.0
        %957 = vmatpush1.xpose.msra.mxu0 0.0
        %958 = vmatprep.subr.mxu0 0.0
        %959 = vmatpush1.xpose.msra.mxu0 0.0
        %960 = vmatprep.subr.mxu0 0.0
        %961 = vmatpush1.xpose.msra.mxu0 0.0
        %962 = vmatprep.subr.mxu0 0.0
        %963 = vmatpush1.xpose.msra.mxu0 0.0
        %964 = vmatprep.subr.mxu0 0.0
        %965 = vmatpush1.xpose.msra.mxu0 0.0
        %966 = vmatprep.subr.mxu0 0.0
        %967 = vmatpush1.xpose.msra.mxu0 0.0
        %968 = vmatprep.subr.mxu0 0.0
        %969 = vmatpush1.xpose.msra.mxu0 0.0
        %970 = vmatprep.subr.mxu0 0.0
        %971 = vmatpush1.xpose.msra.mxu0 0.0
        %972 = vmatprep.subr.mxu0 0.0
        %973 = vmatpush1.xpose.msra.mxu0 0.0
        %974 = vmatprep.subr.mxu0 0.0
        %975 = vmatpush1.xpose.msra.mxu0 0.0
        %976 = vmatprep.subr.mxu0 0.0
        %977 = vmatpush1.xpose.msra.mxu0 0.0
        %978 = vmatprep.subr.mxu0 0.0
        %979 = vmatpush1.xpose.msra.mxu0 0.0
        %980 = vmatprep.subr.mxu0 0.0
        %981 = vmatpush1.xpose.msra.mxu0 0.0
        %982 = vmatprep.subr.mxu0 0.0
        %983 = vmatpush1.xpose.msra.mxu0 0.0
        %984 = vmatprep.subr.mxu0 0.0
        %985 = vmatpush1.xpose.msra.mxu0 0.0
        %986 = vmatprep.subr.mxu0 0.0
        %987 = vmatpush1.xpose.msra.mxu0 0.0
        %988 = vmatprep.subr.mxu0 0.0
        %989 = vmatpush1.xpose.msra.mxu0 0.0
        %990 = vmatprep.subr.mxu0 0.0
        %991 = vmatpush1.xpose.msra.mxu0 0.0
        %992 = vmatprep.subr.mxu0 0.0
        %993 = vmatpush1.xpose.msra.mxu0 0.0
        %994 = vmatprep.subr.mxu0 0.0
        %995 = vmatpush1.xpose.msra.mxu0 0.0
        %996 = vmatprep.subr.mxu0 0.0
        %997 = vmatpush1.xpose.msra.mxu0 0.0
        %998 = vmatprep.mubr.f32.mxu0 0.0
        %999 = vmatmul.mubr.f32.gmra.mrb[0].mxu0 %v923
        %v1000 = vpop.f32.mrb[0].mxu0
        %v1001 = vadd.f32 0.0, %v1000
        %v1002 = vpop.f32.mrb[0].mxu0
        %1003 = vmatprep.mubr.f32.mxu0 0.0
        %1004 = vmatmul.mubr.f32.gmra.mrb[0].mxu0 %v926
        %v1005 = vpop.f32.mrb[0].mxu0
        %v1006 = vadd.f32 0.0, %v1005
        %v1007 = vpop.f32.mrb[0].mxu0
        %1008 = vdwg.mxu0
        %v1009 = vmul.f32 %v1001, 0.35355338
        %v1010 = vmul.f32 %v1006, 0.35355338
        %v1011 = vadd.f32 %v1009, %v654
        %v1012 = vadd.f32 %v1010, %v655
        %vm1013 = vcmask 130048
        %v1014 = vsel %vm1013, %v1011, -inf
        %1015 = vmax.xlane.f32.xlu0 %v1014
        %v1016 = vpop.xlane.xlu0 %1015
        %v1017 = vsel %vm1013, %v1012, -inf
        %1018 = vmax.xlane.f32.xlu0 %v1017
        %v1019 = vpop.xlane.xlu0 %1018
        %v1020 = vsub.f32 %v1011, %v1016
        %v1021 = vsub.f32 %v1012, %v1019
        %v1022 = vmul.f32 %v1020, 1.442695
        %v1023 = vpow.pop %v1022
        %v1024 = vmul.f32 %v1021, 1.442695
        %v1025 = vpow.pop %v1024
        %v1026 = vsel %vm1013, %v1023, 0.0
        %1027 = vadd.xlane.f32.xlu0 %v1026
        %v1028 = vpop.xlane.xlu0 %1027
        %v1029 = vsel %vm1013, %v1025, 0.0
        %1030 = vadd.xlane.f32.xlu0 %v1029
        %v1031 = vpop.xlane.xlu0 %1030
        %v1032 = vrcp.pop %v1028
        %v1033 = vrcp.pop %v1031
        %v1034 = vmul.f32 %v1023, %v1032
        %v1035 = vmul.f32 %v1025, %v1033
        %v1037 = vsel %vm1013, %v1034, 0
        %v1040 = vsel %vm1013, %v1035, 0
        %1042 = vmatprep.subr.mxu0 0.0
        %1043 = vmatpush1.msra.mxu0 %v913
        %1044 = vmatprep.subr.mxu0 0.0
        %1045 = vmatpush1.msra.mxu0 %v918
        %1046 = vmatprep.subr.mxu0 0.0
        %1047 = vmatpush1.msra.mxu0 0.0
        %1048 = vmatprep.subr.mxu0 0.0
        %1049 = vmatpush1.msra.mxu0 0.0
        %1050 = vmatprep.subr.mxu0 0.0
        %1051 = vmatpush1.msra.mxu0 0.0
        %1052 = vmatprep.subr.mxu0 0.0
        %1053 = vmatpush1.msra.mxu0 0.0
        %1054 = vmatprep.subr.mxu0 0.0
        %1055 = vmatpush1.msra.mxu0 0.0
        %1056 = vmatprep.subr.mxu0 0.0
        %1057 = vmatpush1.msra.mxu0 0.0
        %1058 = vmatprep.subr.mxu0 0.0
        %1059 = vmatpush1.msra.mxu0 0.0
        %1060 = vmatprep.subr.mxu0 0.0
        %1061 = vmatpush1.msra.mxu0 0.0
        %1062 = vmatprep.subr.mxu0 0.0
        %1063 = vmatpush1.msra.mxu0 0.0
        %1064 = vmatprep.subr.mxu0 0.0
        %1065 = vmatpush1.msra.mxu0 0.0
        %1066 = vmatprep.subr.mxu0 0.0
        %1067 = vmatpush1.msra.mxu0 0.0
        %1068 = vmatprep.subr.mxu0 0.0
        %1069 = vmatpush1.msra.mxu0 0.0
        %1070 = vmatprep.subr.mxu0 0.0
        %1071 = vmatpush1.msra.mxu0 0.0
        %1072 = vmatprep.subr.mxu0 0.0
        %1073 = vmatpush1.msra.mxu0 0.0
        %1074 = vmatprep.subr.mxu0 0.0
        %1075 = vmatpush1.msra.mxu0 0.0
        %1076 = vmatprep.subr.mxu0 0.0
        %1077 = vmatpush1.msra.mxu0 0.0
        %1078 = vmatprep.subr.mxu0 0.0
        %1079 = vmatpush1.msra.mxu0 0.0
        %1080 = vmatprep.subr.mxu0 0.0
        %1081 = vmatpush1.msra.mxu0 0.0
        %1082 = vmatprep.subr.mxu0 0.0
        %1083 = vmatpush1.msra.mxu0 0.0
        %1084 = vmatprep.subr.mxu0 0.0
        %1085 = vmatpush1.msra.mxu0 0.0
        %1086 = vmatprep.subr.mxu0 0.0
        %1087 = vmatpush1.msra.mxu0 0.0
        %1088 = vmatprep.subr.mxu0 0.0
        %1089 = vmatpush1.msra.mxu0 0.0
        %1090 = vmatprep.subr.mxu0 0.0
        %1091 = vmatpush1.msra.mxu0 0.0
        %1092 = vmatprep.subr.mxu0 0.0
        %1093 = vmatpush1.msra.mxu0 0.0
        %1094 = vmatprep.subr.mxu0 0.0
        %1095 = vmatpush1.msra.mxu0 0.0
        %1096 = vmatprep.subr.mxu0 0.0
        %1097 = vmatpush1.msra.mxu0 0.0
        %1098 = vmatprep.subr.mxu0 0.0
        %1099 = vmatpush1.msra.mxu0 0.0
        %1100 = vmatprep.subr.mxu0 0.0
        %1101 = vmatpush1.msra.mxu0 0.0
        %1102 = vmatprep.subr.mxu0 0.0
        %1103 = vmatpush1.msra.mxu0 0.0
        %1104 = vmatprep.subr.mxu0 0.0
        %1105 = vmatpush1.msra.mxu0 0.0
        %1106 = vmatprep.mubr.f32.mxu0 0.0
        %1107 = vmatmul.mubr.f32.gmra.mrb[0].mxu0 %v1037
        %v1108 = vpop.f32.mrb[0].mxu0
        %v1109 = vadd.f32 0.0, %v1108
        %v1110 = vpop.f32.mrb[0].mxu0
        %1111 = vmatprep.mubr.f32.mxu0 0.0
        %1112 = vmatmul.mubr.f32.gmra.mrb[0].mxu0 %v1040
        %v1113 = vpop.f32.mrb[0].mxu0
        %v1114 = vadd.f32 0.0, %v1113
        %v1115 = vpop.f32.mrb[0].mxu0
        %1116 = vdwg.mxu0
        %v1117 = vld [vmem:[%s8] sm:$0xff]
        %s1118 = scalar_lea.vmem %s2, 32
        %v1119 = vld [vmem:[%s1118] sm:$0xff]
        %v1120 = vld [vmem:[%s1118 + $0x8] sm:$0xff]
        %v1121 = vld [vmem:[%s1118 + $0x10] sm:$0xff]
        %v1122 = vld [vmem:[%s1118 + $0x18] sm:$0xff]
        %s1123 = scalar_lea.vmem %s5, 1
        %v1124 = vld [vmem:[%s1123] sm:$0x1]
        %v1126 = vlaneseq
        %v1127 = vshrl.u32 %v1126, 7
        %v1128 = vsub.s32 0, %v1127
        %v1129 = vrot.slane %v1124, %v1128
        %1131 = vmatprep.subr.mxu0 0.0
        %1132 = vmatpush1.msra.mxu0 %v1119
        %1133 = vmatprep.subr.mxu0 0.0
        %1134 = vmatpush1.msra.mxu0 %v1120
        %1135 = vmatprep.subr.mxu0 0.0
        %1136 = vmatpush1.msra.mxu0 %v1121
        %1137 = vmatprep.subr.mxu0 0.0
        %1138 = vmatpush1.msra.mxu0 %v1122
        %1139 = vmatprep.subr.mxu0 0.0
        %1140 = vmatpush1.msra.mxu0 0.0
        %1141 = vmatprep.subr.mxu0 0.0
        %1142 = vmatpush1.msra.mxu0 0.0
        %1143 = vmatprep.subr.mxu0 0.0
        %1144 = vmatpush1.msra.mxu0 0.0
        %1145 = vmatprep.subr.mxu0 0.0
        %1146 = vmatpush1.msra.mxu0 0.0
        %1147 = vmatprep.subr.mxu0 0.0
        %1148 = vmatpush1.msra.mxu0 0.0
        %1149 = vmatprep.subr.mxu0 0.0
        %1150 = vmatpush1.msra.mxu0 0.0
        %1151 = vmatprep.subr.mxu0 0.0
        %1152 = vmatpush1.msra.mxu0 0.0
        %1153 = vmatprep.subr.mxu0 0.0
        %1154 = vmatpush1.msra.mxu0 0.0
        %1155 = vmatprep.subr.mxu0 0.0
        %1156 = vmatpush1.msra.mxu0 0.0
        %1157 = vmatprep.subr.mxu0 0.0
        %1158 = vmatpush1.msra.mxu0 0.0
        %1159 = vmatprep.subr.mxu0 0.0
        %1160 = vmatpush1.msra.mxu0 0.0
        %1161 = vmatprep.subr.mxu0 0.0
        %1162 = vmatpush1.msra.mxu0 0.0
        %1163 = vmatprep.subr.mxu0 0.0
        %1164 = vmatpush1.msra.mxu0 0.0
        %1165 = vmatprep.subr.mxu0 0.0
        %1166 = vmatpush1.msra.mxu0 0.0
        %1167 = vmatprep.subr.mxu0 0.0
        %1168 = vmatpush1.msra.mxu0 0.0
        %1169 = vmatprep.subr.mxu0 0.0
        %1170 = vmatpush1.msra.mxu0 0.0
        %1171 = vmatprep.subr.mxu0 0.0
        %1172 = vmatpush1.msra.mxu0 0.0
        %1173 = vmatprep.subr.mxu0 0.0
        %1174 = vmatpush1.msra.mxu0 0.0
        %1175 = vmatprep.subr.mxu0 0.0
        %1176 = vmatpush1.msra.mxu0 0.0
        %1177 = vmatprep.subr.mxu0 0.0
        %1178 = vmatpush1.msra.mxu0 0.0
        %1179 = vmatprep.subr.mxu0 0.0
        %1180 = vmatpush1.msra.mxu0 0.0
        %1181 = vmatprep.subr.mxu0 0.0
        %1182 = vmatpush1.msra.mxu0 0.0
        %1183 = vmatprep.subr.mxu0 0.0
        %1184 = vmatpush1.msra.mxu0 0.0
        %1185 = vmatprep.subr.mxu0 0.0
        %1186 = vmatpush1.msra.mxu0 0.0
        %1187 = vmatprep.subr.mxu0 0.0
        %1188 = vmatpush1.msra.mxu0 0.0
        %1189 = vmatprep.subr.mxu0 0.0
        %1190 = vmatpush1.msra.mxu0 0.0
        %1191 = vmatprep.subr.mxu0 0.0
        %1192 = vmatpush1.msra.mxu0 0.0
        %1193 = vmatprep.subr.mxu0 0.0
        %1194 = vmatpush1.msra.mxu0 0.0
        %1195 = vmatprep.mubr.f32.mxu0 0.0
        %1196 = vmatmul.mubr.f32.gmra.mrb[0].mxu0 %v669
        %v1197 = vpop.f32.mrb[0].mxu0
        %v1198 = vadd.f32 %v1129, %v1197
        %v1199 = vpop.f32.mrb[0].mxu0
        %1200 = vmatprep.mubr.f32.mxu0 0.0
        %1201 = vmatmul.mubr.f32.gmra.mrb[0].mxu0 %v672
        %v1202 = vpop.f32.mrb[0].mxu0
        %v1203 = vadd.f32 %v1129, %v1202
        %v1204 = vpop.f32.mrb[0].mxu0
        %1205 = vdwg.mxu0
        %s1206 = scalar_lea.vmem %s3, 32
        %v1207 = vld [vmem:[%s1206] sm:$0xff]
        %v1208 = vld [vmem:[%s1206 + $0x8] sm:$0xff]
        %v1209 = vld [vmem:[%s1206 + $0x10] sm:$0xff]
        %v1210 = vld [vmem:[%s1206 + $0x18] sm:$0xff]
        %s1211 = scalar_lea.vmem %s6, 1
        %v1212 = vld [vmem:[%s1211] sm:$0x1]
        %v1214 = vlaneseq
        %v1215 = vshrl.u32 %v1214, 7
        %v1216 = vsub.s32 0, %v1215
        %v1217 = vrot.slane %v1212, %v1216
        %1219 = vmatprep.subr.mxu0 0.0
        %1220 = vmatpush1.msra.mxu0 %v1207
        %1221 = vmatprep.subr.mxu0 0.0
        %1222 = vmatpush1.msra.mxu0 %v1208
        %1223 = vmatprep.subr.mxu0 0.0
        %1224 = vmatpush1.msra.mxu0 %v1209
        %1225 = vmatprep.subr.mxu0 0.0
        %1226 = vmatpush1.msra.mxu0 %v1210
        %1227 = vmatprep.subr.mxu0 0.0
        %1228 = vmatpush1.msra.mxu0 0.0
        %1229 = vmatprep.subr.mxu0 0.0
        %1230 = vmatpush1.msra.mxu0 0.0
        %1231 = vmatprep.subr.mxu0 0.0
        %1232 = vmatpush1.msra.mxu0 0.0
        %1233 = vmatprep.subr.mxu0 0.0
        %1234 = vmatpush1.msra.mxu0 0.0
        %1235 = vmatprep.subr.mxu0 0.0
        %1236 = vmatpush1.msra.mxu0 0.0
        %1237 = vmatprep.subr.mxu0 0.0
        %1238 = vmatpush1.msra.mxu0 0.0
        %1239 = vmatprep.subr.mxu0 0.0
        %1240 = vmatpush1.msra.mxu0 0.0
        %1241 = vmatprep.subr.mxu0 0.0
        %1242 = vmatpush1.msra.mxu0 0.0
        %1243 = vmatprep.subr.mxu0 0.0
        %1244 = vmatpush1.msra.mxu0 0.0
        %1245 = vmatprep.subr.mxu0 0.0
        %1246 = vmatpush1.msra.mxu0 0.0
        %1247 = vmatprep.subr.mxu0 0.0
        %1248 = vmatpush1.msra.mxu0 0.0
        %1249 = vmatprep.subr.mxu0 0.0
        %1250 = vmatpush1.msra.mxu0 0.0
        %1251 = vmatprep.subr.mxu0 0.0
        %1252 = vmatpush1.msra.mxu0 0.0
        %1253 = vmatprep.subr.mxu0 0.0
        %1254 = vmatpush1.msra.mxu0 0.0
        %1255 = vmatprep.subr.mxu0 0.0
        %1256 = vmatpush1.msra.mxu0 0.0
        %1257 = vmatprep.subr.mxu0 0.0
        %1258 = vmatpush1.msra.mxu0 0.0
        %1259 = vmatprep.subr.mxu0 0.0
        %1260 = vmatpush1.msra.mxu0 0.0
        %1261 = vmatprep.subr.mxu0 0.0
        %1262 = vmatpush1.msra.mxu0 0.0
        %1263 = vmatprep.subr.mxu0 0.0
        %1264 = vmatpush1.msra.mxu0 0.0
        %1265 = vmatprep.subr.mxu0 0.0
        %1266 = vmatpush1.msra.mxu0 0.0
        %1267 = vmatprep.subr.mxu0 0.0
        %1268 = vmatpush1.msra.mxu0 0.0
        %1269 = vmatprep.subr.mxu0 0.0
        %1270 = vmatpush1.msra.mxu0 0.0
        %1271 = vmatprep.subr.mxu0 0.0
        %1272 = vmatpush1.msra.mxu0 0.0
        %1273 = vmatprep.subr.mxu0 0.0
        %1274 = vmatpush1.msra.mxu0 0.0
        %1275 = vmatprep.subr.mxu0 0.0
        %1276 = vmatpush1.msra.mxu0 0.0
        %1277 = vmatprep.subr.mxu0 0.0
        %1278 = vmatpush1.msra.mxu0 0.0
        %1279 = vmatprep.subr.mxu0 0.0
        %1280 = vmatpush1.msra.mxu0 0.0
        %1281 = vmatprep.subr.mxu0 0.0
        %1282 = vmatpush1.msra.mxu0 0.0
        %1283 = vmatprep.mubr.f32.mxu0 0.0
        %1284 = vmatmul.mubr.f32.gmra.mrb[0].mxu0 %v669
        %v1285 = vpop.f32.mrb[0].mxu0
        %v1286 = vadd.f32 %v1217, %v1285
        %v1287 = vpop.f32.mrb[0].mxu0
        %1288 = vmatprep.mubr.f32.mxu0 0.0
        %1289 = vmatmul.mubr.f32.gmra.mrb[0].mxu0 %v672
        %v1290 = vpop.f32.mrb[0].mxu0
        %v1291 = vadd.f32 %v1217, %v1290
        %v1292 = vpop.f32.mrb[0].mxu0
        %1293 = vdwg.mxu0
        %s1294 = scalar_lea.vmem %s4, 32
        %v1295 = vld [vmem:[%s1294] sm:$0xff]
        %v1296 = vld [vmem:[%s1294 + $0x8] sm:$0xff]
        %v1297 = vld [vmem:[%s1294 + $0x10] sm:$0xff]
        %v1298 = vld [vmem:[%s1294 + $0x18] sm:$0xff]
        %s1299 = scalar_lea.vmem %s7, 1
        %v1300 = vld [vmem:[%s1299] sm:$0x1]
        %v1302 = vlaneseq
        %v1303 = vshrl.u32 %v1302, 7
        %v1304 = vsub.s32 0, %v1303
        %v1305 = vrot.slane %v1300, %v1304
        %1307 = vmatprep.subr.mxu0 0.0
        %1308 = vmatpush1.msra.mxu0 %v1295
        %1309 = vmatprep.subr.mxu0 0.0
        %1310 = vmatpush1.msra.mxu0 %v1296
        %1311 = vmatprep.subr.mxu0 0.0
        %1312 = vmatpush1.msra.mxu0 %v1297
        %1313 = vmatprep.subr.mxu0 0.0
        %1314 = vmatpush1.msra.mxu0 %v1298
        %1315 = vmatprep.subr.mxu0 0.0
        %1316 = vmatpush1.msra.mxu0 0.0
        %1317 = vmatprep.subr.mxu0 0.0
        %1318 = vmatpush1.msra.mxu0 0.0
        %1319 = vmatprep.subr.mxu0 0.0
        %1320 = vmatpush1.msra.mxu0 0.0
        %1321 = vmatprep.subr.mxu0 0.0
        %1322 = vmatpush1.msra.mxu0 0.0
        %1323 = vmatprep.subr.mxu0 0.0
        %1324 = vmatpush1.msra.mxu0 0.0
        %1325 = vmatprep.subr.mxu0 0.0
        %1326 = vmatpush1.msra.mxu0 0.0
        %1327 = vmatprep.subr.mxu0 0.0
        %1328 = vmatpush1.msra.mxu0 0.0
        %1329 = vmatprep.subr.mxu0 0.0
        %1330 = vmatpush1.msra.mxu0 0.0
        %1331 = vmatprep.subr.mxu0 0.0
        %1332 = vmatpush1.msra.mxu0 0.0
        %1333 = vmatprep.subr.mxu0 0.0
        %1334 = vmatpush1.msra.mxu0 0.0
        %1335 = vmatprep.subr.mxu0 0.0
        %1336 = vmatpush1.msra.mxu0 0.0
        %1337 = vmatprep.subr.mxu0 0.0
        %1338 = vmatpush1.msra.mxu0 0.0
        %1339 = vmatprep.subr.mxu0 0.0
        %1340 = vmatpush1.msra.mxu0 0.0
        %1341 = vmatprep.subr.mxu0 0.0
        %1342 = vmatpush1.msra.mxu0 0.0
        %1343 = vmatprep.subr.mxu0 0.0
        %1344 = vmatpush1.msra.mxu0 0.0
        %1345 = vmatprep.subr.mxu0 0.0
        %1346 = vmatpush1.msra.mxu0 0.0
        %1347 = vmatprep.subr.mxu0 0.0
        %1348 = vmatpush1.msra.mxu0 0.0
        %1349 = vmatprep.subr.mxu0 0.0
        %1350 = vmatpush1.msra.mxu0 0.0
        %1351 = vmatprep.subr.mxu0 0.0
        %1352 = vmatpush1.msra.mxu0 0.0
        %1353 = vmatprep.subr.mxu0 0.0
        %1354 = vmatpush1.msra.mxu0 0.0
        %1355 = vmatprep.subr.mxu0 0.0
        %1356 = vmatpush1.msra.mxu0 0.0
        %1357 = vmatprep.subr.mxu0 0.0
        %1358 = vmatpush1.msra.mxu0 0.0
        %1359 = vmatprep.subr.mxu0 0.0
        %1360 = vmatpush1.msra.mxu0 0.0
        %1361 = vmatprep.subr.mxu0 0.0
        %1362 = vmatpush1.msra.mxu0 0.0
        %1363 = vmatprep.subr.mxu0 0.0
        %1364 = vmatpush1.msra.mxu0 0.0
        %1365 = vmatprep.subr.mxu0 0.0
        %1366 = vmatpush1.msra.mxu0 0.0
        %1367 = vmatprep.subr.mxu0 0.0
        %1368 = vmatpush1.msra.mxu0 0.0
        %1369 = vmatprep.subr.mxu0 0.0
        %1370 = vmatpush1.msra.mxu0 0.0
        %1371 = vmatprep.mubr.f32.mxu0 0.0
        %1372 = vmatmul.mubr.f32.gmra.mrb[0].mxu0 %v669
        %v1373 = vpop.f32.mrb[0].mxu0
        %v1374 = vadd.f32 %v1305, %v1373
        %v1375 = vpop.f32.mrb[0].mxu0
        %1376 = vmatprep.mubr.f32.mxu0 0.0
        %1377 = vmatmul.mubr.f32.gmra.mrb[0].mxu0 %v672
        %v1378 = vpop.f32.mrb[0].mxu0
        %v1379 = vadd.f32 %v1305, %v1378
        %v1380 = vpop.f32.mrb[0].mxu0
        %1381 = vdwg.mxu0
        %v1383 = vsel %vm921, %v1198, 0
        %v1386 = vsel %vm921, %v1203, 0
        %v1389 = vsel %vm921, %v1286, 0
        %v1392 = vsel %vm921, %v1291, 0
        %1394 = vmatprep.subr.mxu0 0.0
        %1395 = vmatpush1.xpose.msra.mxu0 %v1389
        %1396 = vmatprep.subr.mxu0 0.0
        %1397 = vmatpush1.xpose.msra.mxu0 %v1392
        %1398 = vmatprep.subr.mxu0 0.0
        %1399 = vmatpush1.xpose.msra.mxu0 0.0
        %1400 = vmatprep.subr.mxu0 0.0
        %1401 = vmatpush1.xpose.msra.mxu0 0.0
        %1402 = vmatprep.subr.mxu0 0.0
        %1403 = vmatpush1.xpose.msra.mxu0 0.0
        %1404 = vmatprep.subr.mxu0 0.0
        %1405 = vmatpush1.xpose.msra.mxu0 0.0
        %1406 = vmatprep.subr.mxu0 0.0
        %1407 = vmatpush1.xpose.msra.mxu0 0.0
        %1408 = vmatprep.subr.mxu0 0.0
        %1409 = vmatpush1.xpose.msra.mxu0 0.0
        %1410 = vmatprep.subr.mxu0 0.0
        %1411 = vmatpush1.xpose.msra.mxu0 0.0
        %1412 = vmatprep.subr.mxu0 0.0
        %1413 = vmatpush1.xpose.msra.mxu0 0.0
        %1414 = vmatprep.subr.mxu0 0.0
        %1415 = vmatpush1.xpose.msra.mxu0 0.0
        %1416 = vmatprep.subr.mxu0 0.0
        %1417 = vmatpush1.xpose.msra.mxu0 0.0
        %1418 = vmatprep.subr.mxu0 0.0
        %1419 = vmatpush1.xpose.msra.mxu0 0.0
        %1420 = vmatprep.subr.mxu0 0.0
        %1421 = vmatpush1.xpose.msra.mxu0 0.0
        %1422 = vmatprep.subr.mxu0 0.0
        %1423 = vmatpush1.xpose.msra.mxu0 0.0
        %1424 = vmatprep.subr.mxu0 0.0
        %1425 = vmatpush1.xpose.msra.mxu0 0.0
        %1426 = vmatprep.subr.mxu0 0.0
        %1427 = vmatpush1.xpose.msra.mxu0 0.0
        %1428 = vmatprep.subr.mxu0 0.0
        %1429 = vmatpush1.xpose.msra.mxu0 0.0
        %1430 = vmatprep.subr.mxu0 0.0
        %1431 = vmatpush1.xpose.msra.mxu0 0.0
        %1432 = vmatprep.subr.mxu0 0.0
        %1433 = vmatpush1.xpose.msra.mxu0 0.0
        %1434 = vmatprep.subr.mxu0 0.0
        %1435 = vmatpush1.xpose.msra.mxu0 0.0
        %1436 = vmatprep.subr.mxu0 0.0
        %1437 = vmatpush1.xpose.msra.mxu0 0.0
        %1438 = vmatprep.subr.mxu0 0.0
        %1439 = vmatpush1.xpose.msra.mxu0 0.0
        %1440 = vmatprep.subr.mxu0 0.0
        %1441 = vmatpush1.xpose.msra.mxu0 0.0
        %1442 = vmatprep.subr.mxu0 0.0
        %1443 = vmatpush1.xpose.msra.mxu0 0.0
        %1444 = vmatprep.subr.mxu0 0.0
        %1445 = vmatpush1.xpose.msra.mxu0 0.0
        %1446 = vmatprep.subr.mxu0 0.0
        %1447 = vmatpush1.xpose.msra.mxu0 0.0
        %1448 = vmatprep.subr.mxu0 0.0
        %1449 = vmatpush1.xpose.msra.mxu0 0.0
        %1450 = vmatprep.subr.mxu0 0.0
        %1451 = vmatpush1.xpose.msra.mxu0 0.0
        %1452 = vmatprep.subr.mxu0 0.0
        %1453 = vmatpush1.xpose.msra.mxu0 0.0
        %1454 = vmatprep.subr.mxu0 0.0
        %1455 = vmatpush1.xpose.msra.mxu0 0.0
        %1456 = vmatprep.subr.mxu0 0.0
        %1457 = vmatpush1.xpose.msra.mxu0 0.0
        %1458 = vmatprep.mubr.f32.mxu0 0.0
        %1459 = vmatmul.mubr.f32.gmra.mrb[0].mxu0 %v1383
        %v1460 = vpop.f32.mrb[0].mxu0
        %v1461 = vadd.f32 0.0, %v1460
        %v1462 = vpop.f32.mrb[0].mxu0
        %1463 = vmatprep.mubr.f32.mxu0 0.0
        %1464 = vmatmul.mubr.f32.gmra.mrb[0].mxu0 %v1386
        %v1465 = vpop.f32.mrb[0].mxu0
        %v1466 = vadd.f32 0.0, %v1465
        %v1467 = vpop.f32.mrb[0].mxu0
        %1468 = vdwg.mxu0
        %v1469 = vmul.f32 %v1461, 0.35355338
        %v1470 = vmul.f32 %v1466, 0.35355338
        %v1471 = vadd.f32 %v1469, %v654
        %v1472 = vadd.f32 %v1470, %v655
        %v1473 = vsel %vm1013, %v1471, -inf
        %1474 = vmax.xlane.f32.xlu0 %v1473
        %v1475 = vpop.xlane.xlu0 %1474
        %v1476 = vsel %vm1013, %v1472, -inf
        %1477 = vmax.xlane.f32.xlu0 %v1476
        %v1478 = vpop.xlane.xlu0 %1477
        %v1479 = vsub.f32 %v1471, %v1475
        %v1480 = vsub.f32 %v1472, %v1478
        %v1481 = vmul.f32 %v1479, 1.442695
        %v1482 = vpow.pop %v1481
        %v1483 = vmul.f32 %v1480, 1.442695
        %v1484 = vpow.pop %v1483
        %v1485 = vsel %vm1013, %v1482, 0.0
        %1486 = vadd.xlane.f32.xlu0 %v1485
        %v1487 = vpop.xlane.xlu0 %1486
        %v1488 = vsel %vm1013, %v1484, 0.0
        %1489 = vadd.xlane.f32.xlu0 %v1488
        %v1490 = vpop.xlane.xlu0 %1489
        %v1491 = vrcp.pop %v1487
        %v1492 = vrcp.pop %v1490
        %v1493 = vmul.f32 %v1482, %v1491
        %v1494 = vmul.f32 %v1484, %v1492
        %v1496 = vsel %vm1013, %v1493, 0
        %v1499 = vsel %vm1013, %v1494, 0
        %1501 = vmatprep.subr.mxu0 0.0
        %1502 = vmatpush1.msra.mxu0 %v1374
        %1503 = vmatprep.subr.mxu0 0.0
        %1504 = vmatpush1.msra.mxu0 %v1379
        %1505 = vmatprep.subr.mxu0 0.0
        %1506 = vmatpush1.msra.mxu0 0.0
        %1507 = vmatprep.subr.mxu0 0.0
        %1508 = vmatpush1.msra.mxu0 0.0
        %1509 = vmatprep.subr.mxu0 0.0
        %1510 = vmatpush1.msra.mxu0 0.0
        %1511 = vmatprep.subr.mxu0 0.0
        %1512 = vmatpush1.msra.mxu0 0.0
        %1513 = vmatprep.subr.mxu0 0.0
        %1514 = vmatpush1.msra.mxu0 0.0
        %1515 = vmatprep.subr.mxu0 0.0
        %1516 = vmatpush1.msra.mxu0 0.0
        %1517 = vmatprep.subr.mxu0 0.0
        %1518 = vmatpush1.msra.mxu0 0.0
        %1519 = vmatprep.subr.mxu0 0.0
        %1520 = vmatpush1.msra.mxu0 0.0
        %1521 = vmatprep.subr.mxu0 0.0
        %1522 = vmatpush1.msra.mxu0 0.0
        %1523 = vmatprep.subr.mxu0 0.0
        %1524 = vmatpush1.msra.mxu0 0.0
        %1525 = vmatprep.subr.mxu0 0.0
        %1526 = vmatpush1.msra.mxu0 0.0
        %1527 = vmatprep.subr.mxu0 0.0
        %1528 = vmatpush1.msra.mxu0 0.0
        %1529 = vmatprep.subr.mxu0 0.0
        %1530 = vmatpush1.msra.mxu0 0.0
        %1531 = vmatprep.subr.mxu0 0.0
        %1532 = vmatpush1.msra.mxu0 0.0
        %1533 = vmatprep.subr.mxu0 0.0
        %1534 = vmatpush1.msra.mxu0 0.0
        %1535 = vmatprep.subr.mxu0 0.0
        %1536 = vmatpush1.msra.mxu0 0.0
        %1537 = vmatprep.subr.mxu0 0.0
        %1538 = vmatpush1.msra.mxu0 0.0
        %1539 = vmatprep.subr.mxu0 0.0
        %1540 = vmatpush1.msra.mxu0 0.0
        %1541 = vmatprep.subr.mxu0 0.0
        %1542 = vmatpush1.msra.mxu0 0.0
        %1543 = vmatprep.subr.mxu0 0.0
        %1544 = vmatpush1.msra.mxu0 0.0
        %1545 = vmatprep.subr.mxu0 0.0
        %1546 = vmatpush1.msra.mxu0 0.0
        %1547 = vmatprep.subr.mxu0 0.0
        %1548 = vmatpush1.msra.mxu0 0.0
        %1549 = vmatprep.subr.mxu0 0.0
        %1550 = vmatpush1.msra.mxu0 0.0
        %1551 = vmatprep.subr.mxu0 0.0
        %1552 = vmatpush1.msra.mxu0 0.0
        %1553 = vmatprep.subr.mxu0 0.0
        %1554 = vmatpush1.msra.mxu0 0.0
        %1555 = vmatprep.subr.mxu0 0.0
        %1556 = vmatpush1.msra.mxu0 0.0
        %1557 = vmatprep.subr.mxu0 0.0
        %1558 = vmatpush1.msra.mxu0 0.0
        %1559 = vmatprep.subr.mxu0 0.0
        %1560 = vmatpush1.msra.mxu0 0.0
        %1561 = vmatprep.subr.mxu0 0.0
        %1562 = vmatpush1.msra.mxu0 0.0
        %1563 = vmatprep.subr.mxu0 0.0
        %1564 = vmatpush1.msra.mxu0 0.0
        %1565 = vmatprep.mubr.f32.mxu0 0.0
        %1566 = vmatmul.mubr.f32.gmra.mrb[0].mxu0 %v1496
        %v1567 = vpop.f32.mrb[0].mxu0
        %v1568 = vadd.f32 0.0, %v1567
        %v1569 = vpop.f32.mrb[0].mxu0
        %1570 = vmatprep.mubr.f32.mxu0 0.0
        %1571 = vmatmul.mubr.f32.gmra.mrb[0].mxu0 %v1499
        %v1572 = vpop.f32.mrb[0].mxu0
        %v1573 = vadd.f32 0.0, %v1572
        %v1574 = vpop.f32.mrb[0].mxu0
        %1575 = vdwg.mxu0
        %s1576 = scalar_lea.vmem %s8, 8
        %v1577 = vld [vmem:[%s1576] sm:$0xff]
        %v1579 = vsel %vm921, %v1568, 0
        %v1582 = vsel %vm921, %v1573, 0
        %1584 = vmatprep.subr.mxu0 0.0
        %1585 = vmatpush1.msra.mxu0 %v1577
        %1586 = vmatprep.subr.mxu0 0.0
        %1587 = vmatpush1.msra.mxu0 0.0
        %1588 = vmatprep.subr.mxu0 0.0
        %1589 = vmatpush1.msra.mxu0 0.0
        %1590 = vmatprep.subr.mxu0 0.0
        %1591 = vmatpush1.msra.mxu0 0.0
        %1592 = vmatprep.subr.mxu0 0.0
        %1593 = vmatpush1.msra.mxu0 0.0
        %1594 = vmatprep.subr.mxu0 0.0
        %1595 = vmatpush1.msra.mxu0 0.0
        %1596 = vmatprep.subr.mxu0 0.0
        %1597 = vmatpush1.msra.mxu0 0.0
        %1598 = vmatprep.subr.mxu0 0.0
        %1599 = vmatpush1.msra.mxu0 0.0
        %1600 = vmatprep.subr.mxu0 0.0
        %1601 = vmatpush1.msra.mxu0 0.0
        %1602 = vmatprep.subr.mxu0 0.0
        %1603 = vmatpush1.msra.mxu0 0.0
        %1604 = vmatprep.subr.mxu0 0.0
        %1605 = vmatpush1.msra.mxu0 0.0
        %1606 = vmatprep.subr.mxu0 0.0
        %1607 = vmatpush1.msra.mxu0 0.0
        %1608 = vmatprep.subr.mxu0 0.0
        %1609 = vmatpush1.msra.mxu0 0.0
        %1610 = vmatprep.subr.mxu0 0.0
        %1611 = vmatpush1.msra.mxu0 0.0
        %1612 = vmatprep.subr.mxu0 0.0
        %1613 = vmatpush1.msra.mxu0 0.0
        %1614 = vmatprep.subr.mxu0 0.0
        %1615 = vmatpush1.msra.mxu0 0.0
        %1616 = vmatprep.subr.mxu0 0.0
        %1617 = vmatpush1.msra.mxu0 0.0
        %1618 = vmatprep.subr.mxu0 0.0
        %1619 = vmatpush1.msra.mxu0 0.0
        %1620 = vmatprep.subr.mxu0 0.0
        %1621 = vmatpush1.msra.mxu0 0.0
        %1622 = vmatprep.subr.mxu0 0.0
        %1623 = vmatpush1.msra.mxu0 0.0
        %1624 = vmatprep.subr.mxu0 0.0
        %1625 = vmatpush1.msra.mxu0 0.0
        %1626 = vmatprep.subr.mxu0 0.0
        %1627 = vmatpush1.msra.mxu0 0.0
        %1628 = vmatprep.subr.mxu0 0.0
        %1629 = vmatpush1.msra.mxu0 0.0
        %1630 = vmatprep.subr.mxu0 0.0
        %1631 = vmatpush1.msra.mxu0 0.0
        %1632 = vmatprep.subr.mxu0 0.0
        %1633 = vmatpush1.msra.mxu0 0.0
        %1634 = vmatprep.subr.mxu0 0.0
        %1635 = vmatpush1.msra.mxu0 0.0
        %1636 = vmatprep.subr.mxu0 0.0
        %1637 = vmatpush1.msra.mxu0 0.0
        %1638 = vmatprep.subr.mxu0 0.0
        %1639 = vmatpush1.msra.mxu0 0.0
        %1640 = vmatprep.subr.mxu0 0.0
        %1641 = vmatpush1.msra.mxu0 0.0
        %1642 = vmatprep.subr.mxu0 0.0
        %1643 = vmatpush1.msra.mxu0 0.0
        %1644 = vmatprep.subr.mxu0 0.0
        %1645 = vmatpush1.msra.mxu0 0.0
        %1646 = vmatprep.subr.mxu0 0.0
        %1647 = vmatpush1.msra.mxu0 0.0
        %1648 = vmatprep.mubr.f32.mxu0 0.0
        %1649 = vmatmul.mubr.f32.gmra.mrb[0].mxu0 %v1579
        %v1650 = vpop.f32.mrb[0].mxu0
        %v1651 = vadd.f32 0.0, %v1650
        %v1652 = vpop.f32.mrb[0].mxu0
        %1653 = vmatprep.mubr.f32.mxu0 0.0
        %1654 = vmatmul.mubr.f32.gmra.mrb[0].mxu0 %v1582
        %v1655 = vpop.f32.mrb[0].mxu0
        %v1656 = vadd.f32 0.0, %v1655
        %v1657 = vpop.f32.mrb[0].mxu0
        %1658 = vdwg.mxu0
        %v1660 = vsel %vm921, %v1109, 0
        %v1663 = vsel %vm921, %v1114, 0
        %1665 = vmatprep.subr.mxu0 0.0
        %1666 = vmatpush1.msra.mxu0 %v1117
        %1667 = vmatprep.subr.mxu0 0.0
        %1668 = vmatpush1.msra.mxu0 0.0
        %1669 = vmatprep.subr.mxu0 0.0
        %1670 = vmatpush1.msra.mxu0 0.0
        %1671 = vmatprep.subr.mxu0 0.0
        %1672 = vmatpush1.msra.mxu0 0.0
        %1673 = vmatprep.subr.mxu0 0.0
        %1674 = vmatpush1.msra.mxu0 0.0
        %1675 = vmatprep.subr.mxu0 0.0
        %1676 = vmatpush1.msra.mxu0 0.0
        %1677 = vmatprep.subr.mxu0 0.0
        %1678 = vmatpush1.msra.mxu0 0.0
        %1679 = vmatprep.subr.mxu0 0.0
        %1680 = vmatpush1.msra.mxu0 0.0
        %1681 = vmatprep.subr.mxu0 0.0
        %1682 = vmatpush1.msra.mxu0 0.0
        %1683 = vmatprep.subr.mxu0 0.0
        %1684 = vmatpush1.msra.mxu0 0.0
        %1685 = vmatprep.subr.mxu0 0.0
        %1686 = vmatpush1.msra.mxu0 0.0
        %1687 = vmatprep.subr.mxu0 0.0
        %1688 = vmatpush1.msra.mxu0 0.0
        %1689 = vmatprep.subr.mxu0 0.0
        %1690 = vmatpush1.msra.mxu0 0.0
        %1691 = vmatprep.subr.mxu0 0.0
        %1692 = vmatpush1.msra.mxu0 0.0
        %1693 = vmatprep.subr.mxu0 0.0
        %1694 = vmatpush1.msra.mxu0 0.0
        %1695 = vmatprep.subr.mxu0 0.0
        %1696 = vmatpush1.msra.mxu0 0.0
        %1697 = vmatprep.subr.mxu0 0.0
        %1698 = vmatpush1.msra.mxu0 0.0
        %1699 = vmatprep.subr.mxu0 0.0
        %1700 = vmatpush1.msra.mxu0 0.0
        %1701 = vmatprep.subr.mxu0 0.0
        %1702 = vmatpush1.msra.mxu0 0.0
        %1703 = vmatprep.subr.mxu0 0.0
        %1704 = vmatpush1.msra.mxu0 0.0
        %1705 = vmatprep.subr.mxu0 0.0
        %1706 = vmatpush1.msra.mxu0 0.0
        %1707 = vmatprep.subr.mxu0 0.0
        %1708 = vmatpush1.msra.mxu0 0.0
        %1709 = vmatprep.subr.mxu0 0.0
        %1710 = vmatpush1.msra.mxu0 0.0
        %1711 = vmatprep.subr.mxu0 0.0
        %1712 = vmatpush1.msra.mxu0 0.0
        %1713 = vmatprep.subr.mxu0 0.0
        %1714 = vmatpush1.msra.mxu0 0.0
        %1715 = vmatprep.subr.mxu0 0.0
        %1716 = vmatpush1.msra.mxu0 0.0
        %1717 = vmatprep.subr.mxu0 0.0
        %1718 = vmatpush1.msra.mxu0 0.0
        %1719 = vmatprep.subr.mxu0 0.0
        %1720 = vmatpush1.msra.mxu0 0.0
        %1721 = vmatprep.subr.mxu0 0.0
        %1722 = vmatpush1.msra.mxu0 0.0
        %1723 = vmatprep.subr.mxu0 0.0
        %1724 = vmatpush1.msra.mxu0 0.0
        %1725 = vmatprep.subr.mxu0 0.0
        %1726 = vmatpush1.msra.mxu0 0.0
        %1727 = vmatprep.subr.mxu0 0.0
        %1728 = vmatpush1.msra.mxu0 0.0
        %1729 = vmatprep.mubr.f32.mxu0 0.0
        %1730 = vmatmul.mubr.f32.gmra.mrb[0].mxu0 %v1660
        %v1731 = vpop.f32.mrb[0].mxu0
        %v1732 = vadd.f32 %v1651, %v1731
        %v1733 = vpop.f32.mrb[0].mxu0
        %1734 = vmatprep.mubr.f32.mxu0 0.0
        %1735 = vmatmul.mubr.f32.gmra.mrb[0].mxu0 %v1663
        %v1736 = vpop.f32.mrb[0].mxu0
        %v1737 = vadd.f32 %v1656, %v1736
        %v1738 = vpop.f32.mrb[0].mxu0
        %1739 = vdwg.mxu0
        %s1740 = scalar_lea.vmem %s2, 64
        %v1741 = vld [vmem:[%s1740] sm:$0xff]
        %v1742 = vld [vmem:[%s1740 + $0x8] sm:$0xff]
        %v1743 = vld [vmem:[%s1740 + $0x10] sm:$0xff]
        %v1744 = vld [vmem:[%s1740 + $0x18] sm:$0xff]
        %s1745 = scalar_lea.vmem %s5, 2
        %v1746 = vld [vmem:[%s1745] sm:$0x1]
        %v1748 = vlaneseq
        %v1749 = vshrl.u32 %v1748, 7
        %v1750 = vsub.s32 0, %v1749
        %v1751 = vrot.slane %v1746, %v1750
        %1753 = vmatprep.subr.mxu0 0.0
        %1754 = vmatpush1.msra.mxu0 %v1741
        %1755 = vmatprep.subr.mxu0 0.0
        %1756 = vmatpush1.msra.mxu0 %v1742
        %1757 = vmatprep.subr.mxu0 0.0
        %1758 = vmatpush1.msra.mxu0 %v1743
        %1759 = vmatprep.subr.mxu0 0.0
        %1760 = vmatpush1.msra.mxu0 %v1744
        %1761 = vmatprep.subr.mxu0 0.0
        %1762 = vmatpush1.msra.mxu0 0.0
        %1763 = vmatprep.subr.mxu0 0.0
        %1764 = vmatpush1.msra.mxu0 0.0
        %1765 = vmatprep.subr.mxu0 0.0
        %1766 = vmatpush1.msra.mxu0 0.0
        %1767 = vmatprep.subr.mxu0 0.0
        %1768 = vmatpush1.msra.mxu0 0.0
        %1769 = vmatprep.subr.mxu0 0.0
        %1770 = vmatpush1.msra.mxu0 0.0
        %1771 = vmatprep.subr.mxu0 0.0
        %1772 = vmatpush1.msra.mxu0 0.0
        %1773 = vmatprep.subr.mxu0 0.0
        %1774 = vmatpush1.msra.mxu0 0.0
        %1775 = vmatprep.subr.mxu0 0.0
        %1776 = vmatpush1.msra.mxu0 0.0
        %1777 = vmatprep.subr.mxu0 0.0
        %1778 = vmatpush1.msra.mxu0 0.0
        %1779 = vmatprep.subr.mxu0 0.0
        %1780 = vmatpush1.msra.mxu0 0.0
        %1781 = vmatprep.subr.mxu0 0.0
        %1782 = vmatpush1.msra.mxu0 0.0
        %1783 = vmatprep.subr.mxu0 0.0
        %1784 = vmatpush1.msra.mxu0 0.0
        %1785 = vmatprep.subr.mxu0 0.0
        %1786 = vmatpush1.msra.mxu0 0.0
        %1787 = vmatprep.subr.mxu0 0.0
        %1788 = vmatpush1.msra.mxu0 0.0
        %1789 = vmatprep.subr.mxu0 0.0
        %1790 = vmatpush1.msra.mxu0 0.0
        %1791 = vmatprep.subr.mxu0 0.0
        %1792 = vmatpush1.msra.mxu0 0.0
        %1793 = vmatprep.subr.mxu0 0.0
        %1794 = vmatpush1.msra.mxu0 0.0
        %1795 = vmatprep.subr.mxu0 0.0
        %1796 = vmatpush1.msra.mxu0 0.0
        %1797 = vmatprep.subr.mxu0 0.0
        %1798 = vmatpush1.msra.mxu0 0.0
        %1799 = vmatprep.subr.mxu0 0.0
        %1800 = vmatpush1.msra.mxu0 0.0
        %1801 = vmatprep.subr.mxu0 0.0
        %1802 = vmatpush1.msra.mxu0 0.0
        %1803 = vmatprep.subr.mxu0 0.0
        %1804 = vmatpush1.msra.mxu0 0.0
        %1805 = vmatprep.subr.mxu0 0.0
        %1806 = vmatpush1.msra.mxu0 0.0
        %1807 = vmatprep.subr.mxu0 0.0
        %1808 = vmatpush1.msra.mxu0 0.0
        %1809 = vmatprep.subr.mxu0 0.0
        %1810 = vmatpush1.msra.mxu0 0.0
        %1811 = vmatprep.subr.mxu0 0.0
        %1812 = vmatpush1.msra.mxu0 0.0
        %1813 = vmatprep.subr.mxu0 0.0
        %1814 = vmatpush1.msra.mxu0 0.0
        %1815 = vmatprep.subr.mxu0 0.0
        %1816 = vmatpush1.msra.mxu0 0.0
        %1817 = vmatprep.mubr.f32.mxu0 0.0
        %1818 = vmatmul.mubr.f32.gmra.mrb[0].mxu0 %v669
        %v1819 = vpop.f32.mrb[0].mxu0
        %v1820 = vadd.f32 %v1751, %v1819
        %v1821 = vpop.f32.mrb[0].mxu0
        %1822 = vmatprep.mubr.f32.mxu0 0.0
        %1823 = vmatmul.mubr.f32.gmra.mrb[0].mxu0 %v672
        %v1824 = vpop.f32.mrb[0].mxu0
        %v1825 = vadd.f32 %v1751, %v1824
        %v1826 = vpop.f32.mrb[0].mxu0
        %1827 = vdwg.mxu0
        %s1828 = scalar_lea.vmem %s3, 64
        %v1829 = vld [vmem:[%s1828] sm:$0xff]
        %v1830 = vld [vmem:[%s1828 + $0x8] sm:$0xff]
        %v1831 = vld [vmem:[%s1828 + $0x10] sm:$0xff]
        %v1832 = vld [vmem:[%s1828 + $0x18] sm:$0xff]
        %s1833 = scalar_lea.vmem %s6, 2
        %v1834 = vld [vmem:[%s1833] sm:$0x1]
        %v1836 = vlaneseq
        %v1837 = vshrl.u32 %v1836, 7
        %v1838 = vsub.s32 0, %v1837
        %v1839 = vrot.slane %v1834, %v1838
        %1841 = vmatprep.subr.mxu0 0.0
        %1842 = vmatpush1.msra.mxu0 %v1829
        %1843 = vmatprep.subr.mxu0 0.0
        %1844 = vmatpush1.msra.mxu0 %v1830
        %1845 = vmatprep.subr.mxu0 0.0
        %1846 = vmatpush1.msra.mxu0 %v1831
        %1847 = vmatprep.subr.mxu0 0.0
        %1848 = vmatpush1.msra.mxu0 %v1832
        %1849 = vmatprep.subr.mxu0 0.0
        %1850 = vmatpush1.msra.mxu0 0.0
        %1851 = vmatprep.subr.mxu0 0.0
        %1852 = vmatpush1.msra.mxu0 0.0
        %1853 = vmatprep.subr.mxu0 0.0
        %1854 = vmatpush1.msra.mxu0 0.0
        %1855 = vmatprep.subr.mxu0 0.0
        %1856 = vmatpush1.msra.mxu0 0.0
        %1857 = vmatprep.subr.mxu0 0.0
        %1858 = vmatpush1.msra.mxu0 0.0
        %1859 = vmatprep.subr.mxu0 0.0
        %1860 = vmatpush1.msra.mxu0 0.0
        %1861 = vmatprep.subr.mxu0 0.0
        %1862 = vmatpush1.msra.mxu0 0.0
        %1863 = vmatprep.subr.mxu0 0.0
        %1864 = vmatpush1.msra.mxu0 0.0
        %1865 = vmatprep.subr.mxu0 0.0
        %1866 = vmatpush1.msra.mxu0 0.0
        %1867 = vmatprep.subr.mxu0 0.0
        %1868 = vmatpush1.msra.mxu0 0.0
        %1869 = vmatprep.subr.mxu0 0.0
        %1870 = vmatpush1.msra.mxu0 0.0
        %1871 = vmatprep.subr.mxu0 0.0
        %1872 = vmatpush1.msra.mxu0 0.0
        %1873 = vmatprep.subr.mxu0 0.0
        %1874 = vmatpush1.msra.mxu0 0.0
        %1875 = vmatprep.subr.mxu0 0.0
        %1876 = vmatpush1.msra.mxu0 0.0
        %1877 = vmatprep.subr.mxu0 0.0
        %1878 = vmatpush1.msra.mxu0 0.0
        %1879 = vmatprep.subr.mxu0 0.0
        %1880 = vmatpush1.msra.mxu0 0.0
        %1881 = vmatprep.subr.mxu0 0.0
        %1882 = vmatpush1.msra.mxu0 0.0
        %1883 = vmatprep.subr.mxu0 0.0
        %1884 = vmatpush1.msra.mxu0 0.0
        %1885 = vmatprep.subr.mxu0 0.0
        %1886 = vmatpush1.msra.mxu0 0.0
        %1887 = vmatprep.subr.mxu0 0.0
        %1888 = vmatpush1.msra.mxu0 0.0
        %1889 = vmatprep.subr.mxu0 0.0
        %1890 = vmatpush1.msra.mxu0 0.0
        %1891 = vmatprep.subr.mxu0 0.0
        %1892 = vmatpush1.msra.mxu0 0.0
        %1893 = vmatprep.subr.mxu0 0.0
        %1894 = vmatpush1.msra.mxu0 0.0
        %1895 = vmatprep.subr.mxu0 0.0
        %1896 = vmatpush1.msra.mxu0 0.0
        %1897 = vmatprep.subr.mxu0 0.0
        %1898 = vmatpush1.msra.mxu0 0.0
        %1899 = vmatprep.subr.mxu0 0.0
        %1900 = vmatpush1.msra.mxu0 0.0
        %1901 = vmatprep.subr.mxu0 0.0
        %1902 = vmatpush1.msra.mxu0 0.0
        %1903 = vmatprep.subr.mxu0 0.0
        %1904 = vmatpush1.msra.mxu0 0.0
        %1905 = vmatprep.mubr.f32.mxu0 0.0
        %1906 = vmatmul.mubr.f32.gmra.mrb[0].mxu0 %v669
        %v1907 = vpop.f32.mrb[0].mxu0
        %v1908 = vadd.f32 %v1839, %v1907
        %v1909 = vpop.f32.mrb[0].mxu0
        %1910 = vmatprep.mubr.f32.mxu0 0.0
        %1911 = vmatmul.mubr.f32.gmra.mrb[0].mxu0 %v672
        %v1912 = vpop.f32.mrb[0].mxu0
        %v1913 = vadd.f32 %v1839, %v1912
        %v1914 = vpop.f32.mrb[0].mxu0
        %1915 = vdwg.mxu0
        %s1916 = scalar_lea.vmem %s4, 64
        %v1917 = vld [vmem:[%s1916] sm:$0xff]
        %v1918 = vld [vmem:[%s1916 + $0x8] sm:$0xff]
        %v1919 = vld [vmem:[%s1916 + $0x10] sm:$0xff]
        %v1920 = vld [vmem:[%s1916 + $0x18] sm:$0xff]
        %s1921 = scalar_lea.vmem %s7, 2
        %v1922 = vld [vmem:[%s1921] sm:$0x1]
        %v1924 = vlaneseq
        %v1925 = vshrl.u32 %v1924, 7
        %v1926 = vsub.s32 0, %v1925
        %v1927 = vrot.slane %v1922, %v1926
        %1929 = vmatprep.subr.mxu0 0.0
        %1930 = vmatpush1.msra.mxu0 %v1917
        %1931 = vmatprep.subr.mxu0 0.0
        %1932 = vmatpush1.msra.mxu0 %v1918
        %1933 = vmatprep.subr.mxu0 0.0
        %1934 = vmatpush1.msra.mxu0 %v1919
        %1935 = vmatprep.subr.mxu0 0.0
        %1936 = vmatpush1.msra.mxu0 %v1920
        %1937 = vmatprep.subr.mxu0 0.0
        %1938 = vmatpush1.msra.mxu0 0.0
        %1939 = vmatprep.subr.mxu0 0.0
        %1940 = vmatpush1.msra.mxu0 0.0
        %1941 = vmatprep.subr.mxu0 0.0
        %1942 = vmatpush1.msra.mxu0 0.0
        %1943 = vmatprep.subr.mxu0 0.0
        %1944 = vmatpush1.msra.mxu0 0.0
        %1945 = vmatprep.subr.mxu0 0.0
        %1946 = vmatpush1.msra.mxu0 0.0
        %1947 = vmatprep.subr.mxu0 0.0
        %1948 = vmatpush1.msra.mxu0 0.0
        %1949 = vmatprep.subr.mxu0 0.0
        %1950 = vmatpush1.msra.mxu0 0.0
        %1951 = vmatprep.subr.mxu0 0.0
        %1952 = vmatpush1.msra.mxu0 0.0
        %1953 = vmatprep.subr.mxu0 0.0
        %1954 = vmatpush1.msra.mxu0 0.0
        %1955 = vmatprep.subr.mxu0 0.0
        %1956 = vmatpush1.msra.mxu0 0.0
        %1957 = vmatprep.subr.mxu0 0.0
        %1958 = vmatpush1.msra.mxu0 0.0
        %1959 = vmatprep.subr.mxu0 0.0
        %1960 = vmatpush1.msra.mxu0 0.0
        %1961 = vmatprep.subr.mxu0 0.0
        %1962 = vmatpush1.msra.mxu0 0.0
        %1963 = vmatprep.subr.mxu0 0.0
        %1964 = vmatpush1.msra.mxu0 0.0
        %1965 = vmatprep.subr.mxu0 0.0
        %1966 = vmatpush1.msra.mxu0 0.0
        %1967 = vmatprep.subr.mxu0 0.0
        %1968 = vmatpush1.msra.mxu0 0.0
        %1969 = vmatprep.subr.mxu0 0.0
        %1970 = vmatpush1.msra.mxu0 0.0
        %1971 = vmatprep.subr.mxu0 0.0
        %1972 = vmatpush1.msra.mxu0 0.0
        %1973 = vmatprep.subr.mxu0 0.0
        %1974 = vmatpush1.msra.mxu0 0.0
        %1975 = vmatprep.subr.mxu0 0.0
        %1976 = vmatpush1.msra.mxu0 0.0
        %1977 = vmatprep.subr.mxu0 0.0
        %1978 = vmatpush1.msra.mxu0 0.0
        %1979 = vmatprep.subr.mxu0 0.0
        %1980 = vmatpush1.msra.mxu0 0.0
        %1981 = vmatprep.subr.mxu0 0.0
        %1982 = vmatpush1.msra.mxu0 0.0
        %1983 = vmatprep.subr.mxu0 0.0
        %1984 = vmatpush1.msra.mxu0 0.0
        %1985 = vmatprep.subr.mxu0 0.0
        %1986 = vmatpush1.msra.mxu0 0.0
        %1987 = vmatprep.subr.mxu0 0.0
        %1988 = vmatpush1.msra.mxu0 0.0
        %1989 = vmatprep.subr.mxu0 0.0
        %1990 = vmatpush1.msra.mxu0 0.0
        %1991 = vmatprep.subr.mxu0 0.0
        %1992 = vmatpush1.msra.mxu0 0.0
        %1993 = vmatprep.mubr.f32.mxu0 0.0
        %1994 = vmatmul.mubr.f32.gmra.mrb[0].mxu0 %v669
        %v1995 = vpop.f32.mrb[0].mxu0
        %v1996 = vadd.f32 %v1927, %v1995
        %v1997 = vpop.f32.mrb[0].mxu0
        %1998 = vmatprep.mubr.f32.mxu0 0.0
        %1999 = vmatmul.mubr.f32.gmra.mrb[0].mxu0 %v672
        %v2000 = vpop.f32.mrb[0].mxu0
        %v2001 = vadd.f32 %v1927, %v2000
        %v2002 = vpop.f32.mrb[0].mxu0
        %2003 = vdwg.mxu0
        %v2005 = vsel %vm921, %v1820, 0
        %v2008 = vsel %vm921, %v1825, 0
        %v2011 = vsel %vm921, %v1908, 0
        %v2014 = vsel %vm921, %v1913, 0
        %2016 = vmatprep.subr.mxu0 0.0
        %2017 = vmatpush1.xpose.msra.mxu0 %v2011
        %2018 = vmatprep.subr.mxu0 0.0
        %2019 = vmatpush1.xpose.msra.mxu0 %v2014
        %2020 = vmatprep.subr.mxu0 0.0
        %2021 = vmatpush1.xpose.msra.mxu0 0.0
        %2022 = vmatprep.subr.mxu0 0.0
        %2023 = vmatpush1.xpose.msra.mxu0 0.0
        %2024 = vmatprep.subr.mxu0 0.0
        %2025 = vmatpush1.xpose.msra.mxu0 0.0
        %2026 = vmatprep.subr.mxu0 0.0
        %2027 = vmatpush1.xpose.msra.mxu0 0.0
        %2028 = vmatprep.subr.mxu0 0.0
        %2029 = vmatpush1.xpose.msra.mxu0 0.0
        %2030 = vmatprep.subr.mxu0 0.0
        %2031 = vmatpush1.xpose.msra.mxu0 0.0
        %2032 = vmatprep.subr.mxu0 0.0
        %2033 = vmatpush1.xpose.msra.mxu0 0.0
        %2034 = vmatprep.subr.mxu0 0.0
        %2035 = vmatpush1.xpose.msra.mxu0 0.0
        %2036 = vmatprep.subr.mxu0 0.0
        %2037 = vmatpush1.xpose.msra.mxu0 0.0
        %2038 = vmatprep.subr.mxu0 0.0
        %2039 = vmatpush1.xpose.msra.mxu0 0.0
        %2040 = vmatprep.subr.mxu0 0.0
        %2041 = vmatpush1.xpose.msra.mxu0 0.0
        %2042 = vmatprep.subr.mxu0 0.0
        %2043 = vmatpush1.xpose.msra.mxu0 0.0
        %2044 = vmatprep.subr.mxu0 0.0
        %2045 = vmatpush1.xpose.msra.mxu0 0.0
        %2046 = vmatprep.subr.mxu0 0.0
        %2047 = vmatpush1.xpose.msra.mxu0 0.0
        %2048 = vmatprep.subr.mxu0 0.0
        %2049 = vmatpush1.xpose.msra.mxu0 0.0
        %2050 = vmatprep.subr.mxu0 0.0
        %2051 = vmatpush1.xpose.msra.mxu0 0.0
        %2052 = vmatprep.subr.mxu0 0.0
        %2053 = vmatpush1.xpose.msra.mxu0 0.0
        %2054 = vmatprep.subr.mxu0 0.0
        %2055 = vmatpush1.xpose.msra.mxu0 0.0
        %2056 = vmatprep.subr.mxu0 0.0
        %2057 = vmatpush1.xpose.msra.mxu0 0.0
        %2058 = vmatprep.subr.mxu0 0.0
        %2059 = vmatpush1.xpose.msra.mxu0 0.0
        %2060 = vmatprep.subr.mxu0 0.0
        %2061 = vmatpush1.xpose.msra.mxu0 0.0
        %2062 = vmatprep.subr.mxu0 0.0
        %2063 = vmatpush1.xpose.msra.mxu0 0.0
        %2064 = vmatprep.subr.mxu0 0.0
        %2065 = vmatpush1.xpose.msra.mxu0 0.0
        %2066 = vmatprep.subr.mxu0 0.0
        %2067 = vmatpush1.xpose.msra.mxu0 0.0
        %2068 = vmatprep.subr.mxu0 0.0
        %2069 = vmatpush1.xpose.msra.mxu0 0.0
        %2070 = vmatprep.subr.mxu0 0.0
        %2071 = vmatpush1.xpose.msra.mxu0 0.0
        %2072 = vmatprep.subr.mxu0 0.0
        %2073 = vmatpush1.xpose.msra.mxu0 0.0
        %2074 = vmatprep.subr.mxu0 0.0
        %2075 = vmatpush1.xpose.msra.mxu0 0.0
        %2076 = vmatprep.subr.mxu0 0.0
        %2077 = vmatpush1.xpose.msra.mxu0 0.0
        %2078 = vmatprep.subr.mxu0 0.0
        %2079 = vmatpush1.xpose.msra.mxu0 0.0
        %2080 = vmatprep.mubr.f32.mxu0 0.0
        %2081 = vmatmul.mubr.f32.gmra.mrb[0].mxu0 %v2005
        %v2082 = vpop.f32.mrb[0].mxu0
        %v2083 = vadd.f32 0.0, %v2082
        %v2084 = vpop.f32.mrb[0].mxu0
        %2085 = vmatprep.mubr.f32.mxu0 0.0
        %2086 = vmatmul.mubr.f32.gmra.mrb[0].mxu0 %v2008
        %v2087 = vpop.f32.mrb[0].mxu0
        %v2088 = vadd.f32 0.0, %v2087
        %v2089 = vpop.f32.mrb[0].mxu0
        %2090 = vdwg.mxu0
        %v2091 = vmul.f32 %v2083, 0.35355338
        %v2092 = vmul.f32 %v2088, 0.35355338
        %v2093 = vadd.f32 %v2091, %v654
        %v2094 = vadd.f32 %v2092, %v655
        %v2095 = vsel %vm1013, %v2093, -inf
        %2096 = vmax.xlane.f32.xlu0 %v2095
        %v2097 = vpop.xlane.xlu0 %2096
        %v2098 = vsel %vm1013, %v2094, -inf
        %2099 = vmax.xlane.f32.xlu0 %v2098
        %v2100 = vpop.xlane.xlu0 %2099
        %v2101 = vsub.f32 %v2093, %v2097
        %v2102 = vsub.f32 %v2094, %v2100
        %v2103 = vmul.f32 %v2101, 1.442695
        %v2104 = vpow.pop %v2103
        %v2105 = vmul.f32 %v2102, 1.442695
        %v2106 = vpow.pop %v2105
        %v2107 = vsel %vm1013, %v2104, 0.0
        %2108 = vadd.xlane.f32.xlu0 %v2107
        %v2109 = vpop.xlane.xlu0 %2108
        %v2110 = vsel %vm1013, %v2106, 0.0
        %2111 = vadd.xlane.f32.xlu0 %v2110
        %v2112 = vpop.xlane.xlu0 %2111
        %v2113 = vrcp.pop %v2109
        %v2114 = vrcp.pop %v2112
        %v2115 = vmul.f32 %v2104, %v2113
        %v2116 = vmul.f32 %v2106, %v2114
        %v2118 = vsel %vm1013, %v2115, 0
        %v2121 = vsel %vm1013, %v2116, 0
        %2123 = vmatprep.subr.mxu0 0.0
        %2124 = vmatpush1.msra.mxu0 %v1996
        %2125 = vmatprep.subr.mxu0 0.0
        %2126 = vmatpush1.msra.mxu0 %v2001
        %2127 = vmatprep.subr.mxu0 0.0
        %2128 = vmatpush1.msra.mxu0 0.0
        %2129 = vmatprep.subr.mxu0 0.0
        %2130 = vmatpush1.msra.mxu0 0.0
        %2131 = vmatprep.subr.mxu0 0.0
        %2132 = vmatpush1.msra.mxu0 0.0
        %2133 = vmatprep.subr.mxu0 0.0
        %2134 = vmatpush1.msra.mxu0 0.0
        %2135 = vmatprep.subr.mxu0 0.0
        %2136 = vmatpush1.msra.mxu0 0.0
        %2137 = vmatprep.subr.mxu0 0.0
        %2138 = vmatpush1.msra.mxu0 0.0
        %2139 = vmatprep.subr.mxu0 0.0
        %2140 = vmatpush1.msra.mxu0 0.0
        %2141 = vmatprep.subr.mxu0 0.0
        %2142 = vmatpush1.msra.mxu0 0.0
        %2143 = vmatprep.subr.mxu0 0.0
        %2144 = vmatpush1.msra.mxu0 0.0
        %2145 = vmatprep.subr.mxu0 0.0
        %2146 = vmatpush1.msra.mxu0 0.0
        %2147 = vmatprep.subr.mxu0 0.0
        %2148 = vmatpush1.msra.mxu0 0.0
        %2149 = vmatprep.subr.mxu0 0.0
        %2150 = vmatpush1.msra.mxu0 0.0
        %2151 = vmatprep.subr.mxu0 0.0
        %2152 = vmatpush1.msra.mxu0 0.0
        %2153 = vmatprep.subr.mxu0 0.0
        %2154 = vmatpush1.msra.mxu0 0.0
        %2155 = vmatprep.subr.mxu0 0.0
        %2156 = vmatpush1.msra.mxu0 0.0
        %2157 = vmatprep.subr.mxu0 0.0
        %2158 = vmatpush1.msra.mxu0 0.0
        %2159 = vmatprep.subr.mxu0 0.0
        %2160 = vmatpush1.msra.mxu0 0.0
        %2161 = vmatprep.subr.mxu0 0.0
        %2162 = vmatpush1.msra.mxu0 0.0
        %2163 = vmatprep.subr.mxu0 0.0
        %2164 = vmatpush1.msra.mxu0 0.0
        %2165 = vmatprep.subr.mxu0 0.0
        %2166 = vmatpush1.msra.mxu0 0.0
        %2167 = vmatprep.subr.mxu0 0.0
        %2168 = vmatpush1.msra.mxu0 0.0
        %2169 = vmatprep.subr.mxu0 0.0
        %2170 = vmatpush1.msra.mxu0 0.0
        %2171 = vmatprep.subr.mxu0 0.0
        %2172 = vmatpush1.msra.mxu0 0.0
        %2173 = vmatprep.subr.mxu0 0.0
        %2174 = vmatpush1.msra.mxu0 0.0
        %2175 = vmatprep.subr.mxu0 0.0
        %2176 = vmatpush1.msra.mxu0 0.0
        %2177 = vmatprep.subr.mxu0 0.0
        %2178 = vmatpush1.msra.mxu0 0.0
        %2179 = vmatprep.subr.mxu0 0.0
        %2180 = vmatpush1.msra.mxu0 0.0
        %2181 = vmatprep.subr.mxu0 0.0
        %2182 = vmatpush1.msra.mxu0 0.0
        %2183 = vmatprep.subr.mxu0 0.0
        %2184 = vmatpush1.msra.mxu0 0.0
        %2185 = vmatprep.subr.mxu0 0.0
        %2186 = vmatpush1.msra.mxu0 0.0
        %2187 = vmatprep.mubr.f32.mxu0 0.0
        %2188 = vmatmul.mubr.f32.gmra.mrb[0].mxu0 %v2118
        %v2189 = vpop.f32.mrb[0].mxu0
        %v2190 = vadd.f32 0.0, %v2189
        %v2191 = vpop.f32.mrb[0].mxu0
        %2192 = vmatprep.mubr.f32.mxu0 0.0
        %2193 = vmatmul.mubr.f32.gmra.mrb[0].mxu0 %v2121
        %v2194 = vpop.f32.mrb[0].mxu0
        %v2195 = vadd.f32 0.0, %v2194
        %v2196 = vpop.f32.mrb[0].mxu0
        %2197 = vdwg.mxu0
        %s2198 = scalar_lea.vmem %s8, 16
        %v2199 = vld [vmem:[%s2198] sm:$0xff]
        %v2201 = vsel %vm921, %v2190, 0
        %v2204 = vsel %vm921, %v2195, 0
        %2206 = vmatprep.subr.mxu0 0.0
        %2207 = vmatpush1.msra.mxu0 %v2199
        %2208 = vmatprep.subr.mxu0 0.0
        %2209 = vmatpush1.msra.mxu0 0.0
        %2210 = vmatprep.subr.mxu0 0.0
        %2211 = vmatpush1.msra.mxu0 0.0
        %2212 = vmatprep.subr.mxu0 0.0
        %2213 = vmatpush1.msra.mxu0 0.0
        %2214 = vmatprep.subr.mxu0 0.0
        %2215 = vmatpush1.msra.mxu0 0.0
        %2216 = vmatprep.subr.mxu0 0.0
        %2217 = vmatpush1.msra.mxu0 0.0
        %2218 = vmatprep.subr.mxu0 0.0
        %2219 = vmatpush1.msra.mxu0 0.0
        %2220 = vmatprep.subr.mxu0 0.0
        %2221 = vmatpush1.msra.mxu0 0.0
        %2222 = vmatprep.subr.mxu0 0.0
        %2223 = vmatpush1.msra.mxu0 0.0
        %2224 = vmatprep.subr.mxu0 0.0
        %2225 = vmatpush1.msra.mxu0 0.0
        %2226 = vmatprep.subr.mxu0 0.0
        %2227 = vmatpush1.msra.mxu0 0.0
        %2228 = vmatprep.subr.mxu0 0.0
        %2229 = vmatpush1.msra.mxu0 0.0
        %2230 = vmatprep.subr.mxu0 0.0
        %2231 = vmatpush1.msra.mxu0 0.0
        %2232 = vmatprep.subr.mxu0 0.0
        %2233 = vmatpush1.msra.mxu0 0.0
        %2234 = vmatprep.subr.mxu0 0.0
        %2235 = vmatpush1.msra.mxu0 0.0
        %2236 = vmatprep.subr.mxu0 0.0
        %2237 = vmatpush1.msra.mxu0 0.0
        %2238 = vmatprep.subr.mxu0 0.0
        %2239 = vmatpush1.msra.mxu0 0.0
        %2240 = vmatprep.subr.mxu0 0.0
        %2241 = vmatpush1.msra.mxu0 0.0
        %2242 = vmatprep.subr.mxu0 0.0
        %2243 = vmatpush1.msra.mxu0 0.0
        %2244 = vmatprep.subr.mxu0 0.0
        %2245 = vmatpush1.msra.mxu0 0.0
        %2246 = vmatprep.subr.mxu0 0.0
        %2247 = vmatpush1.msra.mxu0 0.0
        %2248 = vmatprep.subr.mxu0 0.0
        %2249 = vmatpush1.msra.mxu0 0.0
        %2250 = vmatprep.subr.mxu0 0.0
        %2251 = vmatpush1.msra.mxu0 0.0
        %2252 = vmatprep.subr.mxu0 0.0
        %2253 = vmatpush1.msra.mxu0 0.0
        %2254 = vmatprep.subr.mxu0 0.0
        %2255 = vmatpush1.msra.mxu0 0.0
        %2256 = vmatprep.subr.mxu0 0.0
        %2257 = vmatpush1.msra.mxu0 0.0
        %2258 = vmatprep.subr.mxu0 0.0
        %2259 = vmatpush1.msra.mxu0 0.0
        %2260 = vmatprep.subr.mxu0 0.0
        %2261 = vmatpush1.msra.mxu0 0.0
        %2262 = vmatprep.subr.mxu0 0.0
        %2263 = vmatpush1.msra.mxu0 0.0
        %2264 = vmatprep.subr.mxu0 0.0
        %2265 = vmatpush1.msra.mxu0 0.0
        %2266 = vmatprep.subr.mxu0 0.0
        %2267 = vmatpush1.msra.mxu0 0.0
        %2268 = vmatprep.subr.mxu0 0.0
        %2269 = vmatpush1.msra.mxu0 0.0
        %2270 = vmatprep.mubr.f32.mxu0 0.0
        %2271 = vmatmul.mubr.f32.gmra.mrb[0].mxu0 %v2201
        %v2272 = vpop.f32.mrb[0].mxu0
        %v2273 = vadd.f32 0.0, %v2272
        %v2274 = vpop.f32.mrb[0].mxu0
        %2275 = vmatprep.mubr.f32.mxu0 0.0
        %2276 = vmatmul.mubr.f32.gmra.mrb[0].mxu0 %v2204
        %v2277 = vpop.f32.mrb[0].mxu0
        %v2278 = vadd.f32 0.0, %v2277
        %v2279 = vpop.f32.mrb[0].mxu0
        %2280 = vdwg.mxu0
        %v2281 = vadd.f32 %v1732, %v2273
        %v2282 = vadd.f32 %v1737, %v2278
        %s2283 = scalar_lea.vmem %s2, 96
        %v2284 = vld [vmem:[%s2283] sm:$0xff]
        %v2285 = vld [vmem:[%s2283 + $0x8] sm:$0xff]
        %v2286 = vld [vmem:[%s2283 + $0x10] sm:$0xff]
        %v2287 = vld [vmem:[%s2283 + $0x18] sm:$0xff]
        %s2288 = scalar_lea.vmem %s5, 3
        %v2289 = vld [vmem:[%s2288] sm:$0x1]
        %v2291 = vlaneseq
        %v2292 = vshrl.u32 %v2291, 7
        %v2293 = vsub.s32 0, %v2292
        %v2294 = vrot.slane %v2289, %v2293
        %2296 = vmatprep.subr.mxu0 0.0
        %2297 = vmatpush1.msra.mxu0 %v2284
        %2298 = vmatprep.subr.mxu0 0.0
        %2299 = vmatpush1.msra.mxu0 %v2285
        %2300 = vmatprep.subr.mxu0 0.0
        %2301 = vmatpush1.msra.mxu0 %v2286
        %2302 = vmatprep.subr.mxu0 0.0
        %2303 = vmatpush1.msra.mxu0 %v2287
        %2304 = vmatprep.subr.mxu0 0.0
        %2305 = vmatpush1.msra.mxu0 0.0
        %2306 = vmatprep.subr.mxu0 0.0
        %2307 = vmatpush1.msra.mxu0 0.0
        %2308 = vmatprep.subr.mxu0 0.0
        %2309 = vmatpush1.msra.mxu0 0.0
        %2310 = vmatprep.subr.mxu0 0.0
        %2311 = vmatpush1.msra.mxu0 0.0
        %2312 = vmatprep.subr.mxu0 0.0
        %2313 = vmatpush1.msra.mxu0 0.0
        %2314 = vmatprep.subr.mxu0 0.0
        %2315 = vmatpush1.msra.mxu0 0.0
        %2316 = vmatprep.subr.mxu0 0.0
        %2317 = vmatpush1.msra.mxu0 0.0
        %2318 = vmatprep.subr.mxu0 0.0
        %2319 = vmatpush1.msra.mxu0 0.0
        %2320 = vmatprep.subr.mxu0 0.0
        %2321 = vmatpush1.msra.mxu0 0.0
        %2322 = vmatprep.subr.mxu0 0.0
        %2323 = vmatpush1.msra.mxu0 0.0
        %2324 = vmatprep.subr.mxu0 0.0
        %2325 = vmatpush1.msra.mxu0 0.0
        %2326 = vmatprep.subr.mxu0 0.0
        %2327 = vmatpush1.msra.mxu0 0.0
        %2328 = vmatprep.subr.mxu0 0.0
        %2329 = vmatpush1.msra.mxu0 0.0
        %2330 = vmatprep.subr.mxu0 0.0
        %2331 = vmatpush1.msra.mxu0 0.0
        %2332 = vmatprep.subr.mxu0 0.0
        %2333 = vmatpush1.msra.mxu0 0.0
        %2334 = vmatprep.subr.mxu0 0.0
        %2335 = vmatpush1.msra.mxu0 0.0
        %2336 = vmatprep.subr.mxu0 0.0
        %2337 = vmatpush1.msra.mxu0 0.0
        %2338 = vmatprep.subr.mxu0 0.0
        %2339 = vmatpush1.msra.mxu0 0.0
        %2340 = vmatprep.subr.mxu0 0.0
        %2341 = vmatpush1.msra.mxu0 0.0
        %2342 = vmatprep.subr.mxu0 0.0
        %2343 = vmatpush1.msra.mxu0 0.0
        %2344 = vmatprep.subr.mxu0 0.0
        %2345 = vmatpush1.msra.mxu0 0.0
        %2346 = vmatprep.subr.mxu0 0.0
        %2347 = vmatpush1.msra.mxu0 0.0
        %2348 = vmatprep.subr.mxu0 0.0
        %2349 = vmatpush1.msra.mxu0 0.0
        %2350 = vmatprep.subr.mxu0 0.0
        %2351 = vmatpush1.msra.mxu0 0.0
        %2352 = vmatprep.subr.mxu0 0.0
        %2353 = vmatpush1.msra.mxu0 0.0
        %2354 = vmatprep.subr.mxu0 0.0
        %2355 = vmatpush1.msra.mxu0 0.0
        %2356 = vmatprep.subr.mxu0 0.0
        %2357 = vmatpush1.msra.mxu0 0.0
        %2358 = vmatprep.subr.mxu0 0.0
        %2359 = vmatpush1.msra.mxu0 0.0
        %2360 = vmatprep.mubr.f32.mxu0 0.0
        %2361 = vmatmul.mubr.f32.gmra.mrb[0].mxu0 %v669
        %v2362 = vpop.f32.mrb[0].mxu0
        %v2363 = vadd.f32 %v2294, %v2362
        %v2364 = vpop.f32.mrb[0].mxu0
        %2365 = vmatprep.mubr.f32.mxu0 0.0
        %2366 = vmatmul.mubr.f32.gmra.mrb[0].mxu0 %v672
        %v2367 = vpop.f32.mrb[0].mxu0
        %v2368 = vadd.f32 %v2294, %v2367
        %v2369 = vpop.f32.mrb[0].mxu0
        %2370 = vdwg.mxu0
        %s2371 = scalar_lea.vmem %s3, 96
        %v2372 = vld [vmem:[%s2371] sm:$0xff]
        %v2373 = vld [vmem:[%s2371 + $0x8] sm:$0xff]
        %v2374 = vld [vmem:[%s2371 + $0x10] sm:$0xff]
        %v2375 = vld [vmem:[%s2371 + $0x18] sm:$0xff]
        %s2376 = scalar_lea.vmem %s6, 3
        %v2377 = vld [vmem:[%s2376] sm:$0x1]
        %v2379 = vlaneseq
        %v2380 = vshrl.u32 %v2379, 7
        %v2381 = vsub.s32 0, %v2380
        %v2382 = vrot.slane %v2377, %v2381
        %2384 = vmatprep.subr.mxu0 0.0
        %2385 = vmatpush1.msra.mxu0 %v2372
        %2386 = vmatprep.subr.mxu0 0.0
        %2387 = vmatpush1.msra.mxu0 %v2373
        %2388 = vmatprep.subr.mxu0 0.0
        %2389 = vmatpush1.msra.mxu0 %v2374
        %2390 = vmatprep.subr.mxu0 0.0
        %2391 = vmatpush1.msra.mxu0 %v2375
        %2392 = vmatprep.subr.mxu0 0.0
        %2393 = vmatpush1.msra.mxu0 0.0
        %2394 = vmatprep.subr.mxu0 0.0
        %2395 = vmatpush1.msra.mxu0 0.0
        %2396 = vmatprep.subr.mxu0 0.0
        %2397 = vmatpush1.msra.mxu0 0.0
        %2398 = vmatprep.subr.mxu0 0.0
        %2399 = vmatpush1.msra.mxu0 0.0
        %2400 = vmatprep.subr.mxu0 0.0
        %2401 = vmatpush1.msra.mxu0 0.0
        %2402 = vmatprep.subr.mxu0 0.0
        %2403 = vmatpush1.msra.mxu0 0.0
        %2404 = vmatprep.subr.mxu0 0.0
        %2405 = vmatpush1.msra.mxu0 0.0
        %2406 = vmatprep.subr.mxu0 0.0
        %2407 = vmatpush1.msra.mxu0 0.0
        %2408 = vmatprep.subr.mxu0 0.0
        %2409 = vmatpush1.msra.mxu0 0.0
        %2410 = vmatprep.subr.mxu0 0.0
        %2411 = vmatpush1.msra.mxu0 0.0
        %2412 = vmatprep.subr.mxu0 0.0
        %2413 = vmatpush1.msra.mxu0 0.0
        %2414 = vmatprep.subr.mxu0 0.0
        %2415 = vmatpush1.msra.mxu0 0.0
        %2416 = vmatprep.subr.mxu0 0.0
        %2417 = vmatpush1.msra.mxu0 0.0
        %2418 = vmatprep.subr.mxu0 0.0
        %2419 = vmatpush1.msra.mxu0 0.0
        %2420 = vmatprep.subr.mxu0 0.0
        %2421 = vmatpush1.msra.mxu0 0.0
        %2422 = vmatprep.subr.mxu0 0.0
        %2423 = vmatpush1.msra.mxu0 0.0
        %2424 = vmatprep.subr.mxu0 0.0
        %2425 = vmatpush1.msra.mxu0 0.0
        %2426 = vmatprep.subr.mxu0 0.0
        %2427 = vmatpush1.msra.mxu0 0.0
        %2428 = vmatprep.subr.mxu0 0.0
        %2429 = vmatpush1.msra.mxu0 0.0
        %2430 = vmatprep.subr.mxu0 0.0
        %2431 = vmatpush1.msra.mxu0 0.0
        %2432 = vmatprep.subr.mxu0 0.0
        %2433 = vmatpush1.msra.mxu0 0.0
        %2434 = vmatprep.subr.mxu0 0.0
        %2435 = vmatpush1.msra.mxu0 0.0
        %2436 = vmatprep.subr.mxu0 0.0
        %2437 = vmatpush1.msra.mxu0 0.0
        %2438 = vmatprep.subr.mxu0 0.0
        %2439 = vmatpush1.msra.mxu0 0.0
        %2440 = vmatprep.subr.mxu0 0.0
        %2441 = vmatpush1.msra.mxu0 0.0
        %2442 = vmatprep.subr.mxu0 0.0
        %2443 = vmatpush1.msra.mxu0 0.0
        %2444 = vmatprep.subr.mxu0 0.0
        %2445 = vmatpush1.msra.mxu0 0.0
        %2446 = vmatprep.subr.mxu0 0.0
        %2447 = vmatpush1.msra.mxu0 0.0
        %2448 = vmatprep.mubr.f32.mxu0 0.0
        %2449 = vmatmul.mubr.f32.gmra.mrb[0].mxu0 %v669
        %v2450 = vpop.f32.mrb[0].mxu0
        %v2451 = vadd.f32 %v2382, %v2450
        %v2452 = vpop.f32.mrb[0].mxu0
        %2453 = vmatprep.mubr.f32.mxu0 0.0
        %2454 = vmatmul.mubr.f32.gmra.mrb[0].mxu0 %v672
        %v2455 = vpop.f32.mrb[0].mxu0
        %v2456 = vadd.f32 %v2382, %v2455
        %v2457 = vpop.f32.mrb[0].mxu0
        %2458 = vdwg.mxu0
        %s2459 = scalar_lea.vmem %s4, 96
        %v2460 = vld [vmem:[%s2459] sm:$0xff]
        %v2461 = vld [vmem:[%s2459 + $0x8] sm:$0xff]
        %v2462 = vld [vmem:[%s2459 + $0x10] sm:$0xff]
        %v2463 = vld [vmem:[%s2459 + $0x18] sm:$0xff]
        %s2464 = scalar_lea.vmem %s7, 3
        %v2465 = vld [vmem:[%s2464] sm:$0x1]
        %v2467 = vlaneseq
        %v2468 = vshrl.u32 %v2467, 7
        %v2469 = vsub.s32 0, %v2468
        %v2470 = vrot.slane %v2465, %v2469
        %2472 = vmatprep.subr.mxu0 0.0
        %2473 = vmatpush1.msra.mxu0 %v2460
        %2474 = vmatprep.subr.mxu0 0.0
        %2475 = vmatpush1.msra.mxu0 %v2461
        %2476 = vmatprep.subr.mxu0 0.0
        %2477 = vmatpush1.msra.mxu0 %v2462
        %2478 = vmatprep.subr.mxu0 0.0
        %2479 = vmatpush1.msra.mxu0 %v2463
        %2480 = vmatprep.subr.mxu0 0.0
        %2481 = vmatpush1.msra.mxu0 0.0
        %2482 = vmatprep.subr.mxu0 0.0
        %2483 = vmatpush1.msra.mxu0 0.0
        %2484 = vmatprep.subr.mxu0 0.0
        %2485 = vmatpush1.msra.mxu0 0.0
        %2486 = vmatprep.subr.mxu0 0.0
        %2487 = vmatpush1.msra.mxu0 0.0
        %2488 = vmatprep.subr.mxu0 0.0
        %2489 = vmatpush1.msra.mxu0 0.0
        %2490 = vmatprep.subr.mxu0 0.0
        %2491 = vmatpush1.msra.mxu0 0.0
        %2492 = vmatprep.subr.mxu0 0.0
        %2493 = vmatpush1.msra.mxu0 0.0
        %2494 = vmatprep.subr.mxu0 0.0
        %2495 = vmatpush1.msra.mxu0 0.0
        %2496 = vmatprep.subr.mxu0 0.0
        %2497 = vmatpush1.msra.mxu0 0.0
        %2498 = vmatprep.subr.mxu0 0.0
        %2499 = vmatpush1.msra.mxu0 0.0
        %2500 = vmatprep.subr.mxu0 0.0
        %2501 = vmatpush1.msra.mxu0 0.0
        %2502 = vmatprep.subr.mxu0 0.0
        %2503 = vmatpush1.msra.mxu0 0.0
        %2504 = vmatprep.subr.mxu0 0.0
        %2505 = vmatpush1.msra.mxu0 0.0
        %2506 = vmatprep.subr.mxu0 0.0
        %2507 = vmatpush1.msra.mxu0 0.0
        %2508 = vmatprep.subr.mxu0 0.0
        %2509 = vmatpush1.msra.mxu0 0.0
        %2510 = vmatprep.subr.mxu0 0.0
        %2511 = vmatpush1.msra.mxu0 0.0
        %2512 = vmatprep.subr.mxu0 0.0
        %2513 = vmatpush1.msra.mxu0 0.0
        %2514 = vmatprep.subr.mxu0 0.0
        %2515 = vmatpush1.msra.mxu0 0.0
        %2516 = vmatprep.subr.mxu0 0.0
        %2517 = vmatpush1.msra.mxu0 0.0
        %2518 = vmatprep.subr.mxu0 0.0
        %2519 = vmatpush1.msra.mxu0 0.0
        %2520 = vmatprep.subr.mxu0 0.0
        %2521 = vmatpush1.msra.mxu0 0.0
        %2522 = vmatprep.subr.mxu0 0.0
        %2523 = vmatpush1.msra.mxu0 0.0
        %2524 = vmatprep.subr.mxu0 0.0
        %2525 = vmatpush1.msra.mxu0 0.0
        %2526 = vmatprep.subr.mxu0 0.0
        %2527 = vmatpush1.msra.mxu0 0.0
        %2528 = vmatprep.subr.mxu0 0.0
        %2529 = vmatpush1.msra.mxu0 0.0
        %2530 = vmatprep.subr.mxu0 0.0
        %2531 = vmatpush1.msra.mxu0 0.0
        %2532 = vmatprep.subr.mxu0 0.0
        %2533 = vmatpush1.msra.mxu0 0.0
        %2534 = vmatprep.subr.mxu0 0.0
        %2535 = vmatpush1.msra.mxu0 0.0
        %2536 = vmatprep.mubr.f32.mxu0 0.0
        %2537 = vmatmul.mubr.f32.gmra.mrb[0].mxu0 %v669
        %v2538 = vpop.f32.mrb[0].mxu0
        %v2539 = vadd.f32 %v2470, %v2538
        %v2540 = vpop.f32.mrb[0].mxu0
        %2541 = vmatprep.mubr.f32.mxu0 0.0
        %2542 = vmatmul.mubr.f32.gmra.mrb[0].mxu0 %v672
        %v2543 = vpop.f32.mrb[0].mxu0
        %v2544 = vadd.f32 %v2470, %v2543
        %v2545 = vpop.f32.mrb[0].mxu0
        %2546 = vdwg.mxu0
        %v2548 = vsel %vm921, %v2363, 0
        %v2551 = vsel %vm921, %v2368, 0
        %v2554 = vsel %vm921, %v2451, 0
        %v2557 = vsel %vm921, %v2456, 0
        %2559 = vmatprep.subr.mxu0 0.0
        %2560 = vmatpush1.xpose.msra.mxu0 %v2554
        %2561 = vmatprep.subr.mxu0 0.0
        %2562 = vmatpush1.xpose.msra.mxu0 %v2557
        %2563 = vmatprep.subr.mxu0 0.0
        %2564 = vmatpush1.xpose.msra.mxu0 0.0
        %2565 = vmatprep.subr.mxu0 0.0
        %2566 = vmatpush1.xpose.msra.mxu0 0.0
        %2567 = vmatprep.subr.mxu0 0.0
        %2568 = vmatpush1.xpose.msra.mxu0 0.0
        %2569 = vmatprep.subr.mxu0 0.0
        %2570 = vmatpush1.xpose.msra.mxu0 0.0
        %2571 = vmatprep.subr.mxu0 0.0
        %2572 = vmatpush1.xpose.msra.mxu0 0.0
        %2573 = vmatprep.subr.mxu0 0.0
        %2574 = vmatpush1.xpose.msra.mxu0 0.0
        %2575 = vmatprep.subr.mxu0 0.0
        %2576 = vmatpush1.xpose.msra.mxu0 0.0
        %2577 = vmatprep.subr.mxu0 0.0
        %2578 = vmatpush1.xpose.msra.mxu0 0.0
        %2579 = vmatprep.subr.mxu0 0.0
        %2580 = vmatpush1.xpose.msra.mxu0 0.0
        %2581 = vmatprep.subr.mxu0 0.0
        %2582 = vmatpush1.xpose.msra.mxu0 0.0
        %2583 = vmatprep.subr.mxu0 0.0
        %2584 = vmatpush1.xpose.msra.mxu0 0.0
        %2585 = vmatprep.subr.mxu0 0.0
        %2586 = vmatpush1.xpose.msra.mxu0 0.0
        %2587 = vmatprep.subr.mxu0 0.0
        %2588 = vmatpush1.xpose.msra.mxu0 0.0
        %2589 = vmatprep.subr.mxu0 0.0
        %2590 = vmatpush1.xpose.msra.mxu0 0.0
        %2591 = vmatprep.subr.mxu0 0.0
        %2592 = vmatpush1.xpose.msra.mxu0 0.0
        %2593 = vmatprep.subr.mxu0 0.0
        %2594 = vmatpush1.xpose.msra.mxu0 0.0
        %2595 = vmatprep.subr.mxu0 0.0
        %2596 = vmatpush1.xpose.msra.mxu0 0.0
        %2597 = vmatprep.subr.mxu0 0.0
        %2598 = vmatpush1.xpose.msra.mxu0 0.0
        %2599 = vmatprep.subr.mxu0 0.0
        %2600 = vmatpush1.xpose.msra.mxu0 0.0
        %2601 = vmatprep.subr.mxu0 0.0
        %2602 = vmatpush1.xpose.msra.mxu0 0.0
        %2603 = vmatprep.subr.mxu0 0.0
        %2604 = vmatpush1.xpose.msra.mxu0 0.0
        %2605 = vmatprep.subr.mxu0 0.0
        %2606 = vmatpush1.xpose.msra.mxu0 0.0
        %2607 = vmatprep.subr.mxu0 0.0
        %2608 = vmatpush1.xpose.msra.mxu0 0.0
        %2609 = vmatprep.subr.mxu0 0.0
        %2610 = vmatpush1.xpose.msra.mxu0 0.0
        %2611 = vmatprep.subr.mxu0 0.0
        %2612 = vmatpush1.xpose.msra.mxu0 0.0
        %2613 = vmatprep.subr.mxu0 0.0
        %2614 = vmatpush1.xpose.msra.mxu0 0.0
        %2615 = vmatprep.subr.mxu0 0.0
        %2616 = vmatpush1.xpose.msra.mxu0 0.0
        %2617 = vmatprep.subr.mxu0 0.0
        %2618 = vmatpush1.xpose.msra.mxu0 0.0
        %2619 = vmatprep.subr.mxu0 0.0
        %2620 = vmatpush1.xpose.msra.mxu0 0.0
        %2621 = vmatprep.subr.mxu0 0.0
        %2622 = vmatpush1.xpose.msra.mxu0 0.0
        %2623 = vmatprep.mubr.f32.mxu0 0.0
        %2624 = vmatmul.mubr.f32.gmra.mrb[0].mxu0 %v2548
        %v2625 = vpop.f32.mrb[0].mxu0
        %v2626 = vadd.f32 0.0, %v2625
        %v2627 = vpop.f32.mrb[0].mxu0
        %2628 = vmatprep.mubr.f32.mxu0 0.0
        %2629 = vmatmul.mubr.f32.gmra.mrb[0].mxu0 %v2551
        %v2630 = vpop.f32.mrb[0].mxu0
        %v2631 = vadd.f32 0.0, %v2630
        %v2632 = vpop.f32.mrb[0].mxu0
        %2633 = vdwg.mxu0
        %v2634 = vmul.f32 %v2626, 0.35355338
        %v2635 = vmul.f32 %v2631, 0.35355338
        %v2636 = vadd.f32 %v2634, %v654
        %v2637 = vadd.f32 %v2635, %v655
        %v2638 = vsel %vm1013, %v2636, -inf
        %2639 = vmax.xlane.f32.xlu0 %v2638
        %v2640 = vpop.xlane.xlu0 %2639
        %v2641 = vsel %vm1013, %v2637, -inf
        %2642 = vmax.xlane.f32.xlu0 %v2641
        %v2643 = vpop.xlane.xlu0 %2642
        %v2644 = vsub.f32 %v2636, %v2640
        %v2645 = vsub.f32 %v2637, %v2643
        %v2646 = vmul.f32 %v2644, 1.442695
        %v2647 = vpow.pop %v2646
        %v2648 = vmul.f32 %v2645, 1.442695
        %v2649 = vpow.pop %v2648
        %v2650 = vsel %vm1013, %v2647, 0.0
        %2651 = vadd.xlane.f32.xlu0 %v2650
        %v2652 = vpop.xlane.xlu0 %2651
        %v2653 = vsel %vm1013, %v2649, 0.0
        %2654 = vadd.xlane.f32.xlu0 %v2653
        %v2655 = vpop.xlane.xlu0 %2654
        %v2656 = vrcp.pop %v2652
        %v2657 = vrcp.pop %v2655
        %v2658 = vmul.f32 %v2647, %v2656
        %v2659 = vmul.f32 %v2649, %v2657
        %v2661 = vsel %vm1013, %v2658, 0
        %v2664 = vsel %vm1013, %v2659, 0
        %2666 = vmatprep.subr.mxu0 0.0
        %2667 = vmatpush1.msra.mxu0 %v2539
        %2668 = vmatprep.subr.mxu0 0.0
        %2669 = vmatpush1.msra.mxu0 %v2544
        %2670 = vmatprep.subr.mxu0 0.0
        %2671 = vmatpush1.msra.mxu0 0.0
        %2672 = vmatprep.subr.mxu0 0.0
        %2673 = vmatpush1.msra.mxu0 0.0
        %2674 = vmatprep.subr.mxu0 0.0
        %2675 = vmatpush1.msra.mxu0 0.0
        %2676 = vmatprep.subr.mxu0 0.0
        %2677 = vmatpush1.msra.mxu0 0.0
        %2678 = vmatprep.subr.mxu0 0.0
        %2679 = vmatpush1.msra.mxu0 0.0
        %2680 = vmatprep.subr.mxu0 0.0
        %2681 = vmatpush1.msra.mxu0 0.0
        %2682 = vmatprep.subr.mxu0 0.0
        %2683 = vmatpush1.msra.mxu0 0.0
        %2684 = vmatprep.subr.mxu0 0.0
        %2685 = vmatpush1.msra.mxu0 0.0
        %2686 = vmatprep.subr.mxu0 0.0
        %2687 = vmatpush1.msra.mxu0 0.0
        %2688 = vmatprep.subr.mxu0 0.0
        %2689 = vmatpush1.msra.mxu0 0.0
        %2690 = vmatprep.subr.mxu0 0.0
        %2691 = vmatpush1.msra.mxu0 0.0
        %2692 = vmatprep.subr.mxu0 0.0
        %2693 = vmatpush1.msra.mxu0 0.0
        %2694 = vmatprep.subr.mxu0 0.0
        %2695 = vmatpush1.msra.mxu0 0.0
        %2696 = vmatprep.subr.mxu0 0.0
        %2697 = vmatpush1.msra.mxu0 0.0
        %2698 = vmatprep.subr.mxu0 0.0
        %2699 = vmatpush1.msra.mxu0 0.0
        %2700 = vmatprep.subr.mxu0 0.0
        %2701 = vmatpush1.msra.mxu0 0.0
        %2702 = vmatprep.subr.mxu0 0.0
        %2703 = vmatpush1.msra.mxu0 0.0
        %2704 = vmatprep.subr.mxu0 0.0
        %2705 = vmatpush1.msra.mxu0 0.0
        %2706 = vmatprep.subr.mxu0 0.0
        %2707 = vmatpush1.msra.mxu0 0.0
        %2708 = vmatprep.subr.mxu0 0.0
        %2709 = vmatpush1.msra.mxu0 0.0
        %2710 = vmatprep.subr.mxu0 0.0
        %2711 = vmatpush1.msra.mxu0 0.0
        %2712 = vmatprep.subr.mxu0 0.0
        %2713 = vmatpush1.msra.mxu0 0.0
        %2714 = vmatprep.subr.mxu0 0.0
        %2715 = vmatpush1.msra.mxu0 0.0
        %2716 = vmatprep.subr.mxu0 0.0
        %2717 = vmatpush1.msra.mxu0 0.0
        %2718 = vmatprep.subr.mxu0 0.0
        %2719 = vmatpush1.msra.mxu0 0.0
        %2720 = vmatprep.subr.mxu0 0.0
        %2721 = vmatpush1.msra.mxu0 0.0
        %2722 = vmatprep.subr.mxu0 0.0
        %2723 = vmatpush1.msra.mxu0 0.0
        %2724 = vmatprep.subr.mxu0 0.0
        %2725 = vmatpush1.msra.mxu0 0.0
        %2726 = vmatprep.subr.mxu0 0.0
        %2727 = vmatpush1.msra.mxu0 0.0
        %2728 = vmatprep.subr.mxu0 0.0
        %2729 = vmatpush1.msra.mxu0 0.0
        %2730 = vmatprep.mubr.f32.mxu0 0.0
        %2731 = vmatmul.mubr.f32.gmra.mrb[0].mxu0 %v2661
        %v2732 = vpop.f32.mrb[0].mxu0
        %v2733 = vadd.f32 0.0, %v2732
        %v2734 = vpop.f32.mrb[0].mxu0
        %2735 = vmatprep.mubr.f32.mxu0 0.0
        %2736 = vmatmul.mubr.f32.gmra.mrb[0].mxu0 %v2664
        %v2737 = vpop.f32.mrb[0].mxu0
        %v2738 = vadd.f32 0.0, %v2737
        %v2739 = vpop.f32.mrb[0].mxu0
        %2740 = vdwg.mxu0
        %s2741 = scalar_lea.vmem %s8, 24
        %v2742 = vld [vmem:[%s2741] sm:$0xff]
        %v2744 = vsel %vm921, %v2733, 0
        %v2747 = vsel %vm921, %v2738, 0
        %2749 = vmatprep.subr.mxu0 0.0
        %2750 = vmatpush1.msra.mxu0 %v2742
        %2751 = vmatprep.subr.mxu0 0.0
        %2752 = vmatpush1.msra.mxu0 0.0
        %2753 = vmatprep.subr.mxu0 0.0
        %2754 = vmatpush1.msra.mxu0 0.0
        %2755 = vmatprep.subr.mxu0 0.0
        %2756 = vmatpush1.msra.mxu0 0.0
        %2757 = vmatprep.subr.mxu0 0.0
        %2758 = vmatpush1.msra.mxu0 0.0
        %2759 = vmatprep.subr.mxu0 0.0
        %2760 = vmatpush1.msra.mxu0 0.0
        %2761 = vmatprep.subr.mxu0 0.0
        %2762 = vmatpush1.msra.mxu0 0.0
        %2763 = vmatprep.subr.mxu0 0.0
        %2764 = vmatpush1.msra.mxu0 0.0
        %2765 = vmatprep.subr.mxu0 0.0
        %2766 = vmatpush1.msra.mxu0 0.0
        %2767 = vmatprep.subr.mxu0 0.0
        %2768 = vmatpush1.msra.mxu0 0.0
        %2769 = vmatprep.subr.mxu0 0.0
        %2770 = vmatpush1.msra.mxu0 0.0
        %2771 = vmatprep.subr.mxu0 0.0
        %2772 = vmatpush1.msra.mxu0 0.0
        %2773 = vmatprep.subr.mxu0 0.0
        %2774 = vmatpush1.msra.mxu0 0.0
        %2775 = vmatprep.subr.mxu0 0.0
        %2776 = vmatpush1.msra.mxu0 0.0
        %2777 = vmatprep.subr.mxu0 0.0
        %2778 = vmatpush1.msra.mxu0 0.0
        %2779 = vmatprep.subr.mxu0 0.0
        %2780 = vmatpush1.msra.mxu0 0.0
        %2781 = vmatprep.subr.mxu0 0.0
        %2782 = vmatpush1.msra.mxu0 0.0
        %2783 = vmatprep.subr.mxu0 0.0
        %2784 = vmatpush1.msra.mxu0 0.0
        %2785 = vmatprep.subr.mxu0 0.0
        %2786 = vmatpush1.msra.mxu0 0.0
        %2787 = vmatprep.subr.mxu0 0.0
        %2788 = vmatpush1.msra.mxu0 0.0
        %2789 = vmatprep.subr.mxu0 0.0
        %2790 = vmatpush1.msra.mxu0 0.0
        %2791 = vmatprep.subr.mxu0 0.0
        %2792 = vmatpush1.msra.mxu0 0.0
        %2793 = vmatprep.subr.mxu0 0.0
        %2794 = vmatpush1.msra.mxu0 0.0
        %2795 = vmatprep.subr.mxu0 0.0
        %2796 = vmatpush1.msra.mxu0 0.0
        %2797 = vmatprep.subr.mxu0 0.0
        %2798 = vmatpush1.msra.mxu0 0.0
        %2799 = vmatprep.subr.mxu0 0.0
        %2800 = vmatpush1.msra.mxu0 0.0
        %2801 = vmatprep.subr.mxu0 0.0
        %2802 = vmatpush1.msra.mxu0 0.0
        %2803 = vmatprep.subr.mxu0 0.0
        %2804 = vmatpush1.msra.mxu0 0.0
        %2805 = vmatprep.subr.mxu0 0.0
        %2806 = vmatpush1.msra.mxu0 0.0
        %2807 = vmatprep.subr.mxu0 0.0
        %2808 = vmatpush1.msra.mxu0 0.0
        %2809 = vmatprep.subr.mxu0 0.0
        %2810 = vmatpush1.msra.mxu0 0.0
        %2811 = vmatprep.subr.mxu0 0.0
        %2812 = vmatpush1.msra.mxu0 0.0
        %2813 = vmatprep.mubr.f32.mxu0 0.0
        %2814 = vmatmul.mubr.f32.gmra.mrb[0].mxu0 %v2744
        %v2815 = vpop.f32.mrb[0].mxu0
        %v2816 = vadd.f32 0.0, %v2815
        %v2817 = vpop.f32.mrb[0].mxu0
        %2818 = vmatprep.mubr.f32.mxu0 0.0
        %2819 = vmatmul.mubr.f32.gmra.mrb[0].mxu0 %v2747
        %v2820 = vpop.f32.mrb[0].mxu0
        %v2821 = vadd.f32 0.0, %v2820
        %v2822 = vpop.f32.mrb[0].mxu0
        %2823 = vdwg.mxu0
        %v2824 = vadd.f32 %v2281, %v2816
        %v2825 = vadd.f32 %v2282, %v2821
        %v2826 = vld [vmem:[%s9] sm:$0x1]
        %v2828 = vlaneseq
        %v2829 = vshrl.u32 %v2828, 7
        %v2830 = vsub.s32 0, %v2829
        %v2831 = vrot.slane %v2826, %v2830
        %v2833 = vadd.f32 %v2824, %v2831
        %v2834 = vadd.f32 %v2825, %v2831
        %v2835 = vmul.f32 %v2833, 0.5
        %v2836 = vmul.f32 %v2834, 0.5
        %v2837 = vmul.f32 %v642, 0.5
        %v2838 = vmul.f32 %v643, 0.5
        %v2839 = vadd.f32 %v2835, %v2837
        %v2840 = vadd.f32 %v2836, %v2838
        %v2841 = vld [vmem:[%s10] sm:$0xff]
        %v2842 = vld [vmem:[%s10 + $0x8] sm:$0x3]
        %v2844 = vsel %vm1013, %v2841, 0
        %v2847 = vsel %vm1013, %v2842, 0
        %2849 = vmatprep.subr.mxu0 0.0
        %2850 = vmatpush1.msra.mxu0 %v2839
        %2851 = vmatprep.subr.mxu0 0.0
        %2852 = vmatpush1.msra.mxu0 %v2840
        %2853 = vmatprep.subr.mxu0 0.0
        %2854 = vmatpush1.msra.mxu0 0.0
        %2855 = vmatprep.subr.mxu0 0.0
        %2856 = vmatpush1.msra.mxu0 0.0
        %2857 = vmatprep.subr.mxu0 0.0
        %2858 = vmatpush1.msra.mxu0 0.0
        %2859 = vmatprep.subr.mxu0 0.0
        %2860 = vmatpush1.msra.mxu0 0.0
        %2861 = vmatprep.subr.mxu0 0.0
        %2862 = vmatpush1.msra.mxu0 0.0
        %2863 = vmatprep.subr.mxu0 0.0
        %2864 = vmatpush1.msra.mxu0 0.0
        %2865 = vmatprep.subr.mxu0 0.0
        %2866 = vmatpush1.msra.mxu0 0.0
        %2867 = vmatprep.subr.mxu0 0.0
        %2868 = vmatpush1.msra.mxu0 0.0
        %2869 = vmatprep.subr.mxu0 0.0
        %2870 = vmatpush1.msra.mxu0 0.0
        %2871 = vmatprep.subr.mxu0 0.0
        %2872 = vmatpush1.msra.mxu0 0.0
        %2873 = vmatprep.subr.mxu0 0.0
        %2874 = vmatpush1.msra.mxu0 0.0
        %2875 = vmatprep.subr.mxu0 0.0
        %2876 = vmatpush1.msra.mxu0 0.0
        %2877 = vmatprep.subr.mxu0 0.0
        %2878 = vmatpush1.msra.mxu0 0.0
        %2879 = vmatprep.subr.mxu0 0.0
        %2880 = vmatpush1.msra.mxu0 0.0
        %2881 = vmatprep.subr.mxu0 0.0
        %2882 = vmatpush1.msra.mxu0 0.0
        %2883 = vmatprep.subr.mxu0 0.0
        %2884 = vmatpush1.msra.mxu0 0.0
        %2885 = vmatprep.subr.mxu0 0.0
        %2886 = vmatpush1.msra.mxu0 0.0
        %2887 = vmatprep.subr.mxu0 0.0
        %2888 = vmatpush1.msra.mxu0 0.0
        %2889 = vmatprep.subr.mxu0 0.0
        %2890 = vmatpush1.msra.mxu0 0.0
        %2891 = vmatprep.subr.mxu0 0.0
        %2892 = vmatpush1.msra.mxu0 0.0
        %2893 = vmatprep.subr.mxu0 0.0
        %2894 = vmatpush1.msra.mxu0 0.0
        %2895 = vmatprep.subr.mxu0 0.0
        %2896 = vmatpush1.msra.mxu0 0.0
        %2897 = vmatprep.subr.mxu0 0.0
        %2898 = vmatpush1.msra.mxu0 0.0
        %2899 = vmatprep.subr.mxu0 0.0
        %2900 = vmatpush1.msra.mxu0 0.0
        %2901 = vmatprep.subr.mxu0 0.0
        %2902 = vmatpush1.msra.mxu0 0.0
        %2903 = vmatprep.subr.mxu0 0.0
        %2904 = vmatpush1.msra.mxu0 0.0
        %2905 = vmatprep.subr.mxu0 0.0
        %2906 = vmatpush1.msra.mxu0 0.0
        %2907 = vmatprep.subr.mxu0 0.0
        %2908 = vmatpush1.msra.mxu0 0.0
        %2909 = vmatprep.subr.mxu0 0.0
        %2910 = vmatpush1.msra.mxu0 0.0
        %2911 = vmatprep.subr.mxu0 0.0
        %2912 = vmatpush1.msra.mxu0 0.0
        %2913 = vmatprep.mubr.f32.mxu0 0.0
        %2914 = vmatmul.mubr.f32.gmra.mrb[0].mxu0 %v2844
        %v2915 = vpop.f32.mrb[0].mxu0
        %v2916 = vadd.f32 0.0, %v2915
        %v2917 = vpop.f32.mrb[0].mxu0
        %2918 = vmatprep.mubr.f32.mxu0 0.0
        %2919 = vmatmul.mubr.f32.gmra.mrb[0].mxu0 %v2847
        %v2920 = vpop.f32.mrb[0].mxu0
        %v2921 = vadd.f32 0.0, %v2920
        %v2922 = vpop.f32.mrb[0].mxu0
        %2923 = vdwg.mxu0
        %v2924 = vld [vmem:[%s11] sm:$0xff]
        %v2925 = vld [vmem:[%s11 + $0x8] sm:$0x3]
        %v2927 = vsel %vm1013, %v2924, 0
        %v2930 = vsel %vm1013, %v2925, 0
        %2932 = vmatprep.subr.mxu0 0.0
        %2933 = vmatpush1.msra.mxu0 %v2839
        %2934 = vmatprep.subr.mxu0 0.0
        %2935 = vmatpush1.msra.mxu0 %v2840
        %2936 = vmatprep.subr.mxu0 0.0
        %2937 = vmatpush1.msra.mxu0 0.0
        %2938 = vmatprep.subr.mxu0 0.0
        %2939 = vmatpush1.msra.mxu0 0.0
        %2940 = vmatprep.subr.mxu0 0.0
        %2941 = vmatpush1.msra.mxu0 0.0
        %2942 = vmatprep.subr.mxu0 0.0
        %2943 = vmatpush1.msra.mxu0 0.0
        %2944 = vmatprep.subr.mxu0 0.0
        %2945 = vmatpush1.msra.mxu0 0.0
        %2946 = vmatprep.subr.mxu0 0.0
        %2947 = vmatpush1.msra.mxu0 0.0
        %2948 = vmatprep.subr.mxu0 0.0
        %2949 = vmatpush1.msra.mxu0 0.0
        %2950 = vmatprep.subr.mxu0 0.0
        %2951 = vmatpush1.msra.mxu0 0.0
        %2952 = vmatprep.subr.mxu0 0.0
        %2953 = vmatpush1.msra.mxu0 0.0
        %2954 = vmatprep.subr.mxu0 0.0
        %2955 = vmatpush1.msra.mxu0 0.0
        %2956 = vmatprep.subr.mxu0 0.0
        %2957 = vmatpush1.msra.mxu0 0.0
        %2958 = vmatprep.subr.mxu0 0.0
        %2959 = vmatpush1.msra.mxu0 0.0
        %2960 = vmatprep.subr.mxu0 0.0
        %2961 = vmatpush1.msra.mxu0 0.0
        %2962 = vmatprep.subr.mxu0 0.0
        %2963 = vmatpush1.msra.mxu0 0.0
        %2964 = vmatprep.subr.mxu0 0.0
        %2965 = vmatpush1.msra.mxu0 0.0
        %2966 = vmatprep.subr.mxu0 0.0
        %2967 = vmatpush1.msra.mxu0 0.0
        %2968 = vmatprep.subr.mxu0 0.0
        %2969 = vmatpush1.msra.mxu0 0.0
        %2970 = vmatprep.subr.mxu0 0.0
        %2971 = vmatpush1.msra.mxu0 0.0
        %2972 = vmatprep.subr.mxu0 0.0
        %2973 = vmatpush1.msra.mxu0 0.0
        %2974 = vmatprep.subr.mxu0 0.0
        %2975 = vmatpush1.msra.mxu0 0.0
        %2976 = vmatprep.subr.mxu0 0.0
        %2977 = vmatpush1.msra.mxu0 0.0
        %2978 = vmatprep.subr.mxu0 0.0
        %2979 = vmatpush1.msra.mxu0 0.0
        %2980 = vmatprep.subr.mxu0 0.0
        %2981 = vmatpush1.msra.mxu0 0.0
        %2982 = vmatprep.subr.mxu0 0.0
        %2983 = vmatpush1.msra.mxu0 0.0
        %2984 = vmatprep.subr.mxu0 0.0
        %2985 = vmatpush1.msra.mxu0 0.0
        %2986 = vmatprep.subr.mxu0 0.0
        %2987 = vmatpush1.msra.mxu0 0.0
        %2988 = vmatprep.subr.mxu0 0.0
        %2989 = vmatpush1.msra.mxu0 0.0
        %2990 = vmatprep.subr.mxu0 0.0
        %2991 = vmatpush1.msra.mxu0 0.0
        %2992 = vmatprep.subr.mxu0 0.0
        %2993 = vmatpush1.msra.mxu0 0.0
        %2994 = vmatprep.subr.mxu0 0.0
        %2995 = vmatpush1.msra.mxu0 0.0
        %2996 = vmatprep.mubr.f32.mxu0 0.0
        %2997 = vmatmul.mubr.f32.gmra.mrb[0].mxu0 %v2927
        %v2998 = vpop.f32.mrb[0].mxu0
        %v2999 = vadd.f32 0.0, %v2998
        %v3000 = vpop.f32.mrb[0].mxu0
        %3001 = vmatprep.mubr.f32.mxu0 0.0
        %3002 = vmatmul.mubr.f32.gmra.mrb[0].mxu0 %v2930
        %v3003 = vpop.f32.mrb[0].mxu0
        %v3004 = vadd.f32 0.0, %v3003
        %v3005 = vpop.f32.mrb[0].mxu0
        %3006 = vdwg.mxu0
        %v3007 = vld [vmem:[%s14] sm:$0xff]
        %v3008 = vld [vmem:[%s14 + $0x8] sm:$0x3]
        %v3009 = vld [vmem:[%s15] sm:$0xff]
        %v3010 = vld [vmem:[%s15 + $0x8] sm:$0x3]
        %v3011 = vmul.f32 %v2916, %v3007
        %v3012 = vmul.f32 %v2921, %v3008
        %v3013 = vmul.f32 %v2999, %v3009
        %v3014 = vmul.f32 %v3004, %v3010
        %v3015 = vsub.f32 %v3011, %v3013
        %v3016 = vsub.f32 %v3012, %v3014
        %v3017 = vmul.f32 %v2916, %v3009
        %v3018 = vmul.f32 %v2921, %v3010
        %v3019 = vmul.f32 %v2999, %v3007
        %v3020 = vmul.f32 %v3004, %v3008
        %v3021 = vadd.f32 %v3017, %v3019
        %v3022 = vadd.f32 %v3018, %v3020
        %v3023 = vld [vmem:[%s12] sm:$0xff]
        %v3024 = vld [vmem:[%s12 + $0x8] sm:$0xff]
        %v3025 = vld [vmem:[%s13] sm:$0xff]
        %v3026 = vld [vmem:[%s13 + $0x8] sm:$0xff]
        %vm3027 = vcmask 80896
        %v3029 = vsel %vm3027, %v3025, 0
        %v3032 = vsel %vm3027, %v3026, 0
        %vm3034 = vcmask 1041408
        %v3036 = vsel %vm3034, %v3022, 0
        %3038 = vmatprep.subr.mxu0 0.0
        %3039 = vmatpush1.msra.mxu0 %v3021
        %3040 = vmatprep.subr.mxu0 0.0
        %3041 = vmatpush1.msra.mxu0 %v3036
        %3042 = vmatprep.subr.mxu0 0.0
        %3043 = vmatpush1.msra.mxu0 0.0
        %3044 = vmatprep.subr.mxu0 0.0
        %3045 = vmatpush1.msra.mxu0 0.0
        %3046 = vmatprep.subr.mxu0 0.0
        %3047 = vmatpush1.msra.mxu0 0.0
        %3048 = vmatprep.subr.mxu0 0.0
        %3049 = vmatpush1.msra.mxu0 0.0
        %3050 = vmatprep.subr.mxu0 0.0
        %3051 = vmatpush1.msra.mxu0 0.0
        %3052 = vmatprep.subr.mxu0 0.0
        %3053 = vmatpush1.msra.mxu0 0.0
        %3054 = vmatprep.subr.mxu0 0.0
        %3055 = vmatpush1.msra.mxu0 0.0
        %3056 = vmatprep.subr.mxu0 0.0
        %3057 = vmatpush1.msra.mxu0 0.0
        %3058 = vmatprep.subr.mxu0 0.0
        %3059 = vmatpush1.msra.mxu0 0.0
        %3060 = vmatprep.subr.mxu0 0.0
        %3061 = vmatpush1.msra.mxu0 0.0
        %3062 = vmatprep.subr.mxu0 0.0
        %3063 = vmatpush1.msra.mxu0 0.0
        %3064 = vmatprep.subr.mxu0 0.0
        %3065 = vmatpush1.msra.mxu0 0.0
        %3066 = vmatprep.subr.mxu0 0.0
        %3067 = vmatpush1.msra.mxu0 0.0
        %3068 = vmatprep.subr.mxu0 0.0
        %3069 = vmatpush1.msra.mxu0 0.0
        %3070 = vmatprep.subr.mxu0 0.0
        %3071 = vmatpush1.msra.mxu0 0.0
        %3072 = vmatprep.subr.mxu0 0.0
        %3073 = vmatpush1.msra.mxu0 0.0
        %3074 = vmatprep.subr.mxu0 0.0
        %3075 = vmatpush1.msra.mxu0 0.0
        %3076 = vmatprep.subr.mxu0 0.0
        %3077 = vmatpush1.msra.mxu0 0.0
        %3078 = vmatprep.subr.mxu0 0.0
        %3079 = vmatpush1.msra.mxu0 0.0
        %3080 = vmatprep.subr.mxu0 0.0
        %3081 = vmatpush1.msra.mxu0 0.0
        %3082 = vmatprep.subr.mxu0 0.0
        %3083 = vmatpush1.msra.mxu0 0.0
        %3084 = vmatprep.subr.mxu0 0.0
        %3085 = vmatpush1.msra.mxu0 0.0
        %3086 = vmatprep.subr.mxu0 0.0
        %3087 = vmatpush1.msra.mxu0 0.0
        %3088 = vmatprep.subr.mxu0 0.0
        %3089 = vmatpush1.msra.mxu0 0.0
        %3090 = vmatprep.subr.mxu0 0.0
        %3091 = vmatpush1.msra.mxu0 0.0
        %3092 = vmatprep.subr.mxu0 0.0
        %3093 = vmatpush1.msra.mxu0 0.0
        %3094 = vmatprep.subr.mxu0 0.0
        %3095 = vmatpush1.msra.mxu0 0.0
        %3096 = vmatprep.subr.mxu0 0.0
        %3097 = vmatpush1.msra.mxu0 0.0
        %3098 = vmatprep.subr.mxu0 0.0
        %3099 = vmatpush1.msra.mxu0 0.0
        %3100 = vmatprep.subr.mxu0 0.0
        %3101 = vmatpush1.msra.mxu0 0.0
        %3102 = vmatprep.mubr.f32.mxu0 0.0
        %3103 = vmatmul.mubr.f32.gmra.mrb[0].mxu0 %v3029
        %v3104 = vpop.f32.mrb[0].mxu0
        %v3105 = vadd.f32 0.0, %v3104
        %v3106 = vpop.f32.mrb[0].mxu0
        %3107 = vmatprep.mubr.f32.mxu0 0.0
        %3108 = vmatmul.mubr.f32.gmra.mrb[0].mxu0 %v3032
        %v3109 = vpop.f32.mrb[0].mxu0
        %v3110 = vadd.f32 0.0, %v3109
        %v3111 = vpop.f32.mrb[0].mxu0
        %3112 = vdwg.mxu0
        %v3114 = vsel %vm3027, %v3023, 0
        %v3117 = vsel %vm3027, %v3024, 0
        %v3120 = vsel %vm3034, %v3016, 0
        %3122 = vmatprep.subr.mxu0 0.0
        %3123 = vmatpush1.msra.mxu0 %v3015
        %3124 = vmatprep.subr.mxu0 0.0
        %3125 = vmatpush1.msra.mxu0 %v3120
        %3126 = vmatprep.subr.mxu0 0.0
        %3127 = vmatpush1.msra.mxu0 0.0
        %3128 = vmatprep.subr.mxu0 0.0
        %3129 = vmatpush1.msra.mxu0 0.0
        %3130 = vmatprep.subr.mxu0 0.0
        %3131 = vmatpush1.msra.mxu0 0.0
        %3132 = vmatprep.subr.mxu0 0.0
        %3133 = vmatpush1.msra.mxu0 0.0
        %3134 = vmatprep.subr.mxu0 0.0
        %3135 = vmatpush1.msra.mxu0 0.0
        %3136 = vmatprep.subr.mxu0 0.0
        %3137 = vmatpush1.msra.mxu0 0.0
        %3138 = vmatprep.subr.mxu0 0.0
        %3139 = vmatpush1.msra.mxu0 0.0
        %3140 = vmatprep.subr.mxu0 0.0
        %3141 = vmatpush1.msra.mxu0 0.0
        %3142 = vmatprep.subr.mxu0 0.0
        %3143 = vmatpush1.msra.mxu0 0.0
        %3144 = vmatprep.subr.mxu0 0.0
        %3145 = vmatpush1.msra.mxu0 0.0
        %3146 = vmatprep.subr.mxu0 0.0
        %3147 = vmatpush1.msra.mxu0 0.0
        %3148 = vmatprep.subr.mxu0 0.0
        %3149 = vmatpush1.msra.mxu0 0.0
        %3150 = vmatprep.subr.mxu0 0.0
        %3151 = vmatpush1.msra.mxu0 0.0
        %3152 = vmatprep.subr.mxu0 0.0
        %3153 = vmatpush1.msra.mxu0 0.0
        %3154 = vmatprep.subr.mxu0 0.0
        %3155 = vmatpush1.msra.mxu0 0.0
        %3156 = vmatprep.subr.mxu0 0.0
        %3157 = vmatpush1.msra.mxu0 0.0
        %3158 = vmatprep.subr.mxu0 0.0
        %3159 = vmatpush1.msra.mxu0 0.0
        %3160 = vmatprep.subr.mxu0 0.0
        %3161 = vmatpush1.msra.mxu0 0.0
        %3162 = vmatprep.subr.mxu0 0.0
        %3163 = vmatpush1.msra.mxu0 0.0
        %3164 = vmatprep.subr.mxu0 0.0
        %3165 = vmatpush1.msra.mxu0 0.0
        %3166 = vmatprep.subr.mxu0 0.0
        %3167 = vmatpush1.msra.mxu0 0.0
        %3168 = vmatprep.subr.mxu0 0.0
        %3169 = vmatpush1.msra.mxu0 0.0
        %3170 = vmatprep.subr.mxu0 0.0
        %3171 = vmatpush1.msra.mxu0 0.0
        %3172 = vmatprep.subr.mxu0 0.0
        %3173 = vmatpush1.msra.mxu0 0.0
        %3174 = vmatprep.subr.mxu0 0.0
        %3175 = vmatpush1.msra.mxu0 0.0
        %3176 = vmatprep.subr.mxu0 0.0
        %3177 = vmatpush1.msra.mxu0 0.0
        %3178 = vmatprep.subr.mxu0 0.0
        %3179 = vmatpush1.msra.mxu0 0.0
        %3180 = vmatprep.subr.mxu0 0.0
        %3181 = vmatpush1.msra.mxu0 0.0
        %3182 = vmatprep.subr.mxu0 0.0
        %3183 = vmatpush1.msra.mxu0 0.0
        %3184 = vmatprep.subr.mxu0 0.0
        %3185 = vmatpush1.msra.mxu0 0.0
        %3186 = vmatprep.mubr.f32.mxu0 0.0
        %3187 = vmatmul.mubr.f32.gmra.mrb[0].mxu0 %v3114
        %v3188 = vpop.f32.mrb[0].mxu0
        %v3189 = vadd.f32 %v3105, %v3188
        %v3190 = vpop.f32.mrb[0].mxu0
        %3191 = vmatprep.mubr.f32.mxu0 0.0
        %3192 = vmatmul.mubr.f32.gmra.mrb[0].mxu0 %v3117
        %v3193 = vpop.f32.mrb[0].mxu0
        %v3194 = vadd.f32 %v3110, %v3193
        %v3195 = vpop.f32.mrb[0].mxu0
        %3196 = vdwg.mxu0
        %v3197 = vadd.f32 %v3189, %v2839
        %v3198 = vadd.f32 %v3194, %v2840
        %v3199 = vsel %vm667, %v3197, 0.0
        %3200 = vadd.xlane.f32.xlu0 %v3199
        %v3201 = vpop.xlane.xlu0 %3200
        %v3202 = vsel %vm667, %v3198, 0.0
        %3203 = vadd.xlane.f32.xlu0 %v3202
        %v3204 = vpop.xlane.xlu0 %3203
        %v3205 = vrcp.pop 32.0
        %v3206 = vmul.f32 %v3201, %v3205
        %v3207 = vmul.f32 %v3204, %v3205
        %v3208 = vsub.f32 %v3197, %v3206
        %v3209 = vsub.f32 %v3198, %v3207
        %v3210 = vmul.f32 %v3208, %v3208
        %v3211 = vmul.f32 %v3209, %v3209
        %v3212 = vsel %vm667, %v3210, 0.0
        %3213 = vadd.xlane.f32.xlu0 %v3212
        %v3214 = vpop.xlane.xlu0 %3213
        %v3215 = vsel %vm667, %v3211, 0.0
        %3216 = vadd.xlane.f32.xlu0 %v3215
        %v3217 = vpop.xlane.xlu0 %3216
        %v3218 = vmul.f32 %v3214, %v3205
        %v3219 = vmul.f32 %v3217, %v3205
        %v3220 = vadd.f32 %v3218, 1e-12
        %v3221 = vadd.f32 %v3219, 1e-12
        %v3222 = vrsqrt.pop %v3220
        %v3223 = vrsqrt.pop %v3221
        %v3224 = vmul.f32 %v3208, %v3222
        %v3225 = vmul.f32 %v3209, %v3223
        %v3226 = vld [vmem:[%s16] sm:$0x1]
        %v3228 = vlaneseq
        %v3229 = vshrl.u32 %v3228, 7
        %v3230 = vsub.s32 0, %v3229
        %v3231 = vrot.slane %v3226, %v3230
        %v3233 = vmul.f32 %v3231, %v3224
        %v3234 = vmul.f32 %v3231, %v3225
        %v3235 = vld [vmem:[%s17] sm:$0x1]
        %v3237 = vlaneseq
        %v3238 = vshrl.u32 %v3237, 7
        %v3239 = vsub.s32 0, %v3238
        %v3240 = vrot.slane %v3235, %v3239
        %v3242 = vadd.f32 %v3233, %v3240
        %v3243 = vadd.f32 %v3234, %v3240
        %v3244 = vadd.f32 %v3242, %v3243
        %v3245 = vld [vmem:[%s18] sm:$0xff]
        %v3246 = vld [vmem:[%s18 + $0x8] sm:$0xff]
        %v3247 = vld [vmem:[%s18 + $0x10] sm:$0xff]
        %v3248 = vld [vmem:[%s18 + $0x18] sm:$0xff]
        %v3249 = vld [vmem:[%s19] sm:$0x1]
        %v3250 = vmul.f32 %v3249, 2.0
        %v3252 = vlaneseq
        %v3253 = vshrl.u32 %v3252, 7
        %v3254 = vsub.s32 0, %v3253
        %v3255 = vrot.slane %v3250, %v3254
        %v3258 = vsel %vm667, %v3244, 0
        %3260 = vmatprep.subr.mxu0 0.0
        %3261 = vmatpush1.msra.mxu0 %v3245
        %3262 = vmatprep.subr.mxu0 0.0
        %3263 = vmatpush1.msra.mxu0 %v3246
        %3264 = vmatprep.subr.mxu0 0.0
        %3265 = vmatpush1.msra.mxu0 %v3247
        %3266 = vmatprep.subr.mxu0 0.0
        %3267 = vmatpush1.msra.mxu0 %v3248
        %3268 = vmatprep.subr.mxu0 0.0
        %3269 = vmatpush1.msra.mxu0 0.0
        %3270 = vmatprep.subr.mxu0 0.0
        %3271 = vmatpush1.msra.mxu0 0.0
        %3272 = vmatprep.subr.mxu0 0.0
        %3273 = vmatpush1.msra.mxu0 0.0
        %3274 = vmatprep.subr.mxu0 0.0
        %3275 = vmatpush1.msra.mxu0 0.0
        %3276 = vmatprep.subr.mxu0 0.0
        %3277 = vmatpush1.msra.mxu0 0.0
        %3278 = vmatprep.subr.mxu0 0.0
        %3279 = vmatpush1.msra.mxu0 0.0
        %3280 = vmatprep.subr.mxu0 0.0
        %3281 = vmatpush1.msra.mxu0 0.0
        %3282 = vmatprep.subr.mxu0 0.0
        %3283 = vmatpush1.msra.mxu0 0.0
        %3284 = vmatprep.subr.mxu0 0.0
        %3285 = vmatpush1.msra.mxu0 0.0
        %3286 = vmatprep.subr.mxu0 0.0
        %3287 = vmatpush1.msra.mxu0 0.0
        %3288 = vmatprep.subr.mxu0 0.0
        %3289 = vmatpush1.msra.mxu0 0.0
        %3290 = vmatprep.subr.mxu0 0.0
        %3291 = vmatpush1.msra.mxu0 0.0
        %3292 = vmatprep.subr.mxu0 0.0
        %3293 = vmatpush1.msra.mxu0 0.0
        %3294 = vmatprep.subr.mxu0 0.0
        %3295 = vmatpush1.msra.mxu0 0.0
        %3296 = vmatprep.subr.mxu0 0.0
        %3297 = vmatpush1.msra.mxu0 0.0
        %3298 = vmatprep.subr.mxu0 0.0
        %3299 = vmatpush1.msra.mxu0 0.0
        %3300 = vmatprep.subr.mxu0 0.0
        %3301 = vmatpush1.msra.mxu0 0.0
        %3302 = vmatprep.subr.mxu0 0.0
        %3303 = vmatpush1.msra.mxu0 0.0
        %3304 = vmatprep.subr.mxu0 0.0
        %3305 = vmatpush1.msra.mxu0 0.0
        %3306 = vmatprep.subr.mxu0 0.0
        %3307 = vmatpush1.msra.mxu0 0.0
        %3308 = vmatprep.subr.mxu0 0.0
        %3309 = vmatpush1.msra.mxu0 0.0
        %3310 = vmatprep.subr.mxu0 0.0
        %3311 = vmatpush1.msra.mxu0 0.0
        %3312 = vmatprep.subr.mxu0 0.0
        %3313 = vmatpush1.msra.mxu0 0.0
        %3314 = vmatprep.subr.mxu0 0.0
        %3315 = vmatpush1.msra.mxu0 0.0
        %3316 = vmatprep.subr.mxu0 0.0
        %3317 = vmatpush1.msra.mxu0 0.0
        %3318 = vmatprep.subr.mxu0 0.0
        %3319 = vmatpush1.msra.mxu0 0.0
        %3320 = vmatprep.subr.mxu0 0.0
        %3321 = vmatpush1.msra.mxu0 0.0
        %3322 = vmatprep.subr.mxu0 0.0
        %3323 = vmatpush1.msra.mxu0 0.0
        %3324 = vmatprep.mubr.f32.mxu0 0.0
        %3325 = vmatmul.mubr.f32.gmra.mrb[0].mxu0 %v3258
        %v3326 = vpop.f32.mrb[0].mxu0
        %v3327 = vadd.f32 %v3255, %v3326
        %v3328 = vpop.f32.mrb[0].mxu0
        %3329 = vdwg.mxu0
        %3330 = vst.msk [vmem:[%s633] sm:$0xff] %vm667, %v3327
        %s3331 = sand.u32 %s472, 1
        %s3332 = scalar_lea.sflag [#allocation3], %s3331
        %s3333 = sand.u32 %s472, 1
        %s3334 = smul.addr %s3333, 8
        %s3335 = scalar_lea.vmem [#allocation2], %s3334
        // Predicated region
        $region101: #{tpu_custom_call.1} parent=99 // pred_check
          %p3336 = pneg %p482
        $region102: #{tpu_custom_call.1} parent=99 // pred_check_branch
          %3338 = sbr.rel (%p3336) target = $region104
        $region103: #{tpu_custom_call.1} parent=99 // pred_region
          %s3340 = ssub.s32 128, 128
          %3341 = vsyncadd %s3332, %s3340
          %s3342 = smul.addr %s34, 128
          %s3343 = scalar_lea.hbm %s20, %s3342
          %s3345 = sshll.u32 %s3335, 4
          %s3346 = int_to_ptr.vmem [resolvable:$true] %s3345
          %3348 = dma.vmem_to_hbm [thread:$0]  %s3346, 128, %s3343, %s3332
        $region104: #{tpu_custom_call.1} parent=99 // pred_fallthru
          _
      $region100: #{tpu_custom_call.1} parent=5 // pred_fallthru
        _
      %p3349 = scmp.le.s32.totalorder 2, %s29
      // Predicated region
      $region105: #{tpu_custom_call.1} parent=5 // pred_check
        %p3350 = pneg %p3349
      $region106: #{tpu_custom_call.1} parent=5 // pred_check_branch
        %3352 = sbr.rel (%p3350) target = $region108
      $region107: #{tpu_custom_call.1} parent=5 // pred_region
        %s3353 = ssub.s32 %s29, 2
        // Predicated region
        $region109: #{tpu_custom_call.1} parent=107 // pred_check
          %p3354 = pneg %p488
        $region110: #{tpu_custom_call.1} parent=107 // pred_check_branch
          %3356 = sbr.rel (%p3354) target = $region112
        $region111: #{tpu_custom_call.1} parent=107 // pred_region
          %s3357 = sand.u32 %s473, 1
          %s3358 = scalar_lea.sflag [#allocation3], %s3357
          %s3359 = sand.u32 %s473, 1
          %s3360 = smul.addr %s3359, 8
          %s3361 = scalar_lea.vmem [#allocation2], %s3360
          %3362 = dma.done %s3358, 128
        $region112: #{tpu_custom_call.1} parent=107 // pred_fallthru
          _
      $region108: #{tpu_custom_call.1} parent=5 // pred_fallthru
        _
    $region6: #{tpu_custom_call.1} parent=1 // loop_footer
      %s33 = sadd.s32 1, %s29
    $region7: #{tpu_custom_call.1} parent=1 // loop_footer_branch
      %28 = sbr.rel target = $region3
    $region8: #{tpu_custom_call.1} parent=1 // loop_exit
      _
    %3363 = vsyncpa [#allocation3], 1
    %s3364 = scalar_lea.sflag [#allocation3], 1
    %3365 = vsyncpa %s3364, 1

</llo_original>
